<compile_context>
chip_gen: v7x
topology: tpu7x:2x2x1
jax: 0.10.0
libtpu: 0.0.40
codegen_flags: <defaults>
</compile_context>

<pallas_src>
import jax
import jax.numpy as jnp
from jax.experimental import pallas as pl
from jax.experimental.pallas import tpu as pltpu

Z_DIM = 20
D_IN = 784
D_HID = 400
TB_MAX = 512          # max batch rows per grid step (sweep point 512/1024)


def vae1c_kernel(x_ref, w1_ref, b1_ref, w2_ref, b2_ref, w3_ref, b3_ref,
                 w4_ref, b4_ref, eps_ref, recon_ref, muvar_ref):
    z_dim = eps_ref.shape[-1]
    x = x_ref[...]                                   # bf16 (TB, 784)

    # encode: h1 = relu(x @ W1 + b1)   (bf16 MXU operands, f32 accumulation)
    h1 = jnp.dot(x, w1_ref[...], preferred_element_type=jnp.float32) + b1_ref[...]
    h1 = jnp.maximum(h1, 0.0)

    # fused (and lane-padded) mu/logvar projection: [400] -> [128]
    muvar = jnp.dot(h1.astype(jnp.bfloat16), w2_ref[...],
                    preferred_element_type=jnp.float32) + b2_ref[...]
    mu = muvar[:, :z_dim]
    logvar = muvar[:, z_dim:2 * z_dim]

    # reparameterize: z = mu + eps * exp(0.5 * logvar)   (kept in f32)
    std = jnp.exp(0.5 * logvar)
    z = mu + eps_ref[...] * std

    # decode: sigmoid(relu(z @ W3 + b3) @ W4 + b4)
    h3 = jnp.dot(z.astype(jnp.bfloat16), w3_ref[...],
                 preferred_element_type=jnp.float32) + b3_ref[...]
    h3 = jnp.maximum(h3, 0.0)
    logits = jnp.dot(h3.astype(jnp.bfloat16), w4_ref[...],
                     preferred_element_type=jnp.float32) + b4_ref[...]

    # sigmoid via tanh identity -> EUP slot; math in f32, store in bf16.
    recon = 0.5 * (jnp.tanh(0.5 * logits) + 1.0)
    recon_ref[...] = recon.astype(recon_ref.dtype)   # bf16 output stream
    muvar_ref[...] = muvar                           # lane-dense 128-wide f32 slab


def _round_up(n, m):
    return ((n + m - 1) // m) * m


def init_params(key, z_dim=Z_DIM):
    """Deterministic synthetic parameters. Weights stored as [in, out] bf16."""
    ks = jax.random.split(key, 10)

    def lin(kw, kb, fan_in, fan_out):
        bound = 1.0 / jnp.sqrt(fan_in)
        w = jax.random.uniform(kw, (fan_in, fan_out), jnp.float32, -bound, bound)
        b = jax.random.uniform(kb, (1, fan_out), jnp.float32, -bound, bound)
        return w, b

    w1, b1 = lin(ks[0], ks[1], D_IN, D_HID)
    w21, b21 = lin(ks[2], ks[3], D_HID, z_dim)
    w22, b22 = lin(ks[4], ks[5], D_HID, z_dim)
    w3, b3 = lin(ks[6], ks[7], z_dim, D_HID)
    w4, b4 = lin(ks[8], ks[9], D_HID, D_IN)

    # Fuse fc21 | fc22 into one projection and zero-pad it to a lane-dense
    # 128-wide output slab (unmasked stores; no effect on the first 2*z_dim cols).
    w2 = jnp.concatenate([w21, w22], axis=1)
    b2 = jnp.concatenate([b21, b22], axis=1)
    lanes = max(128, _round_up(2 * z_dim, 128))
    w2 = jnp.pad(w2, ((0, 0), (0, lanes - 2 * z_dim)))
    b2 = jnp.pad(b2, ((0, 0), (0, lanes - 2 * z_dim)))

    bf16 = lambda w: w.astype(jnp.bfloat16)
    return dict(w1=bf16(w1), b1=b1, w2=bf16(w2), b2=b2,
                w3=bf16(w3), b3=b3, w4=bf16(w4), b4=b4)


def vae1c_forward(x, params, eps):
    """x: any shape flattening to (-1, 784); eps: (B, z_dim) standard normal.

    Returns (recon_bf16, mu_f32, logvar_f32); upcast recon if callers need f32.
    """
    z_dim = eps.shape[-1]
    muvar_lanes = params["w2"].shape[1]
    xf = x.reshape(-1, D_IN)
    B = xf.shape[0]

    # Batch tiling: tiles are sublane-aligned (multiple of 8), capped at TB_MAX
    # rows, and the tile count is forced to an even number >= 2 so v7x's two
    # TensorCores both get balanced work under dimension_semantics=("parallel",).
    B8 = _round_up(B, 8)
    n_tiles = max(2, pl.cdiv(B8, TB_MAX))
    n_tiles = 2 * pl.cdiv(n_tiles, 2)
    TB = _round_up(pl.cdiv(B8, n_tiles), 8)
    B_pad = n_tiles * TB

    xb = xf.astype(jnp.bfloat16)
    epsf = eps.astype(jnp.float32)
    if B_pad != B:
        xb = jnp.pad(xb, ((0, B_pad - B), (0, 0)))
        epsf = jnp.pad(epsf, ((0, B_pad - B), (0, 0)))

    grid = (n_tiles,)

    def row_spec(shape):
        return pl.BlockSpec(shape, lambda i: (i, 0))

    def const_spec(shape):
        # Constant block index -> weights stay resident across all batch tiles.
        return pl.BlockSpec(shape, lambda i: (0, 0))

    flops = 2 * B_pad * (D_IN * D_HID + D_HID * muvar_lanes
                         + z_dim * D_HID + D_HID * D_IN)
    transcendentals = B_pad * (z_dim + D_IN)          # exp in reparam + tanh-sigmoid
    bytes_accessed = (
        2 * (D_IN * D_HID + D_HID * muvar_lanes + z_dim * D_HID + D_HID * D_IN)  # bf16 W
        + 4 * (D_HID + muvar_lanes + D_HID + D_IN)                               # f32 biases
        + B_pad * (2 * D_IN            # x in (bf16)
                   + 4 * z_dim         # eps in (f32)
                   + 2 * D_IN          # recon out (bf16)
                   + 4 * muvar_lanes)  # mu|logvar out (f32, lane-dense)
    )

    recon, muvar = pl.pallas_call(
        vae1c_kernel,
        grid=grid,
        out_shape=(
            jax.ShapeDtypeStruct((B_pad, D_IN), jnp.bfloat16),
            jax.ShapeDtypeStruct((B_pad, muvar_lanes), jnp.float32),
        ),
        in_specs=[
            row_spec((TB, D_IN)),                # x tile
            const_spec((D_IN, D_HID)),           # w1 (resident)
            const_spec((1, D_HID)),              # b1
            const_spec((D_HID, muvar_lanes)),    # w2 = [w21|w22|0...]
            const_spec((1, muvar_lanes)),        # b2
            const_spec((z_dim, D_HID)),          # w3
            const_spec((1, D_HID)),              # b3
            const_spec((D_HID, D_IN)),           # w4
            const_spec((1, D_IN)),               # b4
            row_spec((TB, z_dim)),               # eps tile
        ],
        out_specs=(
            row_spec((TB, D_IN)),                # recon tile (bf16)
            row_spec((TB, muvar_lanes)),         # mu|logvar tile (128-lane f32 slab)
        ),
        compiler_params=pltpu.CompilerParams(
            dimension_semantics=("parallel",),   # megacore sharding over batch tiles
            vmem_limit_bytes=32 << 20,           # fits 512-row tiles; safe on v7x 64 MiB
        ),
        cost_estimate=pl.CostEstimate(
            flops=flops,
            transcendentals=transcendentals,
            bytes_accessed=bytes_accessed,
        ),
    )(xb,
      params["w1"], params["b1"],
      params["w2"], params["b2"],
      params["w3"], params["b3"],
      params["w4"], params["b4"],
      epsf)

    recon = recon[:B]                              # bf16; upcast outside if needed
    mu = muvar[:B, :z_dim]
    logvar = muvar[:B, z_dim:2 * z_dim]
    return recon, mu, logvar


def vae1c_forward_ref(x, params, eps):
    """Pure-JAX reference (same bf16 weights, f32 math) for correctness checking."""
    z_dim = eps.shape[-1]
    xf = x.reshape(-1, D_IN).astype(jnp.bfloat16).astype(jnp.float32)
    w1 = params["w1"].astype(jnp.float32)
    w2 = params["w2"].astype(jnp.float32)
    w3 = params["w3"].astype(jnp.float32)
    w4 = params["w4"].astype(jnp.float32)
    h1 = jnp.maximum(xf @ w1 + params["b1"], 0.0)
    muvar = h1 @ w2 + params["b2"]
    mu, logvar = muvar[:, :z_dim], muvar[:, z_dim:2 * z_dim]
    z = mu + eps * jnp.exp(0.5 * logvar)
    h3 = jnp.maximum(z @ w3 + params["b3"], 0.0)
    recon = jax.nn.sigmoid(h3 @ w4 + params["b4"])
    return recon, mu, logvar


if __name__ == "__main__":
    key = jax.random.PRNGKey(0)
    k_param, k_x, k_eps = jax.random.split(key, 3)

    params = init_params(k_param, Z_DIM)

    # NCHW input like the PyTorch module expects (1-channel 28x28 "images").
    x = jax.random.uniform(k_x, (2, 1, 28, 28), jnp.float32)
    B = x.shape[0]
    # TODO(synk): torch.randn_like(std) is not drawn in-kernel; noise eps is
    # passed in explicitly for determinism (pltpu.prng_* could replace it).
    eps = jax.random.normal(k_eps, (B, Z_DIM), jnp.float32)

    recon, mu, logvar = vae1c_forward(x, params, eps)
    jax.block_until_ready((recon, mu, logvar))

    r_ref, m_ref, lv_ref = vae1c_forward_ref(x, params, eps)
    assert recon.shape == (B, D_IN) and mu.shape == (B, Z_DIM) and logvar.shape == (B, Z_DIM)
    # bf16 MXU operands + bf16 recon output (f32 accumulation/math) -> loosened
    # tolerances vs the pure-f32 PyTorch path; stated precision tradeoff.
    assert jnp.allclose(recon.astype(jnp.float32), r_ref, atol=2e-2, rtol=2e-2)
    assert jnp.allclose(mu, m_ref, atol=2e-2, rtol=2e-2)
    assert jnp.allclose(logvar, lv_ref, atol=2e-2, rtol=2e-2)

    print("KERNEL_OK")
</pallas_src>

<mosaic_0001>
module attributes {stable_mosaic.version = 11 : i64} {
  func.func @vae1c_kernel(%arg0: i32, %arg1: memref<8x784xbf16, #tpu.memory_space<vmem>>, %arg2: memref<784x400xbf16, #tpu.memory_space<vmem>>, %arg3: memref<1x400xf32, #tpu.memory_space<vmem>>, %arg4: memref<400x128xbf16, #tpu.memory_space<vmem>>, %arg5: memref<1x128xf32, #tpu.memory_space<vmem>>, %arg6: memref<20x400xbf16, #tpu.memory_space<vmem>>, %arg7: memref<1x400xf32, #tpu.memory_space<vmem>>, %arg8: memref<400x784xbf16, #tpu.memory_space<vmem>>, %arg9: memref<1x784xf32, #tpu.memory_space<vmem>>, %arg10: memref<8x20xf32, #tpu.memory_space<vmem>>, %arg11: memref<8x784xbf16, #tpu.memory_space<vmem>>, %arg12: memref<8x128xf32, #tpu.memory_space<vmem>>) attributes {dimension_semantics = [#tpu.dimension_semantics<parallel>], iteration_bounds = array<i64: 2>, scalar_prefetch = 0 : i64, scratch_operands = 0 : i64, tpu.core_type = #tpu.core_type<tc>, window_params = [{transform_indices = @transform_0, window_bounds = array<i64: 8, 784>}, {pipeline_mode = #tpu.pipeline_mode<synchronous>, transform_indices = @transform_1, window_bounds = array<i64: 784, 400>}, {pipeline_mode = #tpu.pipeline_mode<synchronous>, transform_indices = @transform_2, window_bounds = array<i64: 1, 400>}, {pipeline_mode = #tpu.pipeline_mode<synchronous>, transform_indices = @transform_3, window_bounds = array<i64: 400, 128>}, {pipeline_mode = #tpu.pipeline_mode<synchronous>, transform_indices = @transform_4, window_bounds = array<i64: 1, 128>}, {pipeline_mode = #tpu.pipeline_mode<synchronous>, transform_indices = @transform_5, window_bounds = array<i64: 20, 400>}, {pipeline_mode = #tpu.pipeline_mode<synchronous>, transform_indices = @transform_6, window_bounds = array<i64: 1, 400>}, {pipeline_mode = #tpu.pipeline_mode<synchronous>, transform_indices = @transform_7, window_bounds = array<i64: 400, 784>}, {pipeline_mode = #tpu.pipeline_mode<synchronous>, transform_indices = @transform_8, window_bounds = array<i64: 1, 784>}, {transform_indices = @transform_9, window_bounds = array<i64: 8, 20>}, {transform_indices = @transform_10, window_bounds = array<i64: 8, 784>}, {transform_indices = @transform_11, window_bounds = array<i64: 8, 128>}]} {
    %c0 = arith.constant 0 : index
    %c0_0 = arith.constant 0 : index
    %0 = vector.load %arg1[%c0, %c0_0] : memref<8x784xbf16, #tpu.memory_space<vmem>>, vector<8x784xbf16>
    %c0_1 = arith.constant 0 : index
    %c0_2 = arith.constant 0 : index
    %1 = vector.load %arg2[%c0_1, %c0_2] : memref<784x400xbf16, #tpu.memory_space<vmem>>, vector<784x400xbf16>
    %cst = arith.constant dense<0.000000e+00> : vector<8x400xf32>
    %2 = tpu.matmul %0, %1, %cst {dimension_numbers = #tpu.dot_dimension_numbers<[1], [0], [0], [1], [0, 0, 1, 1], [], []>} : vector<8x784xbf16>, vector<784x400xbf16>, vector<8x400xf32> -> vector<8x400xf32>
    %c0_3 = arith.constant 0 : index
    %c0_4 = arith.constant 0 : index
    %3 = vector.load %arg3[%c0_3, %c0_4] : memref<1x400xf32, #tpu.memory_space<vmem>>, vector<1x400xf32>
    %4 = vector.broadcast %3 : vector<1x400xf32> to vector<8x400xf32>
    %5 = arith.addf %2, %4 : vector<8x400xf32>
    %cst_5 = arith.constant 0.000000e+00 : f32
    %6 = vector.broadcast %cst_5 : f32 to vector<8x400xf32>
    %7 = arith.maximumf %5, %6 : vector<8x400xf32>
    %8 = arith.truncf %7 : vector<8x400xf32> to vector<8x400xbf16>
    %c0_6 = arith.constant 0 : index
    %c0_7 = arith.constant 0 : index
    %9 = vector.load %arg4[%c0_6, %c0_7] : memref<400x128xbf16, #tpu.memory_space<vmem>>, vector<400x128xbf16>
    %cst_8 = arith.constant dense<0.000000e+00> : vector<8x128xf32>
    %10 = tpu.matmul %8, %9, %cst_8 {dimension_numbers = #tpu.dot_dimension_numbers<[1], [0], [0], [1], [0, 0, 1, 1], [], []>} : vector<8x400xbf16>, vector<400x128xbf16>, vector<8x128xf32> -> vector<8x128xf32>
    %c0_9 = arith.constant 0 : index
    %c0_10 = arith.constant 0 : index
    %11 = vector.load %arg5[%c0_9, %c0_10] : memref<1x128xf32, #tpu.memory_space<vmem>>, vector<1x128xf32>
    %12 = vector.broadcast %11 : vector<1x128xf32> to vector<8x128xf32>
    %13 = arith.addf %10, %12 : vector<8x128xf32>
    %14 = vector.extract_strided_slice %13 {offsets = [0, 0], sizes = [8, 20], strides = [1, 1]} : vector<8x128xf32> to vector<8x20xf32>
    %15 = vector.extract_strided_slice %13 {offsets = [0, 20], sizes = [8, 20], strides = [1, 1]} : vector<8x128xf32> to vector<8x20xf32>
    %cst_11 = arith.constant 5.000000e-01 : f32
    %16 = vector.broadcast %cst_11 : f32 to vector<8x20xf32>
    %17 = arith.mulf %16, %15 : vector<8x20xf32>
    %18 = math.exp %17 : vector<8x20xf32>
    %c0_12 = arith.constant 0 : index
    %c0_13 = arith.constant 0 : index
    %19 = vector.load %arg10[%c0_12, %c0_13] : memref<8x20xf32, #tpu.memory_space<vmem>>, vector<8x20xf32>
    %20 = arith.mulf %19, %18 : vector<8x20xf32>
    %21 = arith.addf %14, %20 : vector<8x20xf32>
    %22 = arith.truncf %21 : vector<8x20xf32> to vector<8x20xbf16>
    %c0_14 = arith.constant 0 : index
    %c0_15 = arith.constant 0 : index
    %23 = vector.load %arg6[%c0_14, %c0_15] : memref<20x400xbf16, #tpu.memory_space<vmem>>, vector<20x400xbf16>
    %cst_16 = arith.constant dense<0.000000e+00> : vector<8x400xf32>
    %24 = tpu.matmul %22, %23, %cst_16 {dimension_numbers = #tpu.dot_dimension_numbers<[1], [0], [0], [1], [0, 0, 1, 1], [], []>} : vector<8x20xbf16>, vector<20x400xbf16>, vector<8x400xf32> -> vector<8x400xf32>
    %c0_17 = arith.constant 0 : index
    %c0_18 = arith.constant 0 : index
    %25 = vector.load %arg7[%c0_17, %c0_18] : memref<1x400xf32, #tpu.memory_space<vmem>>, vector<1x400xf32>
    %26 = vector.broadcast %25 : vector<1x400xf32> to vector<8x400xf32>
    %27 = arith.addf %24, %26 : vector<8x400xf32>
    %cst_19 = arith.constant 0.000000e+00 : f32
    %28 = vector.broadcast %cst_19 : f32 to vector<8x400xf32>
    %29 = arith.maximumf %27, %28 : vector<8x400xf32>
    %30 = arith.truncf %29 : vector<8x400xf32> to vector<8x400xbf16>
    %c0_20 = arith.constant 0 : index
    %c0_21 = arith.constant 0 : index
    %31 = vector.load %arg8[%c0_20, %c0_21] : memref<400x784xbf16, #tpu.memory_space<vmem>>, vector<400x784xbf16>
    %cst_22 = arith.constant dense<0.000000e+00> : vector<8x784xf32>
    %32 = tpu.matmul %30, %31, %cst_22 {dimension_numbers = #tpu.dot_dimension_numbers<[1], [0], [0], [1], [0, 0, 1, 1], [], []>} : vector<8x400xbf16>, vector<400x784xbf16>, vector<8x784xf32> -> vector<8x784xf32>
    %c0_23 = arith.constant 0 : index
    %c0_24 = arith.constant 0 : index
    %33 = vector.load %arg9[%c0_23, %c0_24] : memref<1x784xf32, #tpu.memory_space<vmem>>, vector<1x784xf32>
    %34 = vector.broadcast %33 : vector<1x784xf32> to vector<8x784xf32>
    %35 = arith.addf %32, %34 : vector<8x784xf32>
    %cst_25 = arith.constant 5.000000e-01 : f32
    %36 = vector.broadcast %cst_25 : f32 to vector<8x784xf32>
    %37 = arith.mulf %36, %35 : vector<8x784xf32>
    %38 = math.tanh %37 : vector<8x784xf32>
    %cst_26 = arith.constant 1.000000e+00 : f32
    %39 = vector.broadcast %cst_26 : f32 to vector<8x784xf32>
    %40 = arith.addf %38, %39 : vector<8x784xf32>
    %cst_27 = arith.constant 5.000000e-01 : f32
    %41 = vector.broadcast %cst_27 : f32 to vector<8x784xf32>
    %42 = arith.mulf %41, %40 : vector<8x784xf32>
    %43 = arith.truncf %42 : vector<8x784xf32> to vector<8x784xbf16>
    %c0_28 = arith.constant 0 : index
    %c0_29 = arith.constant 0 : index
    %44 = vector.load %arg11[%c0_28, %c0_29] : memref<8x784xbf16, #tpu.memory_space<vmem>>, vector<8x784xbf16>
    tpu.vector_store %arg11[%c0_28, %c0_29], %43 {strides = array<i32>} : memref<8x784xbf16, #tpu.memory_space<vmem>>, vector<8x784xbf16>,
    %c0_30 = arith.constant 0 : index
    %c0_31 = arith.constant 0 : index
    %45 = vector.load %arg12[%c0_30, %c0_31] : memref<8x128xf32, #tpu.memory_space<vmem>>, vector<8x128xf32>
    tpu.vector_store %arg12[%c0_30, %c0_31], %13 {strides = array<i32>} : memref<8x128xf32, #tpu.memory_space<vmem>>, vector<8x128xf32>,
    return
  }
  func.func @transform_0(%arg0: i32) -> (i32, i32) {
    %c0_i32 = arith.constant 0 : i32
    %c0_i32_0 = arith.constant 0 : i32
    return %arg0, %c0_i32 : i32, i32
  }
  func.func @transform_1(%arg0: i32) -> (i32, i32) {
    %c0_i32 = arith.constant 0 : i32
    %c0_i32_0 = arith.constant 0 : i32
    %c0_i32_1 = arith.constant 0 : i32
    return %c0_i32, %c0_i32_0 : i32, i32
  }
  func.func @transform_2(%arg0: i32) -> (i32, i32) {
    %c0_i32 = arith.constant 0 : i32
    %c0_i32_0 = arith.constant 0 : i32
    %c0_i32_1 = arith.constant 0 : i32
    return %c0_i32, %c0_i32_0 : i32, i32
  }
  func.func @transform_3(%arg0: i32) -> (i32, i32) {
    %c0_i32 = arith.constant 0 : i32
    %c0_i32_0 = arith.constant 0 : i32
    %c0_i32_1 = arith.constant 0 : i32
    return %c0_i32, %c0_i32_0 : i32, i32
  }
  func.func @transform_4(%arg0: i32) -> (i32, i32) {
    %c0_i32 = arith.constant 0 : i32
    %c0_i32_0 = arith.constant 0 : i32
    %c0_i32_1 = arith.constant 0 : i32
    return %c0_i32, %c0_i32_0 : i32, i32
  }
  func.func @transform_5(%arg0: i32) -> (i32, i32) {
    %c0_i32 = arith.constant 0 : i32
    %c0_i32_0 = arith.constant 0 : i32
    %c0_i32_1 = arith.constant 0 : i32
    return %c0_i32, %c0_i32_0 : i32, i32
  }
  func.func @transform_6(%arg0: i32) -> (i32, i32) {
    %c0_i32 = arith.constant 0 : i32
    %c0_i32_0 = arith.constant 0 : i32
    %c0_i32_1 = arith.constant 0 : i32
    return %c0_i32, %c0_i32_0 : i32, i32
  }
  func.func @transform_7(%arg0: i32) -> (i32, i32) {
    %c0_i32 = arith.constant 0 : i32
    %c0_i32_0 = arith.constant 0 : i32
    %c0_i32_1 = arith.constant 0 : i32
    return %c0_i32, %c0_i32_0 : i32, i32
  }
  func.func @transform_8(%arg0: i32) -> (i32, i32) {
    %c0_i32 = arith.constant 0 : i32
    %c0_i32_0 = arith.constant 0 : i32
    %c0_i32_1 = arith.constant 0 : i32
    return %c0_i32, %c0_i32_0 : i32, i32
  }
  func.func @transform_9(%arg0: i32) -> (i32, i32) {
    %c0_i32 = arith.constant 0 : i32
    %c0_i32_0 = arith.constant 0 : i32
    return %arg0, %c0_i32 : i32, i32
  }
  func.func @transform_10(%arg0: i32) -> (i32, i32) {
    %c0_i32 = arith.constant 0 : i32
    %c0_i32_0 = arith.constant 0 : i32
    return %arg0, %c0_i32 : i32, i32
  }
  func.func @transform_11(%arg0: i32) -> (i32, i32) {
    %c0_i32 = arith.constant 0 : i32
    %c0_i32_0 = arith.constant 0 : i32
    return %arg0, %c0_i32 : i32, i32
  }
}

</mosaic_0001>

<llo_original>
// kernel: tpu_custom_call.1
$region0: #{tpu_custom_call.1}
  #allocation0 [shape = 'u32[]', space=smem, size = 0x4, offset = 0x4, fixed_abs, tag = 'smem constant byte address 0x4 - core index']
  #allocation1 [shape = 'u32[144,128]{1,0:T(1,128)}', space=vmem, size = 0x12000, scoped, tag = 'internal scratch']
  %s0 = inlined_call_operand.vmem [shape: bf16[16,784], index: 0, kind: input, shape index: {}]
  %s1 = inlined_call_operand.vmem [shape: bf16[784,400], index: 1, kind: input, shape index: {}]
  %s2 = inlined_call_operand.vmem [shape: f32[1,400], index: 2, kind: input, shape index: {}]
  %s3 = inlined_call_operand.vmem [shape: bf16[400,128], index: 3, kind: input, shape index: {}]
  %s4 = inlined_call_operand.vmem [shape: f32[1,128], index: 4, kind: input, shape index: {}]
  %s5 = inlined_call_operand.vmem [shape: bf16[20,400], index: 5, kind: input, shape index: {}]
  %s6 = inlined_call_operand.vmem [shape: f32[1,400], index: 6, kind: input, shape index: {}]
  %s7 = inlined_call_operand.vmem [shape: bf16[400,784], index: 7, kind: input, shape index: {}]
  %s8 = inlined_call_operand.vmem [shape: f32[1,784], index: 8, kind: input, shape index: {}]
  %s9 = inlined_call_operand.vmem [shape: f32[16,20], index: 9, kind: input, shape index: {}]
  %s10 = inlined_call_operand.hbm [shape: bf16[16,784], index: 10, kind: output, shape index: {0}]
  %s11 = inlined_call_operand.hbm [shape: f32[16,128], index: 11, kind: output, shape index: {1}]
  %12 = xla_tuple %s10, %s11
  %s13 = sld [smem:[#allocation0]]
  $region81: #{tpu_custom_call.1} parent=0
    _
  %s15 = ssub.s32 1, %s13
  %s16 = scalar_select 0, %s15, %s13
  $region1: #{tpu_custom_call.1} parent=0
    #allocation2 [shape = 'u8[28672]{0}', space=vmem, size = 0x7000, scoped, tag = 'output window, operand 0']
    #allocation3 [shape = 's32[2]{0}', space=sflag, size = 0x8, scoped, tag = 'scoped memory for tpu_custom_call.1']
    #allocation4 [shape = 'u8[8192]{0}', space=vmem, size = 0x2000, scoped, tag = 'output window, operand 1']
    #allocation5 [shape = 's32[2]{0}', space=sflag, size = 0x8, scoped, tag = 'scoped memory for tpu_custom_call.1']
    %17 = vsyncpa [#allocation3], 0
    %s18 = scalar_lea.sflag [#allocation3], 1
    %19 = vsyncpa %s18, 0
    %20 = vsyncpa [#allocation5], 0
    %s21 = scalar_lea.sflag [#allocation5], 1
    %22 = vsyncpa %s21, 0
    loop: start=0, step=1, limit=4
    $region2: #{tpu_custom_call.1} parent=1 // loop_pre_header
      _
    $region3: #{tpu_custom_call.1} parent=1 // loop_header
      %s24 = sphi 0, %s28
      %p25 = scmp.ge.s32.totalorder %s24, 4
      %s34 = sphi 0, %s36
      %s37 = sphi 0, %s34
      %s38 = sphi 0, %s37
      %s54 = sphi 0, %s38
      %s58 = sphi 0, %s58
      %s60 = sphi 0, %s58
      %s61 = sphi 0, %s60
      %s75 = sphi 0, %s61
      %s79 = sphi 0, %s79
      %s81 = sphi 0, %s79
      %s82 = sphi 0, %s81
      %s96 = sphi 0, %s82
      %s100 = sphi 0, %s100
      %s102 = sphi 0, %s100
      %s103 = sphi 0, %s102
      %s117 = sphi 0, %s103
      %s121 = sphi 0, %s121
      %s123 = sphi 0, %s121
      %s124 = sphi 0, %s123
      %s138 = sphi 0, %s124
      %s142 = sphi 0, %s142
      %s144 = sphi 0, %s142
      %s145 = sphi 0, %s144
      %s159 = sphi 0, %s145
      %s163 = sphi 0, %s163
      %s165 = sphi 0, %s163
      %s166 = sphi 0, %s165
      %s180 = sphi 0, %s166
      %s184 = sphi 0, %s184
      %s186 = sphi 0, %s184
      %s187 = sphi 0, %s186
      %s201 = sphi 0, %s187
      %s205 = sphi 0, %s205
      %s207 = sphi 0, %s205
      %s208 = sphi 0, %s207
      %s222 = sphi 0, %s208
      %s228 = sphi 0, %s230
      %s231 = sphi 0, %s228
      %s232 = sphi 0, %s231
      %s248 = sphi 0, %s232
      %s254 = sphi 0, %s256
      %s257 = sphi 0, %s254
      %s258 = sphi 0, %s257
      %s274 = sphi 0, %s258
      %s280 = sphi 0, %s282
      %s283 = sphi 0, %s280
      %s284 = sphi 0, %s283
      %s300 = sphi 0, %s284
    $region4: #{tpu_custom_call.1} parent=1 // loop_header_branch
      %27 = sbr.rel (%p25) target = $region8
    $region5: #{tpu_custom_call.1} parent=1 // loop_body
      %s29 = ssub.s32 %s24, 1
      %s30 = ssub.s32 %s24, 2
      %s31 = sadd.s32 %s24, 1
      %s32 = ssub.s32 %s24, %s31
      %p33 = scmp.eq.s32.totalorder %s32, 0
      %s35 = sadd.s32 %s34, 1
      %s36 = scalar_select %p33, %s34, %s35
      %p39 = pneg %p33
      %p40 = scmp.eq.s32.totalorder %s24, 1
      %p41 = por %p39, %p40
      %p42 = scmp.ne.s32.totalorder %s34, %s37
      %p43 = scmp.eq.s32.totalorder %s24, 0
      %p44 = por %p42, %p43
      %p45 = scmp.ne.s32.totalorder %s34, %s37
      %p46 = scmp.eq.s32.totalorder %s29, 1
      %p47 = por %p45, %p46
      %p48 = scmp.ne.s32.totalorder %s37, %s38
      %p49 = scmp.eq.s32.totalorder %s29, 0
      %p50 = por %p48, %p49
      %p51 = scmp.ne.s32.totalorder %s37, %s38
      %p52 = scmp.eq.s32.totalorder %s30, 1
      %p53 = por %p51, %p52
      %p55 = scmp.ne.s32.totalorder %s38, %s54
      %p56 = scmp.eq.s32.totalorder %s30, 0
      %p57 = por %p55, %p56
      %s59 = sadd.s32 %s58, 1
      %p62 = scmp.eq.s32.totalorder %s24, 1
      %p63 = scmp.ne.s32.totalorder %s58, %s60
      %p64 = scmp.eq.s32.totalorder %s24, 0
      %p65 = por %p63, %p64
      %p66 = scmp.ne.s32.totalorder %s58, %s60
      %p67 = scmp.eq.s32.totalorder %s29, 1
      %p68 = por %p66, %p67
      %p69 = scmp.ne.s32.totalorder %s60, %s61
      %p70 = scmp.eq.s32.totalorder %s29, 0
      %p71 = por %p69, %p70
      %p72 = scmp.ne.s32.totalorder %s60, %s61
      %p73 = scmp.eq.s32.totalorder %s30, 1
      %p74 = por %p72, %p73
      %p76 = scmp.ne.s32.totalorder %s61, %s75
      %p77 = scmp.eq.s32.totalorder %s30, 0
      %p78 = por %p76, %p77
      %s80 = sadd.s32 %s79, 1
      %p83 = scmp.eq.s32.totalorder %s24, 1
      %p84 = scmp.ne.s32.totalorder %s79, %s81
      %p85 = scmp.eq.s32.totalorder %s24, 0
      %p86 = por %p84, %p85
      %p87 = scmp.ne.s32.totalorder %s79, %s81
      %p88 = scmp.eq.s32.totalorder %s29, 1
      %p89 = por %p87, %p88
      %p90 = scmp.ne.s32.totalorder %s81, %s82
      %p91 = scmp.eq.s32.totalorder %s29, 0
      %p92 = por %p90, %p91
      %p93 = scmp.ne.s32.totalorder %s81, %s82
      %p94 = scmp.eq.s32.totalorder %s30, 1
      %p95 = por %p93, %p94
      %p97 = scmp.ne.s32.totalorder %s82, %s96
      %p98 = scmp.eq.s32.totalorder %s30, 0
      %p99 = por %p97, %p98
      %s101 = sadd.s32 %s100, 1
      %p104 = scmp.eq.s32.totalorder %s24, 1
      %p105 = scmp.ne.s32.totalorder %s100, %s102
      %p106 = scmp.eq.s32.totalorder %s24, 0
      %p107 = por %p105, %p106
      %p108 = scmp.ne.s32.totalorder %s100, %s102
      %p109 = scmp.eq.s32.totalorder %s29, 1
      %p110 = por %p108, %p109
      %p111 = scmp.ne.s32.totalorder %s102, %s103
      %p112 = scmp.eq.s32.totalorder %s29, 0
      %p113 = por %p111, %p112
      %p114 = scmp.ne.s32.totalorder %s102, %s103
      %p115 = scmp.eq.s32.totalorder %s30, 1
      %p116 = por %p114, %p115
      %p118 = scmp.ne.s32.totalorder %s103, %s117
      %p119 = scmp.eq.s32.totalorder %s30, 0
      %p120 = por %p118, %p119
      %s122 = sadd.s32 %s121, 1
      %p125 = scmp.eq.s32.totalorder %s24, 1
      %p126 = scmp.ne.s32.totalorder %s121, %s123
      %p127 = scmp.eq.s32.totalorder %s24, 0
      %p128 = por %p126, %p127
      %p129 = scmp.ne.s32.totalorder %s121, %s123
      %p130 = scmp.eq.s32.totalorder %s29, 1
      %p131 = por %p129, %p130
      %p132 = scmp.ne.s32.totalorder %s123, %s124
      %p133 = scmp.eq.s32.totalorder %s29, 0
      %p134 = por %p132, %p133
      %p135 = scmp.ne.s32.totalorder %s123, %s124
      %p136 = scmp.eq.s32.totalorder %s30, 1
      %p137 = por %p135, %p136
      %p139 = scmp.ne.s32.totalorder %s124, %s138
      %p140 = scmp.eq.s32.totalorder %s30, 0
      %p141 = por %p139, %p140
      %s143 = sadd.s32 %s142, 1
      %p146 = scmp.eq.s32.totalorder %s24, 1
      %p147 = scmp.ne.s32.totalorder %s142, %s144
      %p148 = scmp.eq.s32.totalorder %s24, 0
      %p149 = por %p147, %p148
      %p150 = scmp.ne.s32.totalorder %s142, %s144
      %p151 = scmp.eq.s32.totalorder %s29, 1
      %p152 = por %p150, %p151
      %p153 = scmp.ne.s32.totalorder %s144, %s145
      %p154 = scmp.eq.s32.totalorder %s29, 0
      %p155 = por %p153, %p154
      %p156 = scmp.ne.s32.totalorder %s144, %s145
      %p157 = scmp.eq.s32.totalorder %s30, 1
      %p158 = por %p156, %p157
      %p160 = scmp.ne.s32.totalorder %s145, %s159
      %p161 = scmp.eq.s32.totalorder %s30, 0
      %p162 = por %p160, %p161
      %s164 = sadd.s32 %s163, 1
      %p167 = scmp.eq.s32.totalorder %s24, 1
      %p168 = scmp.ne.s32.totalorder %s163, %s165
      %p169 = scmp.eq.s32.totalorder %s24, 0
      %p170 = por %p168, %p169
      %p171 = scmp.ne.s32.totalorder %s163, %s165
      %p172 = scmp.eq.s32.totalorder %s29, 1
      %p173 = por %p171, %p172
      %p174 = scmp.ne.s32.totalorder %s165, %s166
      %p175 = scmp.eq.s32.totalorder %s29, 0
      %p176 = por %p174, %p175
      %p177 = scmp.ne.s32.totalorder %s165, %s166
      %p178 = scmp.eq.s32.totalorder %s30, 1
      %p179 = por %p177, %p178
      %p181 = scmp.ne.s32.totalorder %s166, %s180
      %p182 = scmp.eq.s32.totalorder %s30, 0
      %p183 = por %p181, %p182
      %s185 = sadd.s32 %s184, 1
      %p188 = scmp.eq.s32.totalorder %s24, 1
      %p189 = scmp.ne.s32.totalorder %s184, %s186
      %p190 = scmp.eq.s32.totalorder %s24, 0
      %p191 = por %p189, %p190
      %p192 = scmp.ne.s32.totalorder %s184, %s186
      %p193 = scmp.eq.s32.totalorder %s29, 1
      %p194 = por %p192, %p193
      %p195 = scmp.ne.s32.totalorder %s186, %s187
      %p196 = scmp.eq.s32.totalorder %s29, 0
      %p197 = por %p195, %p196
      %p198 = scmp.ne.s32.totalorder %s186, %s187
      %p199 = scmp.eq.s32.totalorder %s30, 1
      %p200 = por %p198, %p199
      %p202 = scmp.ne.s32.totalorder %s187, %s201
      %p203 = scmp.eq.s32.totalorder %s30, 0
      %p204 = por %p202, %p203
      %s206 = sadd.s32 %s205, 1
      %p209 = scmp.eq.s32.totalorder %s24, 1
      %p210 = scmp.ne.s32.totalorder %s205, %s207
      %p211 = scmp.eq.s32.totalorder %s24, 0
      %p212 = por %p210, %p211
      %p213 = scmp.ne.s32.totalorder %s205, %s207
      %p214 = scmp.eq.s32.totalorder %s29, 1
      %p215 = por %p213, %p214
      %p216 = scmp.ne.s32.totalorder %s207, %s208
      %p217 = scmp.eq.s32.totalorder %s29, 0
      %p218 = por %p216, %p217
      %p219 = scmp.ne.s32.totalorder %s207, %s208
      %p220 = scmp.eq.s32.totalorder %s30, 1
      %p221 = por %p219, %p220
      %p223 = scmp.ne.s32.totalorder %s208, %s222
      %p224 = scmp.eq.s32.totalorder %s30, 0
      %p225 = por %p223, %p224
      %s226 = ssub.s32 %s24, %s31
      %p227 = scmp.eq.s32.totalorder %s226, 0
      %s229 = sadd.s32 %s228, 1
      %s230 = scalar_select %p227, %s228, %s229
      %p233 = pneg %p227
      %p234 = scmp.eq.s32.totalorder %s24, 1
      %p235 = por %p233, %p234
      %p236 = scmp.ne.s32.totalorder %s228, %s231
      %p237 = scmp.eq.s32.totalorder %s24, 0
      %p238 = por %p236, %p237
      %p239 = scmp.ne.s32.totalorder %s228, %s231
      %p240 = scmp.eq.s32.totalorder %s29, 1
      %p241 = por %p239, %p240
      %p242 = scmp.ne.s32.totalorder %s231, %s232
      %p243 = scmp.eq.s32.totalorder %s29, 0
      %p244 = por %p242, %p243
      %p245 = scmp.ne.s32.totalorder %s231, %s232
      %p246 = scmp.eq.s32.totalorder %s30, 1
      %p247 = por %p245, %p246
      %p249 = scmp.ne.s32.totalorder %s232, %s248
      %p250 = scmp.eq.s32.totalorder %s30, 0
      %p251 = por %p249, %p250
      %s252 = ssub.s32 %s24, %s31
      %p253 = scmp.eq.s32.totalorder %s252, 0
      %s255 = sadd.s32 %s254, 1
      %s256 = scalar_select %p253, %s254, %s255
      %p259 = pneg %p253
      %p260 = scmp.eq.s32.totalorder %s24, 1
      %p261 = por %p259, %p260
      %p262 = scmp.ne.s32.totalorder %s254, %s257
      %p263 = scmp.eq.s32.totalorder %s24, 0
      %p264 = por %p262, %p263
      %p265 = scmp.ne.s32.totalorder %s254, %s257
      %p266 = scmp.eq.s32.totalorder %s29, 1
      %p267 = por %p265, %p266
      %p268 = scmp.ne.s32.totalorder %s257, %s258
      %p269 = scmp.eq.s32.totalorder %s29, 0
      %p270 = por %p268, %p269
      %p271 = scmp.ne.s32.totalorder %s257, %s258
      %p272 = scmp.eq.s32.totalorder %s30, 1
      %p273 = por %p271, %p272
      %p275 = scmp.ne.s32.totalorder %s258, %s274
      %p276 = scmp.eq.s32.totalorder %s30, 0
      %p277 = por %p275, %p276
      %s278 = ssub.s32 %s24, %s31
      %p279 = scmp.eq.s32.totalorder %s278, 0
      %s281 = sadd.s32 %s280, 1
      %s282 = scalar_select %p279, %s280, %s281
      %p285 = pneg %p279
      %p286 = scmp.eq.s32.totalorder %s24, 1
      %p287 = por %p285, %p286
      %p288 = scmp.ne.s32.totalorder %s280, %s283
      %p289 = scmp.eq.s32.totalorder %s24, 0
      %p290 = por %p288, %p289
      %p291 = scmp.ne.s32.totalorder %s280, %s283
      %p292 = scmp.eq.s32.totalorder %s29, 1
      %p293 = por %p291, %p292
      %p294 = scmp.ne.s32.totalorder %s283, %s284
      %p295 = scmp.eq.s32.totalorder %s29, 0
      %p296 = por %p294, %p295
      %p297 = scmp.ne.s32.totalorder %s283, %s284
      %p298 = scmp.eq.s32.totalorder %s30, 1
      %p299 = por %p297, %p298
      %p301 = scmp.ne.s32.totalorder %s284, %s300
      %p302 = scmp.eq.s32.totalorder %s30, 0
      %p303 = por %p301, %p302
      %p304 = scmp.le.s32.totalorder 1, %s24
      %p305 = scmp.lt.s32.totalorder %s24, 3
      %p306 = pnand %p304, %p305
      %p307 = pneg %p306
      // Predicated region
      $region9: #{tpu_custom_call.1} parent=5 // pred_check
        _
      $region10: #{tpu_custom_call.1} parent=5 // pred_check_branch
        %309 = sbr.rel (%p306) target = $region12
      $region11: #{tpu_custom_call.1} parent=5 // pred_region
        %s310 = ssub.s32 %s24, 1
        // Predicated region
        $region13: #{tpu_custom_call.1} parent=11 // pred_check
          %p311 = pneg %p71
        $region14: #{tpu_custom_call.1} parent=11 // pred_check_branch
          %313 = sbr.rel (%p311) target = $region16
        $region15: #{tpu_custom_call.1} parent=11 // pred_region
          _
        $region16: #{tpu_custom_call.1} parent=11 // pred_fallthru
          _
        // Predicated region
        $region17: #{tpu_custom_call.1} parent=11 // pred_check
          %p314 = pneg %p92
        $region18: #{tpu_custom_call.1} parent=11 // pred_check_branch
          %316 = sbr.rel (%p314) target = $region20
        $region19: #{tpu_custom_call.1} parent=11 // pred_region
          _
        $region20: #{tpu_custom_call.1} parent=11 // pred_fallthru
          _
        // Predicated region
        $region21: #{tpu_custom_call.1} parent=11 // pred_check
          %p317 = pneg %p113
        $region22: #{tpu_custom_call.1} parent=11 // pred_check_branch
          %319 = sbr.rel (%p317) target = $region24
        $region23: #{tpu_custom_call.1} parent=11 // pred_region
          _
        $region24: #{tpu_custom_call.1} parent=11 // pred_fallthru
          _
        // Predicated region
        $region25: #{tpu_custom_call.1} parent=11 // pred_check
          %p320 = pneg %p134
        $region26: #{tpu_custom_call.1} parent=11 // pred_check_branch
          %322 = sbr.rel (%p320) target = $region28
        $region27: #{tpu_custom_call.1} parent=11 // pred_region
          _
        $region28: #{tpu_custom_call.1} parent=11 // pred_fallthru
          _
        // Predicated region
        $region29: #{tpu_custom_call.1} parent=11 // pred_check
          %p323 = pneg %p155
        $region30: #{tpu_custom_call.1} parent=11 // pred_check_branch
          %325 = sbr.rel (%p323) target = $region32
        $region31: #{tpu_custom_call.1} parent=11 // pred_region
          _
        $region32: #{tpu_custom_call.1} parent=11 // pred_fallthru
          _
        // Predicated region
        $region33: #{tpu_custom_call.1} parent=11 // pred_check
          %p326 = pneg %p176
        $region34: #{tpu_custom_call.1} parent=11 // pred_check_branch
          %328 = sbr.rel (%p326) target = $region36
        $region35: #{tpu_custom_call.1} parent=11 // pred_region
          _
        $region36: #{tpu_custom_call.1} parent=11 // pred_fallthru
          _
        // Predicated region
        $region37: #{tpu_custom_call.1} parent=11 // pred_check
          %p329 = pneg %p197
        $region38: #{tpu_custom_call.1} parent=11 // pred_check_branch
          %331 = sbr.rel (%p329) target = $region40
        $region39: #{tpu_custom_call.1} parent=11 // pred_region
          _
        $region40: #{tpu_custom_call.1} parent=11 // pred_fallthru
          _
        // Predicated region
        $region41: #{tpu_custom_call.1} parent=11 // pred_check
          %p332 = pneg %p218
        $region42: #{tpu_custom_call.1} parent=11 // pred_check_branch
          %334 = sbr.rel (%p332) target = $region44
        $region43: #{tpu_custom_call.1} parent=11 // pred_region
          _
        $region44: #{tpu_custom_call.1} parent=11 // pred_fallthru
          _
      $region12: #{tpu_custom_call.1} parent=5 // pred_fallthru
        _
      %p335 = scmp.lt.s32.totalorder %s24, 2
      // Predicated region
      $region45: #{tpu_custom_call.1} parent=5 // pred_check
        %p336 = pneg %p335
      $region46: #{tpu_custom_call.1} parent=5 // pred_check_branch
        %338 = sbr.rel (%p336) target = $region48
      $region47: #{tpu_custom_call.1} parent=5 // pred_region
        // Predicated region
        $region49: #{tpu_custom_call.1} parent=47 // pred_check
          %p339 = pneg %p44
        $region50: #{tpu_custom_call.1} parent=47 // pred_check_branch
          %341 = sbr.rel (%p339) target = $region52
        $region51: #{tpu_custom_call.1} parent=47 // pred_region
          %p342 = scmp.lt.s32.totalorder %s24, 1
          %s343 = scalar_select %p342, %s24, 1
          %s344 = smul.addr %s343, 7
          %s345 = smul.addr %s344, 4
          %s346 = scalar_lea.vmem %s0, %s345
        $region52: #{tpu_custom_call.1} parent=47 // pred_fallthru
          _
        // Predicated region
        $region53: #{tpu_custom_call.1} parent=47 // pred_check
          %p347 = pneg %p238
        $region54: #{tpu_custom_call.1} parent=47 // pred_check_branch
          %349 = sbr.rel (%p347) target = $region56
        $region55: #{tpu_custom_call.1} parent=47 // pred_region
          %p350 = scmp.lt.s32.totalorder %s24, 1
          %s351 = scalar_select %p350, %s24, 1
          %s352 = smul.addr %s351, 8
          %s353 = scalar_lea.vmem %s9, %s352
        $region56: #{tpu_custom_call.1} parent=47 // pred_fallthru
          _
      $region48: #{tpu_custom_call.1} parent=5 // pred_fallthru
        _
      %p354 = scmp.le.s32.totalorder 1, %s24
      %p355 = scmp.lt.s32.totalorder %s24, 3
      %p356 = pnand %p354, %p355
      %p357 = pneg %p356
      // Predicated region
      $region57: #{tpu_custom_call.1} parent=5 // pred_check
        _
      $region58: #{tpu_custom_call.1} parent=5 // pred_check_branch
        %359 = sbr.rel (%p356) target = $region60
      $region59: #{tpu_custom_call.1} parent=5 // pred_region
        %s360 = ssub.s32 %s24, 1
        %p361 = scmp.lt.s32.totalorder %s29, 1
        %s362 = scalar_select %p361, %s29, 1
        %s363 = smul.addr %s362, 7
        %s364 = smul.addr %s363, 4
        %s365 = scalar_lea.vmem %s0, %s364
        %p366 = pneg %p50
        %p367 = pneg %p47
        %p368 = pneg %p71
        %p369 = pneg %p68
        %p370 = pneg %p92
        %p371 = pneg %p89
        %p372 = pneg %p113
        %p373 = pneg %p110
        %p374 = pneg %p134
        %p375 = pneg %p131
        %p376 = pneg %p155
        %p377 = pneg %p152
        %p378 = pneg %p176
        %p379 = pneg %p173
        %p380 = pneg %p197
        %p381 = pneg %p194
        %p382 = pneg %p218
        %p383 = pneg %p215
        %p384 = scmp.lt.s32.totalorder %s29, 1
        %s385 = scalar_select %p384, %s29, 1
        %s386 = smul.addr %s385, 8
        %s387 = scalar_lea.vmem %s9, %s386
        %p388 = pneg %p244
        %p389 = pneg %p241
        %p390 = pneg %p270
        %p391 = pneg %p267
        %s392 = sand.u32 %s257, 1
        %s393 = scalar_lea.sflag [#allocation3], %s392
        %s394 = sand.u32 %s257, 1
        %s395 = smul.addr %s394, 28
        %s396 = scalar_lea.vmem [#allocation2], %s395
        %p397 = pneg %p296
        %p398 = pneg %p293
        %s399 = sand.u32 %s283, 1
        %s400 = scalar_lea.sflag [#allocation5], %s399
        %s401 = sand.u32 %s283, 1
        %s402 = smul.addr %s401, 8
        %s403 = scalar_lea.vmem [#allocation4], %s402
        %p404 = scmp.lt.s32.totalorder %s29, 1
        %s405 = scalar_select %p404, %s29, 1
        %s406 = smul.addr %s405, 7
        %s407 = smul.addr %s406, 4
        %s408 = scalar_lea.vmem %s0, %s407
        %p409 = scmp.lt.s32.totalorder %s29, 1
        %s410 = scalar_select %p409, %s29, 1
        %s411 = smul.addr %s410, 8
        %s412 = scalar_lea.vmem %s9, %s411
        %v414 = vld [vmem:[%s408] sm:$0xff]
        %v415 = vld [vmem:[%s408 + $0x8] sm:$0xff]
        %v416 = vld [vmem:[%s408 + $0x10] sm:$0xff]
        %v417 = vld [vmem:[%s408 + $0x18] sm:$0xf]
        %v418 = vld [vmem:[%s1] sm:$0xff]
        %v419 = vld [vmem:[%s1 + $0x8] sm:$0xff]
        %v420 = vld [vmem:[%s1 + $0x10] sm:$0xff]
        %v421 = vld [vmem:[%s1 + $0x18] sm:$0xff]
        %v422 = vld [vmem:[%s1 + $0x20] sm:$0xff]
        %v423 = vld [vmem:[%s1 + $0x28] sm:$0xff]
        %v424 = vld [vmem:[%s1 + $0x30] sm:$0xff]
        %v425 = vld [vmem:[%s1 + $0x38] sm:$0xff]
        %v426 = vld [vmem:[%s1 + $0x40] sm:$0xff]
        %v427 = vld [vmem:[%s1 + $0x48] sm:$0xff]
        %v428 = vld [vmem:[%s1 + $0x50] sm:$0xff]
        %v429 = vld [vmem:[%s1 + $0x58] sm:$0xff]
        %v430 = vld [vmem:[%s1 + $0x60] sm:$0xff]
        %v431 = vld [vmem:[%s1 + $0x68] sm:$0xff]
        %v432 = vld [vmem:[%s1 + $0x70] sm:$0xff]
        %v433 = vld [vmem:[%s1 + $0x78] sm:$0xff]
        %v434 = vld [vmem:[%s1 + $0x80] sm:$0xff]
        %v435 = vld [vmem:[%s1 + $0x88] sm:$0xff]
        %v436 = vld [vmem:[%s1 + $0x90] sm:$0xff]
        %v437 = vld [vmem:[%s1 + $0x98] sm:$0xff]
        %v438 = vld [vmem:[%s1 + $0xa0] sm:$0xff]
        %v439 = vld [vmem:[%s1 + $0xa8] sm:$0xff]
        %v440 = vld [vmem:[%s1 + $0xb0] sm:$0xff]
        %v441 = vld [vmem:[%s1 + $0xb8] sm:$0xff]
        %v442 = vld [vmem:[%s1 + $0xc0] sm:$0xff]
        %v443 = vld [vmem:[%s1 + $0xc8] sm:$0xff]
        %v444 = vld [vmem:[%s1 + $0xd0] sm:$0xff]
        %v445 = vld [vmem:[%s1 + $0xd8] sm:$0xff]
        %v446 = vld [vmem:[%s1 + $0xe0] sm:$0xff]
        %v447 = vld [vmem:[%s1 + $0xe8] sm:$0xff]
        %v448 = vld [vmem:[%s1 + $0xf0] sm:$0xff]
        %v449 = vld [vmem:[%s1 + $0xf8] sm:$0xff]
        %v450 = vld [vmem:[%s1 + $0x100] sm:$0xff]
        %v451 = vld [vmem:[%s1 + $0x108] sm:$0xff]
        %v452 = vld [vmem:[%s1 + $0x110] sm:$0xff]
        %v453 = vld [vmem:[%s1 + $0x118] sm:$0xff]
        %v454 = vld [vmem:[%s1 + $0x120] sm:$0xff]
        %v455 = vld [vmem:[%s1 + $0x128] sm:$0xff]
        %v456 = vld [vmem:[%s1 + $0x130] sm:$0xff]
        %v457 = vld [vmem:[%s1 + $0x138] sm:$0xff]
        %v458 = vld [vmem:[%s1 + $0x140] sm:$0xff]
        %v459 = vld [vmem:[%s1 + $0x148] sm:$0xff]
        %v460 = vld [vmem:[%s1 + $0x150] sm:$0xff]
        %v461 = vld [vmem:[%s1 + $0x158] sm:$0xff]
        %v462 = vld [vmem:[%s1 + $0x160] sm:$0xff]
        %v463 = vld [vmem:[%s1 + $0x168] sm:$0xff]
        %v464 = vld [vmem:[%s1 + $0x170] sm:$0xff]
        %v465 = vld [vmem:[%s1 + $0x178] sm:$0xff]
        %v466 = vld [vmem:[%s1 + $0x180] sm:$0xff]
        %v467 = vld [vmem:[%s1 + $0x188] sm:$0xff]
        %v468 = vld [vmem:[%s1 + $0x190] sm:$0xff]
        %v469 = vld [vmem:[%s1 + $0x198] sm:$0xff]
        %v470 = vld [vmem:[%s1 + $0x1a0] sm:$0xff]
        %v471 = vld [vmem:[%s1 + $0x1a8] sm:$0xff]
        %v472 = vld [vmem:[%s1 + $0x1b0] sm:$0xff]
        %v473 = vld [vmem:[%s1 + $0x1b8] sm:$0xff]
        %v474 = vld [vmem:[%s1 + $0x1c0] sm:$0xff]
        %v475 = vld [vmem:[%s1 + $0x1c8] sm:$0xff]
        %v476 = vld [vmem:[%s1 + $0x1d0] sm:$0xff]
        %v477 = vld [vmem:[%s1 + $0x1d8] sm:$0xff]
        %v478 = vld [vmem:[%s1 + $0x1e0] sm:$0xff]
        %v479 = vld [vmem:[%s1 + $0x1e8] sm:$0xff]
        %v480 = vld [vmem:[%s1 + $0x1f0] sm:$0xff]
        %v481 = vld [vmem:[%s1 + $0x1f8] sm:$0xff]
        %v482 = vld [vmem:[%s1 + $0x200] sm:$0xff]
        %v483 = vld [vmem:[%s1 + $0x208] sm:$0xff]
        %v484 = vld [vmem:[%s1 + $0x210] sm:$0xff]
        %v485 = vld [vmem:[%s1 + $0x218] sm:$0xff]
        %v486 = vld [vmem:[%s1 + $0x220] sm:$0xff]
        %v487 = vld [vmem:[%s1 + $0x228] sm:$0xff]
        %v488 = vld [vmem:[%s1 + $0x230] sm:$0xff]
        %v489 = vld [vmem:[%s1 + $0x238] sm:$0xff]
        %v490 = vld [vmem:[%s1 + $0x240] sm:$0xff]
        %v491 = vld [vmem:[%s1 + $0x248] sm:$0xff]
        %v492 = vld [vmem:[%s1 + $0x250] sm:$0xff]
        %v493 = vld [vmem:[%s1 + $0x258] sm:$0xff]
        %v494 = vld [vmem:[%s1 + $0x260] sm:$0xff]
        %v495 = vld [vmem:[%s1 + $0x268] sm:$0xff]
        %v496 = vld [vmem:[%s1 + $0x270] sm:$0xff]
        %v497 = vld [vmem:[%s1 + $0x278] sm:$0xff]
        %v498 = vld [vmem:[%s1 + $0x280] sm:$0xff]
        %v499 = vld [vmem:[%s1 + $0x288] sm:$0xff]
        %v500 = vld [vmem:[%s1 + $0x290] sm:$0xff]
        %v501 = vld [vmem:[%s1 + $0x298] sm:$0xff]
        %v502 = vld [vmem:[%s1 + $0x2a0] sm:$0xff]
        %v503 = vld [vmem:[%s1 + $0x2a8] sm:$0xff]
        %v504 = vld [vmem:[%s1 + $0x2b0] sm:$0xff]
        %v505 = vld [vmem:[%s1 + $0x2b8] sm:$0xff]
        %v506 = vld [vmem:[%s1 + $0x2c0] sm:$0xff]
        %v507 = vld [vmem:[%s1 + $0x2c8] sm:$0xff]
        %v508 = vld [vmem:[%s1 + $0x2d0] sm:$0xff]
        %v509 = vld [vmem:[%s1 + $0x2d8] sm:$0xff]
        %v510 = vld [vmem:[%s1 + $0x2e0] sm:$0xff]
        %v511 = vld [vmem:[%s1 + $0x2e8] sm:$0xff]
        %v512 = vld [vmem:[%s1 + $0x2f0] sm:$0xff]
        %v513 = vld [vmem:[%s1 + $0x2f8] sm:$0xff]
        %v514 = vld [vmem:[%s1 + $0x300] sm:$0xff]
        %v515 = vld [vmem:[%s1 + $0x308] sm:$0xff]
        %v516 = vld [vmem:[%s1 + $0x310] sm:$0xff]
        %v517 = vld [vmem:[%s1 + $0x318] sm:$0xff]
        %v518 = vld [vmem:[%s1 + $0x320] sm:$0xff]
        %v519 = vld [vmem:[%s1 + $0x328] sm:$0xff]
        %v520 = vld [vmem:[%s1 + $0x330] sm:$0xff]
        %v521 = vld [vmem:[%s1 + $0x338] sm:$0xff]
        %v522 = vld [vmem:[%s1 + $0x340] sm:$0xff]
        %v523 = vld [vmem:[%s1 + $0x348] sm:$0xff]
        %v524 = vld [vmem:[%s1 + $0x350] sm:$0xff]
        %v525 = vld [vmem:[%s1 + $0x358] sm:$0xff]
        %v526 = vld [vmem:[%s1 + $0x360] sm:$0xff]
        %v527 = vld [vmem:[%s1 + $0x368] sm:$0xff]
        %v528 = vld [vmem:[%s1 + $0x370] sm:$0xff]
        %v529 = vld [vmem:[%s1 + $0x378] sm:$0xff]
        %v530 = vld [vmem:[%s1 + $0x380] sm:$0xff]
        %v531 = vld [vmem:[%s1 + $0x388] sm:$0xff]
        %v532 = vld [vmem:[%s1 + $0x390] sm:$0xff]
        %v533 = vld [vmem:[%s1 + $0x398] sm:$0xff]
        %v534 = vld [vmem:[%s1 + $0x3a0] sm:$0xff]
        %v535 = vld [vmem:[%s1 + $0x3a8] sm:$0xff]
        %v536 = vld [vmem:[%s1 + $0x3b0] sm:$0xff]
        %v537 = vld [vmem:[%s1 + $0x3b8] sm:$0xff]
        %v538 = vld [vmem:[%s1 + $0x3c0] sm:$0xff]
        %v539 = vld [vmem:[%s1 + $0x3c8] sm:$0xff]
        %v540 = vld [vmem:[%s1 + $0x3d0] sm:$0xff]
        %v541 = vld [vmem:[%s1 + $0x3d8] sm:$0xff]
        %v542 = vld [vmem:[%s1 + $0x3e0] sm:$0xff]
        %v543 = vld [vmem:[%s1 + $0x3e8] sm:$0xff]
        %v544 = vld [vmem:[%s1 + $0x3f0] sm:$0xff]
        %v545 = vld [vmem:[%s1 + $0x3f8] sm:$0xff]
        %v546 = vld [vmem:[%s1 + $0x400] sm:$0xff]
        %v547 = vld [vmem:[%s1 + $0x408] sm:$0xff]
        %v548 = vld [vmem:[%s1 + $0x410] sm:$0xff]
        %v549 = vld [vmem:[%s1 + $0x418] sm:$0xff]
        %v550 = vld [vmem:[%s1 + $0x420] sm:$0xff]
        %v551 = vld [vmem:[%s1 + $0x428] sm:$0xff]
        %v552 = vld [vmem:[%s1 + $0x430] sm:$0xff]
        %v553 = vld [vmem:[%s1 + $0x438] sm:$0xff]
        %v554 = vld [vmem:[%s1 + $0x440] sm:$0xff]
        %v555 = vld [vmem:[%s1 + $0x448] sm:$0xff]
        %v556 = vld [vmem:[%s1 + $0x450] sm:$0xff]
        %v557 = vld [vmem:[%s1 + $0x458] sm:$0xff]
        %v558 = vld [vmem:[%s1 + $0x460] sm:$0xff]
        %v559 = vld [vmem:[%s1 + $0x468] sm:$0xff]
        %v560 = vld [vmem:[%s1 + $0x470] sm:$0xff]
        %v561 = vld [vmem:[%s1 + $0x478] sm:$0xff]
        %v562 = vld [vmem:[%s1 + $0x480] sm:$0xff]
        %v563 = vld [vmem:[%s1 + $0x488] sm:$0xff]
        %v564 = vld [vmem:[%s1 + $0x490] sm:$0xff]
        %v565 = vld [vmem:[%s1 + $0x498] sm:$0xff]
        %v566 = vld [vmem:[%s1 + $0x4a0] sm:$0xff]
        %v567 = vld [vmem:[%s1 + $0x4a8] sm:$0xff]
        %v568 = vld [vmem:[%s1 + $0x4b0] sm:$0xff]
        %v569 = vld [vmem:[%s1 + $0x4b8] sm:$0xff]
        %v570 = vld [vmem:[%s1 + $0x4c0] sm:$0xff]
        %v571 = vld [vmem:[%s1 + $0x4c8] sm:$0xff]
        %v572 = vld [vmem:[%s1 + $0x4d0] sm:$0xff]
        %v573 = vld [vmem:[%s1 + $0x4d8] sm:$0xff]
        %v574 = vld [vmem:[%s1 + $0x4e0] sm:$0xff]
        %v575 = vld [vmem:[%s1 + $0x4e8] sm:$0xff]
        %v576 = vld [vmem:[%s1 + $0x4f0] sm:$0xff]
        %v577 = vld [vmem:[%s1 + $0x4f8] sm:$0xff]
        %v578 = vld [vmem:[%s1 + $0x500] sm:$0xff]
        %v579 = vld [vmem:[%s1 + $0x508] sm:$0xff]
        %v580 = vld [vmem:[%s1 + $0x510] sm:$0xff]
        %v581 = vld [vmem:[%s1 + $0x518] sm:$0xff]
        %v582 = vld [vmem:[%s1 + $0x520] sm:$0xff]
        %v583 = vld [vmem:[%s1 + $0x528] sm:$0xff]
        %v584 = vld [vmem:[%s1 + $0x530] sm:$0xff]
        %v585 = vld [vmem:[%s1 + $0x538] sm:$0xff]
        %v586 = vld [vmem:[%s1 + $0x540] sm:$0xff]
        %v587 = vld [vmem:[%s1 + $0x548] sm:$0xff]
        %v588 = vld [vmem:[%s1 + $0x550] sm:$0xff]
        %v589 = vld [vmem:[%s1 + $0x558] sm:$0xff]
        %v590 = vld [vmem:[%s1 + $0x560] sm:$0xff]
        %v591 = vld [vmem:[%s1 + $0x568] sm:$0xff]
        %v592 = vld [vmem:[%s1 + $0x570] sm:$0xff]
        %v593 = vld [vmem:[%s1 + $0x578] sm:$0xff]
        %v594 = vld [vmem:[%s1 + $0x580] sm:$0xff]
        %v595 = vld [vmem:[%s1 + $0x588] sm:$0xff]
        %v596 = vld [vmem:[%s1 + $0x590] sm:$0xff]
        %v597 = vld [vmem:[%s1 + $0x598] sm:$0xff]
        %v598 = vld [vmem:[%s1 + $0x5a0] sm:$0xff]
        %v599 = vld [vmem:[%s1 + $0x5a8] sm:$0xff]
        %v600 = vld [vmem:[%s1 + $0x5b0] sm:$0xff]
        %v601 = vld [vmem:[%s1 + $0x5b8] sm:$0xff]
        %v602 = vld [vmem:[%s1 + $0x5c0] sm:$0xff]
        %v603 = vld [vmem:[%s1 + $0x5c8] sm:$0xff]
        %v604 = vld [vmem:[%s1 + $0x5d0] sm:$0xff]
        %v605 = vld [vmem:[%s1 + $0x5d8] sm:$0xff]
        %v606 = vld [vmem:[%s1 + $0x5e0] sm:$0xff]
        %v607 = vld [vmem:[%s1 + $0x5e8] sm:$0xff]
        %v608 = vld [vmem:[%s1 + $0x5f0] sm:$0xff]
        %v609 = vld [vmem:[%s1 + $0x5f8] sm:$0xff]
        %v610 = vld [vmem:[%s1 + $0x600] sm:$0xff]
        %v611 = vld [vmem:[%s1 + $0x608] sm:$0xff]
        %v612 = vld [vmem:[%s1 + $0x610] sm:$0xff]
        %v613 = vld [vmem:[%s1 + $0x618] sm:$0xff]
        %v614 = vld [vmem:[%s2] sm:$0xf]
        %v616 = vlaneseq
        %v617 = vshrl.u32 %v616, 7
        %v618 = vsub.s32 0, %v617
        %v619 = vrot.slane %v614, %v618
        %v620 = vlaneseq
        %v621 = vshrl.u32 %v620, 7
        %v622 = vsub.s32 1, %v621
        %v623 = vrot.slane %v614, %v622
        %v624 = vlaneseq
        %v625 = vshrl.u32 %v624, 7
        %v626 = vsub.s32 2, %v625
        %v627 = vrot.slane %v614, %v626
        %v628 = vlaneseq
        %v629 = vshrl.u32 %v628, 7
        %v630 = vsub.s32 3, %v629
        %v631 = vrot.slane %v614, %v630
        %v640 = vunpack.c.l.b16 %v414
        %v641 = vunpack.c.h.b16 %v414
        %v642 = vunpack.c.l.b16 %v415
        %v643 = vunpack.c.h.b16 %v415
        %v644 = vunpack.c.l.b16 %v416
        %v645 = vunpack.c.h.b16 %v416
        %v646 = vunpack.c.l.b16 %v417
        %v647 = vpack.c.b16 %v640, %v640
        %v648 = vpack.c.b16 %v641, %v641
        %v649 = vpack.c.b16 %v642, %v642
        %v650 = vpack.c.b16 %v643, %v643
        %v651 = vpack.c.b16 %v644, %v644
        %v652 = vpack.c.b16 %v645, %v645
        %v653 = vpack.c.b16 %v646, %v646
        %v856 = vunpack.c.l.b16 %v418
        %v857 = vunpack.c.h.b16 %v418
        %v858 = vunpack.c.l.b16 %v419
        %v859 = vunpack.c.h.b16 %v419
        %v860 = vunpack.c.l.b16 %v420
        %v861 = vunpack.c.h.b16 %v420
        %v862 = vunpack.c.l.b16 %v421
        %v863 = vunpack.c.h.b16 %v421
        %v864 = vunpack.c.l.b16 %v422
        %v865 = vunpack.c.h.b16 %v422
        %v866 = vunpack.c.l.b16 %v423
        %v867 = vunpack.c.h.b16 %v423
        %v868 = vunpack.c.l.b16 %v424
        %v869 = vunpack.c.h.b16 %v424
        %v870 = vunpack.c.l.b16 %v425
        %v871 = vunpack.c.h.b16 %v425
        %v872 = vunpack.c.l.b16 %v426
        %v873 = vunpack.c.h.b16 %v426
        %v874 = vunpack.c.l.b16 %v427
        %v875 = vunpack.c.h.b16 %v427
        %v876 = vunpack.c.l.b16 %v428
        %v877 = vunpack.c.h.b16 %v428
        %v878 = vunpack.c.l.b16 %v429
        %v879 = vunpack.c.h.b16 %v429
        %v880 = vunpack.c.l.b16 %v430
        %v881 = vunpack.c.h.b16 %v430
        %v882 = vunpack.c.l.b16 %v431
        %v883 = vunpack.c.h.b16 %v431
        %v884 = vunpack.c.l.b16 %v432
        %v885 = vunpack.c.h.b16 %v432
        %v886 = vunpack.c.l.b16 %v433
        %v887 = vunpack.c.h.b16 %v433
        %v888 = vunpack.c.l.b16 %v434
        %v889 = vunpack.c.h.b16 %v434
        %v890 = vunpack.c.l.b16 %v435
        %v891 = vunpack.c.h.b16 %v435
        %v892 = vunpack.c.l.b16 %v436
        %v893 = vunpack.c.h.b16 %v436
        %v894 = vunpack.c.l.b16 %v437
        %v895 = vunpack.c.h.b16 %v437
        %v896 = vunpack.c.l.b16 %v438
        %v897 = vunpack.c.h.b16 %v438
        %v898 = vunpack.c.l.b16 %v439
        %v899 = vunpack.c.h.b16 %v439
        %v900 = vunpack.c.l.b16 %v440
        %v901 = vunpack.c.h.b16 %v440
        %v902 = vunpack.c.l.b16 %v441
        %v903 = vunpack.c.h.b16 %v441
        %v904 = vunpack.c.l.b16 %v442
        %v905 = vunpack.c.h.b16 %v442
        %v906 = vunpack.c.l.b16 %v443
        %v907 = vunpack.c.h.b16 %v443
        %v908 = vunpack.c.l.b16 %v444
        %v909 = vunpack.c.h.b16 %v444
        %v910 = vunpack.c.l.b16 %v445
        %v911 = vunpack.c.h.b16 %v445
        %v912 = vunpack.c.l.b16 %v446
        %v913 = vunpack.c.h.b16 %v446
        %v914 = vunpack.c.l.b16 %v447
        %v915 = vunpack.c.h.b16 %v447
        %v916 = vunpack.c.l.b16 %v448
        %v917 = vunpack.c.h.b16 %v448
        %v918 = vunpack.c.l.b16 %v449
        %v919 = vunpack.c.h.b16 %v449
        %v920 = vunpack.c.l.b16 %v450
        %v921 = vunpack.c.h.b16 %v450
        %v922 = vunpack.c.l.b16 %v451
        %v923 = vunpack.c.h.b16 %v451
        %v924 = vunpack.c.l.b16 %v452
        %v925 = vunpack.c.h.b16 %v452
        %v926 = vunpack.c.l.b16 %v453
        %v927 = vunpack.c.h.b16 %v453
        %v928 = vunpack.c.l.b16 %v454
        %v929 = vunpack.c.h.b16 %v454
        %v930 = vunpack.c.l.b16 %v455
        %v931 = vunpack.c.h.b16 %v455
        %v932 = vunpack.c.l.b16 %v456
        %v933 = vunpack.c.h.b16 %v456
        %v934 = vunpack.c.l.b16 %v457
        %v935 = vunpack.c.h.b16 %v457
        %v936 = vunpack.c.l.b16 %v458
        %v937 = vunpack.c.h.b16 %v458
        %v938 = vunpack.c.l.b16 %v459
        %v939 = vunpack.c.h.b16 %v459
        %v940 = vunpack.c.l.b16 %v460
        %v941 = vunpack.c.h.b16 %v460
        %v942 = vunpack.c.l.b16 %v461
        %v943 = vunpack.c.h.b16 %v461
        %v944 = vunpack.c.l.b16 %v462
        %v945 = vunpack.c.h.b16 %v462
        %v946 = vunpack.c.l.b16 %v463
        %v947 = vunpack.c.h.b16 %v463
        %v948 = vunpack.c.l.b16 %v464
        %v949 = vunpack.c.h.b16 %v464
        %v950 = vunpack.c.l.b16 %v465
        %v951 = vunpack.c.h.b16 %v465
        %v952 = vunpack.c.l.b16 %v466
        %v953 = vunpack.c.h.b16 %v466
        %v954 = vunpack.c.l.b16 %v467
        %v955 = vunpack.c.h.b16 %v467
        %v956 = vunpack.c.l.b16 %v468
        %v957 = vunpack.c.h.b16 %v468
        %v958 = vunpack.c.l.b16 %v469
        %v959 = vunpack.c.h.b16 %v469
        %v960 = vunpack.c.l.b16 %v470
        %v961 = vunpack.c.h.b16 %v470
        %v962 = vunpack.c.l.b16 %v471
        %v963 = vunpack.c.h.b16 %v471
        %v964 = vunpack.c.l.b16 %v472
        %v965 = vunpack.c.h.b16 %v472
        %v966 = vunpack.c.l.b16 %v473
        %v967 = vunpack.c.h.b16 %v473
        %v968 = vunpack.c.l.b16 %v474
        %v969 = vunpack.c.h.b16 %v474
        %v970 = vunpack.c.l.b16 %v475
        %v971 = vunpack.c.h.b16 %v475
        %v972 = vunpack.c.l.b16 %v476
        %v973 = vunpack.c.h.b16 %v476
        %v974 = vunpack.c.l.b16 %v477
        %v975 = vunpack.c.h.b16 %v477
        %v976 = vunpack.c.l.b16 %v478
        %v977 = vunpack.c.h.b16 %v478
        %v978 = vunpack.c.l.b16 %v479
        %v979 = vunpack.c.h.b16 %v479
        %v980 = vunpack.c.l.b16 %v480
        %v981 = vunpack.c.h.b16 %v480
        %v982 = vunpack.c.l.b16 %v481
        %v983 = vunpack.c.h.b16 %v481
        %v984 = vunpack.c.l.b16 %v482
        %v985 = vunpack.c.h.b16 %v482
        %v986 = vunpack.c.l.b16 %v483
        %v987 = vunpack.c.h.b16 %v483
        %v988 = vunpack.c.l.b16 %v484
        %v989 = vunpack.c.h.b16 %v484
        %v990 = vunpack.c.l.b16 %v485
        %v991 = vunpack.c.h.b16 %v485
        %v992 = vunpack.c.l.b16 %v486
        %v993 = vunpack.c.h.b16 %v486
        %v994 = vunpack.c.l.b16 %v487
        %v995 = vunpack.c.h.b16 %v487
        %v996 = vunpack.c.l.b16 %v488
        %v997 = vunpack.c.h.b16 %v488
        %v998 = vunpack.c.l.b16 %v489
        %v999 = vunpack.c.h.b16 %v489
        %v1000 = vunpack.c.l.b16 %v490
        %v1001 = vunpack.c.h.b16 %v490
        %v1002 = vunpack.c.l.b16 %v491
        %v1003 = vunpack.c.h.b16 %v491
        %v1004 = vunpack.c.l.b16 %v492
        %v1005 = vunpack.c.h.b16 %v492
        %v1006 = vunpack.c.l.b16 %v493
        %v1007 = vunpack.c.h.b16 %v493
        %v1008 = vunpack.c.l.b16 %v494
        %v1009 = vunpack.c.h.b16 %v494
        %v1010 = vunpack.c.l.b16 %v495
        %v1011 = vunpack.c.h.b16 %v495
        %v1012 = vunpack.c.l.b16 %v496
        %v1013 = vunpack.c.h.b16 %v496
        %v1014 = vunpack.c.l.b16 %v497
        %v1015 = vunpack.c.h.b16 %v497
        %v1016 = vunpack.c.l.b16 %v498
        %v1017 = vunpack.c.h.b16 %v498
        %v1018 = vunpack.c.l.b16 %v499
        %v1019 = vunpack.c.h.b16 %v499
        %v1020 = vunpack.c.l.b16 %v500
        %v1021 = vunpack.c.h.b16 %v500
        %v1022 = vunpack.c.l.b16 %v501
        %v1023 = vunpack.c.h.b16 %v501
        %v1024 = vunpack.c.l.b16 %v502
        %v1025 = vunpack.c.h.b16 %v502
        %v1026 = vunpack.c.l.b16 %v503
        %v1027 = vunpack.c.h.b16 %v503
        %v1028 = vunpack.c.l.b16 %v504
        %v1029 = vunpack.c.h.b16 %v504
        %v1030 = vunpack.c.l.b16 %v505
        %v1031 = vunpack.c.h.b16 %v505
        %v1032 = vunpack.c.l.b16 %v506
        %v1033 = vunpack.c.h.b16 %v506
        %v1034 = vunpack.c.l.b16 %v507
        %v1035 = vunpack.c.h.b16 %v507
        %v1036 = vunpack.c.l.b16 %v508
        %v1037 = vunpack.c.h.b16 %v508
        %v1038 = vunpack.c.l.b16 %v509
        %v1039 = vunpack.c.h.b16 %v509
        %v1040 = vunpack.c.l.b16 %v510
        %v1041 = vunpack.c.h.b16 %v510
        %v1042 = vunpack.c.l.b16 %v511
        %v1043 = vunpack.c.h.b16 %v511
        %v1044 = vunpack.c.l.b16 %v512
        %v1045 = vunpack.c.h.b16 %v512
        %v1046 = vunpack.c.l.b16 %v513
        %v1047 = vunpack.c.h.b16 %v513
        %v1048 = vunpack.c.l.b16 %v514
        %v1049 = vunpack.c.h.b16 %v514
        %v1050 = vunpack.c.l.b16 %v515
        %v1051 = vunpack.c.h.b16 %v515
        %v1052 = vunpack.c.l.b16 %v516
        %v1053 = vunpack.c.h.b16 %v516
        %v1054 = vunpack.c.l.b16 %v517
        %v1055 = vunpack.c.h.b16 %v517
        %v1056 = vunpack.c.l.b16 %v518
        %v1057 = vunpack.c.h.b16 %v518
        %v1058 = vunpack.c.l.b16 %v519
        %v1059 = vunpack.c.h.b16 %v519
        %v1060 = vunpack.c.l.b16 %v520
        %v1061 = vunpack.c.h.b16 %v520
        %v1062 = vunpack.c.l.b16 %v521
        %v1063 = vunpack.c.h.b16 %v521
        %v1064 = vunpack.c.l.b16 %v522
        %v1065 = vunpack.c.h.b16 %v522
        %v1066 = vunpack.c.l.b16 %v523
        %v1067 = vunpack.c.h.b16 %v523
        %v1068 = vunpack.c.l.b16 %v524
        %v1069 = vunpack.c.h.b16 %v524
        %v1070 = vunpack.c.l.b16 %v525
        %v1071 = vunpack.c.h.b16 %v525
        %v1072 = vunpack.c.l.b16 %v526
        %v1073 = vunpack.c.h.b16 %v526
        %v1074 = vunpack.c.l.b16 %v527
        %v1075 = vunpack.c.h.b16 %v527
        %v1076 = vunpack.c.l.b16 %v528
        %v1077 = vunpack.c.h.b16 %v528
        %v1078 = vunpack.c.l.b16 %v529
        %v1079 = vunpack.c.h.b16 %v529
        %v1080 = vunpack.c.l.b16 %v530
        %v1081 = vunpack.c.h.b16 %v530
        %v1082 = vunpack.c.l.b16 %v531
        %v1083 = vunpack.c.h.b16 %v531
        %v1084 = vunpack.c.l.b16 %v532
        %v1085 = vunpack.c.h.b16 %v532
        %v1086 = vunpack.c.l.b16 %v533
        %v1087 = vunpack.c.h.b16 %v533
        %v1088 = vunpack.c.l.b16 %v534
        %v1089 = vunpack.c.h.b16 %v534
        %v1090 = vunpack.c.l.b16 %v535
        %v1091 = vunpack.c.h.b16 %v535
        %v1092 = vunpack.c.l.b16 %v536
        %v1093 = vunpack.c.h.b16 %v536
        %v1094 = vunpack.c.l.b16 %v537
        %v1095 = vunpack.c.h.b16 %v537
        %v1096 = vunpack.c.l.b16 %v538
        %v1097 = vunpack.c.h.b16 %v538
        %v1098 = vunpack.c.l.b16 %v539
        %v1099 = vunpack.c.h.b16 %v539
        %v1100 = vunpack.c.l.b16 %v540
        %v1101 = vunpack.c.h.b16 %v540
        %v1102 = vunpack.c.l.b16 %v541
        %v1103 = vunpack.c.h.b16 %v541
        %v1104 = vunpack.c.l.b16 %v542
        %v1105 = vunpack.c.h.b16 %v542
        %v1106 = vunpack.c.l.b16 %v543
        %v1107 = vunpack.c.h.b16 %v543
        %v1108 = vunpack.c.l.b16 %v544
        %v1109 = vunpack.c.h.b16 %v544
        %v1110 = vunpack.c.l.b16 %v545
        %v1111 = vunpack.c.h.b16 %v545
        %v1112 = vunpack.c.l.b16 %v546
        %v1113 = vunpack.c.h.b16 %v546
        %v1114 = vunpack.c.l.b16 %v547
        %v1115 = vunpack.c.h.b16 %v547
        %v1116 = vunpack.c.l.b16 %v548
        %v1117 = vunpack.c.h.b16 %v548
        %v1118 = vunpack.c.l.b16 %v549
        %v1119 = vunpack.c.h.b16 %v549
        %v1120 = vunpack.c.l.b16 %v550
        %v1121 = vunpack.c.h.b16 %v550
        %v1122 = vunpack.c.l.b16 %v551
        %v1123 = vunpack.c.h.b16 %v551
        %v1124 = vunpack.c.l.b16 %v552
        %v1125 = vunpack.c.h.b16 %v552
        %v1126 = vunpack.c.l.b16 %v553
        %v1127 = vunpack.c.h.b16 %v553
        %v1128 = vunpack.c.l.b16 %v554
        %v1129 = vunpack.c.h.b16 %v554
        %v1130 = vunpack.c.l.b16 %v555
        %v1131 = vunpack.c.h.b16 %v555
        %v1132 = vunpack.c.l.b16 %v556
        %v1133 = vunpack.c.h.b16 %v556
        %v1134 = vunpack.c.l.b16 %v557
        %v1135 = vunpack.c.h.b16 %v557
        %v1136 = vunpack.c.l.b16 %v558
        %v1137 = vunpack.c.h.b16 %v558
        %v1138 = vunpack.c.l.b16 %v559
        %v1139 = vunpack.c.h.b16 %v559
        %v1140 = vunpack.c.l.b16 %v560
        %v1141 = vunpack.c.h.b16 %v560
        %v1142 = vunpack.c.l.b16 %v561
        %v1143 = vunpack.c.h.b16 %v561
        %v1144 = vunpack.c.l.b16 %v562
        %v1145 = vunpack.c.h.b16 %v562
        %v1146 = vunpack.c.l.b16 %v563
        %v1147 = vunpack.c.h.b16 %v563
        %v1148 = vunpack.c.l.b16 %v564
        %v1149 = vunpack.c.h.b16 %v564
        %v1150 = vunpack.c.l.b16 %v565
        %v1151 = vunpack.c.h.b16 %v565
        %v1152 = vunpack.c.l.b16 %v566
        %v1153 = vunpack.c.h.b16 %v566
        %v1154 = vunpack.c.l.b16 %v567
        %v1155 = vunpack.c.h.b16 %v567
        %v1156 = vunpack.c.l.b16 %v568
        %v1157 = vunpack.c.h.b16 %v568
        %v1158 = vunpack.c.l.b16 %v569
        %v1159 = vunpack.c.h.b16 %v569
        %v1160 = vunpack.c.l.b16 %v570
        %v1161 = vunpack.c.h.b16 %v570
        %v1162 = vunpack.c.l.b16 %v571
        %v1163 = vunpack.c.h.b16 %v571
        %v1164 = vunpack.c.l.b16 %v572
        %v1165 = vunpack.c.h.b16 %v572
        %v1166 = vunpack.c.l.b16 %v573
        %v1167 = vunpack.c.h.b16 %v573
        %v1168 = vunpack.c.l.b16 %v574
        %v1169 = vunpack.c.h.b16 %v574
        %v1170 = vunpack.c.l.b16 %v575
        %v1171 = vunpack.c.h.b16 %v575
        %v1172 = vunpack.c.l.b16 %v576
        %v1173 = vunpack.c.h.b16 %v576
        %v1174 = vunpack.c.l.b16 %v577
        %v1175 = vunpack.c.h.b16 %v577
        %v1176 = vunpack.c.l.b16 %v578
        %v1177 = vunpack.c.h.b16 %v578
        %v1178 = vunpack.c.l.b16 %v579
        %v1179 = vunpack.c.h.b16 %v579
        %v1180 = vunpack.c.l.b16 %v580
        %v1181 = vunpack.c.h.b16 %v580
        %v1182 = vunpack.c.l.b16 %v581
        %v1183 = vunpack.c.h.b16 %v581
        %v1184 = vunpack.c.l.b16 %v582
        %v1185 = vunpack.c.h.b16 %v582
        %v1186 = vunpack.c.l.b16 %v583
        %v1187 = vunpack.c.h.b16 %v583
        %v1188 = vunpack.c.l.b16 %v584
        %v1189 = vunpack.c.h.b16 %v584
        %v1190 = vunpack.c.l.b16 %v585
        %v1191 = vunpack.c.h.b16 %v585
        %v1192 = vunpack.c.l.b16 %v586
        %v1193 = vunpack.c.h.b16 %v586
        %v1194 = vunpack.c.l.b16 %v587
        %v1195 = vunpack.c.h.b16 %v587
        %v1196 = vunpack.c.l.b16 %v588
        %v1197 = vunpack.c.h.b16 %v588
        %v1198 = vunpack.c.l.b16 %v589
        %v1199 = vunpack.c.h.b16 %v589
        %v1200 = vunpack.c.l.b16 %v590
        %v1201 = vunpack.c.h.b16 %v590
        %v1202 = vunpack.c.l.b16 %v591
        %v1203 = vunpack.c.h.b16 %v591
        %v1204 = vunpack.c.l.b16 %v592
        %v1205 = vunpack.c.h.b16 %v592
        %v1206 = vunpack.c.l.b16 %v593
        %v1207 = vunpack.c.h.b16 %v593
        %v1208 = vunpack.c.l.b16 %v594
        %v1209 = vunpack.c.h.b16 %v594
        %v1210 = vunpack.c.l.b16 %v595
        %v1211 = vunpack.c.h.b16 %v595
        %v1212 = vunpack.c.l.b16 %v596
        %v1213 = vunpack.c.h.b16 %v596
        %v1214 = vunpack.c.l.b16 %v597
        %v1215 = vunpack.c.h.b16 %v597
        %v1216 = vunpack.c.l.b16 %v598
        %v1217 = vunpack.c.h.b16 %v598
        %v1218 = vunpack.c.l.b16 %v599
        %v1219 = vunpack.c.h.b16 %v599
        %v1220 = vunpack.c.l.b16 %v600
        %v1221 = vunpack.c.h.b16 %v600
        %v1222 = vunpack.c.l.b16 %v601
        %v1223 = vunpack.c.h.b16 %v601
        %v1224 = vunpack.c.l.b16 %v602
        %v1225 = vunpack.c.h.b16 %v602
        %v1226 = vunpack.c.l.b16 %v603
        %v1227 = vunpack.c.h.b16 %v603
        %v1228 = vunpack.c.l.b16 %v604
        %v1229 = vunpack.c.h.b16 %v604
        %v1230 = vunpack.c.l.b16 %v605
        %v1231 = vunpack.c.h.b16 %v605
        %v1232 = vunpack.c.l.b16 %v606
        %v1233 = vunpack.c.h.b16 %v606
        %v1234 = vunpack.c.l.b16 %v607
        %v1235 = vunpack.c.h.b16 %v607
        %v1236 = vunpack.c.l.b16 %v608
        %v1237 = vunpack.c.h.b16 %v608
        %v1238 = vunpack.c.l.b16 %v609
        %v1239 = vunpack.c.h.b16 %v609
        %v1240 = vunpack.c.l.b16 %v610
        %v1241 = vunpack.c.h.b16 %v610
        %v1242 = vunpack.c.l.b16 %v611
        %v1243 = vunpack.c.h.b16 %v611
        %v1244 = vunpack.c.l.b16 %v612
        %v1245 = vunpack.c.h.b16 %v612
        %v1246 = vunpack.c.l.b16 %v613
        %v1247 = vunpack.c.h.b16 %v613
        %v1248 = vpack.c.b16 %v860, %v856
        %v1249 = vpack.c.b16 %v861, %v857
        %v1250 = vpack.c.b16 %v862, %v858
        %v1251 = vpack.c.b16 %v863, %v859
        %v1252 = vpack.c.b16 %v868, %v864
        %v1253 = vpack.c.b16 %v869, %v865
        %v1254 = vpack.c.b16 %v870, %v866
        %v1255 = vpack.c.b16 %v871, %v867
        %v1256 = vpack.c.b16 %v876, %v872
        %v1257 = vpack.c.b16 %v877, %v873
        %v1258 = vpack.c.b16 %v878, %v874
        %v1259 = vpack.c.b16 %v879, %v875
        %v1260 = vpack.c.b16 %v884, %v880
        %v1261 = vpack.c.b16 %v885, %v881
        %v1262 = vpack.c.b16 %v886, %v882
        %v1263 = vpack.c.b16 %v887, %v883
        %v1264 = vpack.c.b16 %v892, %v888
        %v1265 = vpack.c.b16 %v893, %v889
        %v1266 = vpack.c.b16 %v894, %v890
        %v1267 = vpack.c.b16 %v895, %v891
        %v1268 = vpack.c.b16 %v900, %v896
        %v1269 = vpack.c.b16 %v901, %v897
        %v1270 = vpack.c.b16 %v902, %v898
        %v1271 = vpack.c.b16 %v903, %v899
        %v1272 = vpack.c.b16 %v908, %v904
        %v1273 = vpack.c.b16 %v909, %v905
        %v1274 = vpack.c.b16 %v910, %v906
        %v1275 = vpack.c.b16 %v911, %v907
        %v1276 = vpack.c.b16 %v916, %v912
        %v1277 = vpack.c.b16 %v917, %v913
        %v1278 = vpack.c.b16 %v918, %v914
        %v1279 = vpack.c.b16 %v919, %v915
        %v1280 = vpack.c.b16 %v924, %v920
        %v1281 = vpack.c.b16 %v925, %v921
        %v1282 = vpack.c.b16 %v926, %v922
        %v1283 = vpack.c.b16 %v927, %v923
        %v1284 = vpack.c.b16 %v932, %v928
        %v1285 = vpack.c.b16 %v933, %v929
        %v1286 = vpack.c.b16 %v934, %v930
        %v1287 = vpack.c.b16 %v935, %v931
        %v1288 = vpack.c.b16 %v940, %v936
        %v1289 = vpack.c.b16 %v941, %v937
        %v1290 = vpack.c.b16 %v942, %v938
        %v1291 = vpack.c.b16 %v943, %v939
        %v1292 = vpack.c.b16 %v948, %v944
        %v1293 = vpack.c.b16 %v949, %v945
        %v1294 = vpack.c.b16 %v950, %v946
        %v1295 = vpack.c.b16 %v951, %v947
        %v1296 = vpack.c.b16 %v956, %v952
        %v1297 = vpack.c.b16 %v957, %v953
        %v1298 = vpack.c.b16 %v958, %v954
        %v1299 = vpack.c.b16 %v959, %v955
        %v1300 = vpack.c.b16 %v964, %v960
        %v1301 = vpack.c.b16 %v965, %v961
        %v1302 = vpack.c.b16 %v966, %v962
        %v1303 = vpack.c.b16 %v967, %v963
        %v1304 = vpack.c.b16 %v972, %v968
        %v1305 = vpack.c.b16 %v973, %v969
        %v1306 = vpack.c.b16 %v974, %v970
        %v1307 = vpack.c.b16 %v975, %v971
        %v1308 = vpack.c.b16 %v980, %v976
        %v1309 = vpack.c.b16 %v981, %v977
        %v1310 = vpack.c.b16 %v982, %v978
        %v1311 = vpack.c.b16 %v983, %v979
        %v1312 = vpack.c.b16 %v988, %v984
        %v1313 = vpack.c.b16 %v989, %v985
        %v1314 = vpack.c.b16 %v990, %v986
        %v1315 = vpack.c.b16 %v991, %v987
        %v1316 = vpack.c.b16 %v996, %v992
        %v1317 = vpack.c.b16 %v997, %v993
        %v1318 = vpack.c.b16 %v998, %v994
        %v1319 = vpack.c.b16 %v999, %v995
        %v1320 = vpack.c.b16 %v1004, %v1000
        %v1321 = vpack.c.b16 %v1005, %v1001
        %v1322 = vpack.c.b16 %v1006, %v1002
        %v1323 = vpack.c.b16 %v1007, %v1003
        %v1324 = vpack.c.b16 %v1012, %v1008
        %v1325 = vpack.c.b16 %v1013, %v1009
        %v1326 = vpack.c.b16 %v1014, %v1010
        %v1327 = vpack.c.b16 %v1015, %v1011
        %v1328 = vpack.c.b16 %v1020, %v1016
        %v1329 = vpack.c.b16 %v1021, %v1017
        %v1330 = vpack.c.b16 %v1022, %v1018
        %v1331 = vpack.c.b16 %v1023, %v1019
        %v1332 = vpack.c.b16 %v1028, %v1024
        %v1333 = vpack.c.b16 %v1029, %v1025
        %v1334 = vpack.c.b16 %v1030, %v1026
        %v1335 = vpack.c.b16 %v1031, %v1027
        %v1336 = vpack.c.b16 %v1036, %v1032
        %v1337 = vpack.c.b16 %v1037, %v1033
        %v1338 = vpack.c.b16 %v1038, %v1034
        %v1339 = vpack.c.b16 %v1039, %v1035
        %v1340 = vpack.c.b16 %v1044, %v1040
        %v1341 = vpack.c.b16 %v1045, %v1041
        %v1342 = vpack.c.b16 %v1046, %v1042
        %v1343 = vpack.c.b16 %v1047, %v1043
        %v1344 = vpack.c.b16 %v1052, %v1048
        %v1345 = vpack.c.b16 %v1053, %v1049
        %v1346 = vpack.c.b16 %v1054, %v1050
        %v1347 = vpack.c.b16 %v1055, %v1051
        %v1348 = vpack.c.b16 %v1060, %v1056
        %v1349 = vpack.c.b16 %v1061, %v1057
        %v1350 = vpack.c.b16 %v1062, %v1058
        %v1351 = vpack.c.b16 %v1063, %v1059
        %v1352 = vpack.c.b16 %v1068, %v1064
        %v1353 = vpack.c.b16 %v1069, %v1065
        %v1354 = vpack.c.b16 %v1070, %v1066
        %v1355 = vpack.c.b16 %v1071, %v1067
        %v1356 = vpack.c.b16 %v1076, %v1072
        %v1357 = vpack.c.b16 %v1077, %v1073
        %v1358 = vpack.c.b16 %v1078, %v1074
        %v1359 = vpack.c.b16 %v1079, %v1075
        %v1360 = vpack.c.b16 %v1084, %v1080
        %v1361 = vpack.c.b16 %v1085, %v1081
        %v1362 = vpack.c.b16 %v1086, %v1082
        %v1363 = vpack.c.b16 %v1087, %v1083
        %v1364 = vpack.c.b16 %v1092, %v1088
        %v1365 = vpack.c.b16 %v1093, %v1089
        %v1366 = vpack.c.b16 %v1094, %v1090
        %v1367 = vpack.c.b16 %v1095, %v1091
        %v1368 = vpack.c.b16 %v1100, %v1096
        %v1369 = vpack.c.b16 %v1101, %v1097
        %v1370 = vpack.c.b16 %v1102, %v1098
        %v1371 = vpack.c.b16 %v1103, %v1099
        %v1372 = vpack.c.b16 %v1108, %v1104
        %v1373 = vpack.c.b16 %v1109, %v1105
        %v1374 = vpack.c.b16 %v1110, %v1106
        %v1375 = vpack.c.b16 %v1111, %v1107
        %v1376 = vpack.c.b16 %v1116, %v1112
        %v1377 = vpack.c.b16 %v1117, %v1113
        %v1378 = vpack.c.b16 %v1118, %v1114
        %v1379 = vpack.c.b16 %v1119, %v1115
        %v1380 = vpack.c.b16 %v1124, %v1120
        %v1381 = vpack.c.b16 %v1125, %v1121
        %v1382 = vpack.c.b16 %v1126, %v1122
        %v1383 = vpack.c.b16 %v1127, %v1123
        %v1384 = vpack.c.b16 %v1132, %v1128
        %v1385 = vpack.c.b16 %v1133, %v1129
        %v1386 = vpack.c.b16 %v1134, %v1130
        %v1387 = vpack.c.b16 %v1135, %v1131
        %v1388 = vpack.c.b16 %v1140, %v1136
        %v1389 = vpack.c.b16 %v1141, %v1137
        %v1390 = vpack.c.b16 %v1142, %v1138
        %v1391 = vpack.c.b16 %v1143, %v1139
        %v1392 = vpack.c.b16 %v1148, %v1144
        %v1393 = vpack.c.b16 %v1149, %v1145
        %v1394 = vpack.c.b16 %v1150, %v1146
        %v1395 = vpack.c.b16 %v1151, %v1147
        %v1396 = vpack.c.b16 %v1156, %v1152
        %v1397 = vpack.c.b16 %v1157, %v1153
        %v1398 = vpack.c.b16 %v1158, %v1154
        %v1399 = vpack.c.b16 %v1159, %v1155
        %v1400 = vpack.c.b16 %v1164, %v1160
        %v1401 = vpack.c.b16 %v1165, %v1161
        %v1402 = vpack.c.b16 %v1166, %v1162
        %v1403 = vpack.c.b16 %v1167, %v1163
        %v1404 = vpack.c.b16 %v1172, %v1168
        %v1405 = vpack.c.b16 %v1173, %v1169
        %v1406 = vpack.c.b16 %v1174, %v1170
        %v1407 = vpack.c.b16 %v1175, %v1171
        %v1408 = vpack.c.b16 %v1180, %v1176
        %v1409 = vpack.c.b16 %v1181, %v1177
        %v1410 = vpack.c.b16 %v1182, %v1178
        %v1411 = vpack.c.b16 %v1183, %v1179
        %v1412 = vpack.c.b16 %v1188, %v1184
        %v1413 = vpack.c.b16 %v1189, %v1185
        %v1414 = vpack.c.b16 %v1190, %v1186
        %v1415 = vpack.c.b16 %v1191, %v1187
        %v1416 = vpack.c.b16 %v1196, %v1192
        %v1417 = vpack.c.b16 %v1197, %v1193
        %v1418 = vpack.c.b16 %v1198, %v1194
        %v1419 = vpack.c.b16 %v1199, %v1195
        %v1420 = vpack.c.b16 %v1204, %v1200
        %v1421 = vpack.c.b16 %v1205, %v1201
        %v1422 = vpack.c.b16 %v1206, %v1202
        %v1423 = vpack.c.b16 %v1207, %v1203
        %v1424 = vpack.c.b16 %v1212, %v1208
        %v1425 = vpack.c.b16 %v1213, %v1209
        %v1426 = vpack.c.b16 %v1214, %v1210
        %v1427 = vpack.c.b16 %v1215, %v1211
        %v1428 = vpack.c.b16 %v1220, %v1216
        %v1429 = vpack.c.b16 %v1221, %v1217
        %v1430 = vpack.c.b16 %v1222, %v1218
        %v1431 = vpack.c.b16 %v1223, %v1219
        %v1432 = vpack.c.b16 %v1228, %v1224
        %v1433 = vpack.c.b16 %v1229, %v1225
        %v1434 = vpack.c.b16 %v1230, %v1226
        %v1435 = vpack.c.b16 %v1231, %v1227
        %v1436 = vpack.c.b16 %v1236, %v1232
        %v1437 = vpack.c.b16 %v1237, %v1233
        %v1438 = vpack.c.b16 %v1238, %v1234
        %v1439 = vpack.c.b16 %v1239, %v1235
        %v1440 = vpack.c.b16 %v1244, %v1240
        %v1441 = vpack.c.b16 %v1245, %v1241
        %v1442 = vpack.c.b16 %v1246, %v1242
        %v1443 = vpack.c.b16 %v1247, %v1243
        %vm1640 = vcmask 130048
        %v1642 = vsel %vm1640, %v653, 0
        %1644 = vmatprep.subr.bf16.mxu0 %v1249
        %1645 = vmatpush1.bf16.msra.mxu0 %v1248
        %1646 = vmatprep.subr.bf16.mxu0 %v1253
        %1647 = vmatpush1.bf16.msra.mxu0 %v1252
        %1648 = vmatprep.subr.bf16.mxu0 %v1257
        %1649 = vmatpush1.bf16.msra.mxu0 %v1256
        %1650 = vmatprep.subr.bf16.mxu0 %v1261
        %1651 = vmatpush1.bf16.msra.mxu0 %v1260
        %1652 = vmatprep.subr.bf16.mxu0 %v1265
        %1653 = vmatpush1.bf16.msra.mxu0 %v1264
        %1654 = vmatprep.subr.bf16.mxu0 %v1269
        %1655 = vmatpush1.bf16.msra.mxu0 %v1268
        %1656 = vmatprep.subr.bf16.mxu0 %v1273
        %1657 = vmatpush1.bf16.msra.mxu0 %v1272
        %1658 = vmatprep.subr.bf16.mxu0 %v1277
        %1659 = vmatpush1.bf16.msra.mxu0 %v1276
        %1660 = vmatprep.subr.bf16.mxu0 %v1281
        %1661 = vmatpush1.bf16.msra.mxu0 %v1280
        %1662 = vmatprep.subr.bf16.mxu0 %v1285
        %1663 = vmatpush1.bf16.msra.mxu0 %v1284
        %1664 = vmatprep.subr.bf16.mxu0 %v1289
        %1665 = vmatpush1.bf16.msra.mxu0 %v1288
        %1666 = vmatprep.subr.bf16.mxu0 %v1293
        %1667 = vmatpush1.bf16.msra.mxu0 %v1292
        %1668 = vmatprep.subr.bf16.mxu0 %v1297
        %1669 = vmatpush1.bf16.msra.mxu0 %v1296
        %1670 = vmatprep.subr.bf16.mxu0 %v1301
        %1671 = vmatpush1.bf16.msra.mxu0 %v1300
        %1672 = vmatprep.subr.bf16.mxu0 %v1305
        %1673 = vmatpush1.bf16.msra.mxu0 %v1304
        %1674 = vmatprep.subr.bf16.mxu0 %v1309
        %1675 = vmatpush1.bf16.msra.mxu0 %v1308
        %1676 = vmatprep.mubr.bf16.mxu0 %v648
        %1677 = vmatmul.mubr.bf16.gmra.mrb[0].mxu0 %v647
        %v1678 = vpop.f32.mrb[0].mxu0
        %v1679 = vadd.f32 %v619, %v1678
        %v1680 = vpop.f32.mrb[0].mxu0
        %v1681 = vadd.f32 %v623, %v1680
        %v1682 = vpop.f32.mrb[0].mxu0
        %v1683 = vpop.f32.mrb[0].mxu0
        %1684 = vdwg.mxu0
        %1685 = vmatprep.subr.bf16.mxu0 %v1313
        %1686 = vmatpush1.bf16.msra.mxu0 %v1312
        %1687 = vmatprep.subr.bf16.mxu0 %v1317
        %1688 = vmatpush1.bf16.msra.mxu0 %v1316
        %1689 = vmatprep.subr.bf16.mxu0 %v1321
        %1690 = vmatpush1.bf16.msra.mxu0 %v1320
        %1691 = vmatprep.subr.bf16.mxu0 %v1325
        %1692 = vmatpush1.bf16.msra.mxu0 %v1324
        %1693 = vmatprep.subr.bf16.mxu0 %v1329
        %1694 = vmatpush1.bf16.msra.mxu0 %v1328
        %1695 = vmatprep.subr.bf16.mxu0 %v1333
        %1696 = vmatpush1.bf16.msra.mxu0 %v1332
        %1697 = vmatprep.subr.bf16.mxu0 %v1337
        %1698 = vmatpush1.bf16.msra.mxu0 %v1336
        %1699 = vmatprep.subr.bf16.mxu0 %v1341
        %1700 = vmatpush1.bf16.msra.mxu0 %v1340
        %1701 = vmatprep.subr.bf16.mxu0 %v1345
        %1702 = vmatpush1.bf16.msra.mxu0 %v1344
        %1703 = vmatprep.subr.bf16.mxu0 %v1349
        %1704 = vmatpush1.bf16.msra.mxu0 %v1348
        %1705 = vmatprep.subr.bf16.mxu0 %v1353
        %1706 = vmatpush1.bf16.msra.mxu0 %v1352
        %1707 = vmatprep.subr.bf16.mxu0 %v1357
        %1708 = vmatpush1.bf16.msra.mxu0 %v1356
        %1709 = vmatprep.subr.bf16.mxu0 %v1361
        %1710 = vmatpush1.bf16.msra.mxu0 %v1360
        %1711 = vmatprep.subr.bf16.mxu0 %v1365
        %1712 = vmatpush1.bf16.msra.mxu0 %v1364
        %1713 = vmatprep.subr.bf16.mxu0 %v1369
        %1714 = vmatpush1.bf16.msra.mxu0 %v1368
        %1715 = vmatprep.subr.bf16.mxu0 %v1373
        %1716 = vmatpush1.bf16.msra.mxu0 %v1372
        %1717 = vmatprep.mubr.bf16.mxu0 %v650
        %1718 = vmatmul.mubr.bf16.gmra.mrb[0].mxu0 %v649
        %v1719 = vpop.f32.mrb[0].mxu0
        %v1720 = vadd.f32 %v1679, %v1719
        %v1721 = vpop.f32.mrb[0].mxu0
        %v1722 = vadd.f32 %v1681, %v1721
        %v1723 = vpop.f32.mrb[0].mxu0
        %v1724 = vpop.f32.mrb[0].mxu0
        %1725 = vdwg.mxu0
        %1726 = vmatprep.subr.bf16.mxu0 %v1377
        %1727 = vmatpush1.bf16.msra.mxu0 %v1376
        %1728 = vmatprep.subr.bf16.mxu0 %v1381
        %1729 = vmatpush1.bf16.msra.mxu0 %v1380
        %1730 = vmatprep.subr.bf16.mxu0 %v1385
        %1731 = vmatpush1.bf16.msra.mxu0 %v1384
        %1732 = vmatprep.subr.bf16.mxu0 %v1389
        %1733 = vmatpush1.bf16.msra.mxu0 %v1388
        %1734 = vmatprep.subr.bf16.mxu0 %v1393
        %1735 = vmatpush1.bf16.msra.mxu0 %v1392
        %1736 = vmatprep.subr.bf16.mxu0 %v1397
        %1737 = vmatpush1.bf16.msra.mxu0 %v1396
        %1738 = vmatprep.subr.bf16.mxu0 %v1401
        %1739 = vmatpush1.bf16.msra.mxu0 %v1400
        %1740 = vmatprep.subr.bf16.mxu0 %v1405
        %1741 = vmatpush1.bf16.msra.mxu0 %v1404
        %1742 = vmatprep.subr.bf16.mxu0 %v1409
        %1743 = vmatpush1.bf16.msra.mxu0 %v1408
        %1744 = vmatprep.subr.bf16.mxu0 %v1413
        %1745 = vmatpush1.bf16.msra.mxu0 %v1412
        %1746 = vmatprep.subr.bf16.mxu0 %v1417
        %1747 = vmatpush1.bf16.msra.mxu0 %v1416
        %1748 = vmatprep.subr.bf16.mxu0 %v1421
        %1749 = vmatpush1.bf16.msra.mxu0 %v1420
        %1750 = vmatprep.subr.bf16.mxu0 %v1425
        %1751 = vmatpush1.bf16.msra.mxu0 %v1424
        %1752 = vmatprep.subr.bf16.mxu0 %v1429
        %1753 = vmatpush1.bf16.msra.mxu0 %v1428
        %1754 = vmatprep.subr.bf16.mxu0 %v1433
        %1755 = vmatpush1.bf16.msra.mxu0 %v1432
        %1756 = vmatprep.subr.bf16.mxu0 %v1437
        %1757 = vmatpush1.bf16.msra.mxu0 %v1436
        %1758 = vmatprep.mubr.bf16.mxu0 %v652
        %1759 = vmatmul.mubr.bf16.gmra.mrb[0].mxu0 %v651
        %v1760 = vpop.f32.mrb[0].mxu0
        %v1761 = vadd.f32 %v1720, %v1760
        %v1762 = vpop.f32.mrb[0].mxu0
        %v1763 = vadd.f32 %v1722, %v1762
        %v1764 = vpop.f32.mrb[0].mxu0
        %v1765 = vpop.f32.mrb[0].mxu0
        %1766 = vdwg.mxu0
        %1767 = vmatprep.subr.bf16.mxu0 %v1441
        %1768 = vmatpush1.bf16.msra.mxu0 %v1440
        %1769 = vmatprep.subr.bf16.mxu0 0
        %1770 = vmatpush1.bf16.msra.mxu0 0
        %1771 = vmatprep.subr.bf16.mxu0 0
        %1772 = vmatpush1.bf16.msra.mxu0 0
        %1773 = vmatprep.subr.bf16.mxu0 0
        %1774 = vmatpush1.bf16.msra.mxu0 0
        %1775 = vmatprep.subr.bf16.mxu0 0
        %1776 = vmatpush1.bf16.msra.mxu0 0
        %1777 = vmatprep.subr.bf16.mxu0 0
        %1778 = vmatpush1.bf16.msra.mxu0 0
        %1779 = vmatprep.subr.bf16.mxu0 0
        %1780 = vmatpush1.bf16.msra.mxu0 0
        %1781 = vmatprep.subr.bf16.mxu0 0
        %1782 = vmatpush1.bf16.msra.mxu0 0
        %1783 = vmatprep.subr.bf16.mxu0 0
        %1784 = vmatpush1.bf16.msra.mxu0 0
        %1785 = vmatprep.subr.bf16.mxu0 0
        %1786 = vmatpush1.bf16.msra.mxu0 0
        %1787 = vmatprep.subr.bf16.mxu0 0
        %1788 = vmatpush1.bf16.msra.mxu0 0
        %1789 = vmatprep.subr.bf16.mxu0 0
        %1790 = vmatpush1.bf16.msra.mxu0 0
        %1791 = vmatprep.subr.bf16.mxu0 0
        %1792 = vmatpush1.bf16.msra.mxu0 0
        %1793 = vmatprep.subr.bf16.mxu0 0
        %1794 = vmatpush1.bf16.msra.mxu0 0
        %1795 = vmatprep.subr.bf16.mxu0 0
        %1796 = vmatpush1.bf16.msra.mxu0 0
        %1797 = vmatprep.subr.bf16.mxu0 0
        %1798 = vmatpush1.bf16.msra.mxu0 0
        %1799 = vmatprep.mubr.bf16.mxu0 0
        %1800 = vmatmul.mubr.bf16.gmra.mrb[0].mxu0 %v1642
        %v1801 = vpop.f32.mrb[0].mxu0
        %v1802 = vadd.f32 %v1761, %v1801
        %v1803 = vpop.f32.mrb[0].mxu0
        %v1804 = vadd.f32 %v1763, %v1803
        %v1805 = vpop.f32.mrb[0].mxu0
        %v1806 = vpop.f32.mrb[0].mxu0
        %1807 = vdwg.mxu0
        %1808 = vmatprep.subr.bf16.mxu0 %v1251
        %1809 = vmatpush1.bf16.msra.mxu0 %v1250
        %1810 = vmatprep.subr.bf16.mxu0 %v1255
        %1811 = vmatpush1.bf16.msra.mxu0 %v1254
        %1812 = vmatprep.subr.bf16.mxu0 %v1259
        %1813 = vmatpush1.bf16.msra.mxu0 %v1258
        %1814 = vmatprep.subr.bf16.mxu0 %v1263
        %1815 = vmatpush1.bf16.msra.mxu0 %v1262
        %1816 = vmatprep.subr.bf16.mxu0 %v1267
        %1817 = vmatpush1.bf16.msra.mxu0 %v1266
        %1818 = vmatprep.subr.bf16.mxu0 %v1271
        %1819 = vmatpush1.bf16.msra.mxu0 %v1270
        %1820 = vmatprep.subr.bf16.mxu0 %v1275
        %1821 = vmatpush1.bf16.msra.mxu0 %v1274
        %1822 = vmatprep.subr.bf16.mxu0 %v1279
        %1823 = vmatpush1.bf16.msra.mxu0 %v1278
        %1824 = vmatprep.subr.bf16.mxu0 %v1283
        %1825 = vmatpush1.bf16.msra.mxu0 %v1282
        %1826 = vmatprep.subr.bf16.mxu0 %v1287
        %1827 = vmatpush1.bf16.msra.mxu0 %v1286
        %1828 = vmatprep.subr.bf16.mxu0 %v1291
        %1829 = vmatpush1.bf16.msra.mxu0 %v1290
        %1830 = vmatprep.subr.bf16.mxu0 %v1295
        %1831 = vmatpush1.bf16.msra.mxu0 %v1294
        %1832 = vmatprep.subr.bf16.mxu0 %v1299
        %1833 = vmatpush1.bf16.msra.mxu0 %v1298
        %1834 = vmatprep.subr.bf16.mxu0 %v1303
        %1835 = vmatpush1.bf16.msra.mxu0 %v1302
        %1836 = vmatprep.subr.bf16.mxu0 %v1307
        %1837 = vmatpush1.bf16.msra.mxu0 %v1306
        %1838 = vmatprep.subr.bf16.mxu0 %v1311
        %1839 = vmatpush1.bf16.msra.mxu0 %v1310
        %1840 = vmatprep.mubr.bf16.mxu0 %v648
        %1841 = vmatmul.mubr.bf16.gmra.mrb[0].mxu0 %v647
        %v1842 = vpop.f32.mrb[0].mxu0
        %v1843 = vadd.f32 %v627, %v1842
        %v1844 = vpop.f32.mrb[0].mxu0
        %v1845 = vadd.f32 %v631, %v1844
        %v1846 = vpop.f32.mrb[0].mxu0
        %v1847 = vpop.f32.mrb[0].mxu0
        %1848 = vdwg.mxu0
        %1849 = vmatprep.subr.bf16.mxu0 %v1315
        %1850 = vmatpush1.bf16.msra.mxu0 %v1314
        %1851 = vmatprep.subr.bf16.mxu0 %v1319
        %1852 = vmatpush1.bf16.msra.mxu0 %v1318
        %1853 = vmatprep.subr.bf16.mxu0 %v1323
        %1854 = vmatpush1.bf16.msra.mxu0 %v1322
        %1855 = vmatprep.subr.bf16.mxu0 %v1327
        %1856 = vmatpush1.bf16.msra.mxu0 %v1326
        %1857 = vmatprep.subr.bf16.mxu0 %v1331
        %1858 = vmatpush1.bf16.msra.mxu0 %v1330
        %1859 = vmatprep.subr.bf16.mxu0 %v1335
        %1860 = vmatpush1.bf16.msra.mxu0 %v1334
        %1861 = vmatprep.subr.bf16.mxu0 %v1339
        %1862 = vmatpush1.bf16.msra.mxu0 %v1338
        %1863 = vmatprep.subr.bf16.mxu0 %v1343
        %1864 = vmatpush1.bf16.msra.mxu0 %v1342
        %1865 = vmatprep.subr.bf16.mxu0 %v1347
        %1866 = vmatpush1.bf16.msra.mxu0 %v1346
        %1867 = vmatprep.subr.bf16.mxu0 %v1351
        %1868 = vmatpush1.bf16.msra.mxu0 %v1350
        %1869 = vmatprep.subr.bf16.mxu0 %v1355
        %1870 = vmatpush1.bf16.msra.mxu0 %v1354
        %1871 = vmatprep.subr.bf16.mxu0 %v1359
        %1872 = vmatpush1.bf16.msra.mxu0 %v1358
        %1873 = vmatprep.subr.bf16.mxu0 %v1363
        %1874 = vmatpush1.bf16.msra.mxu0 %v1362
        %1875 = vmatprep.subr.bf16.mxu0 %v1367
        %1876 = vmatpush1.bf16.msra.mxu0 %v1366
        %1877 = vmatprep.subr.bf16.mxu0 %v1371
        %1878 = vmatpush1.bf16.msra.mxu0 %v1370
        %1879 = vmatprep.subr.bf16.mxu0 %v1375
        %1880 = vmatpush1.bf16.msra.mxu0 %v1374
        %1881 = vmatprep.mubr.bf16.mxu0 %v650
        %1882 = vmatmul.mubr.bf16.gmra.mrb[0].mxu0 %v649
        %v1883 = vpop.f32.mrb[0].mxu0
        %v1884 = vadd.f32 %v1843, %v1883
        %v1885 = vpop.f32.mrb[0].mxu0
        %v1886 = vadd.f32 %v1845, %v1885
        %v1887 = vpop.f32.mrb[0].mxu0
        %v1888 = vpop.f32.mrb[0].mxu0
        %1889 = vdwg.mxu0
        %1890 = vmatprep.subr.bf16.mxu0 %v1379
        %1891 = vmatpush1.bf16.msra.mxu0 %v1378
        %1892 = vmatprep.subr.bf16.mxu0 %v1383
        %1893 = vmatpush1.bf16.msra.mxu0 %v1382
        %1894 = vmatprep.subr.bf16.mxu0 %v1387
        %1895 = vmatpush1.bf16.msra.mxu0 %v1386
        %1896 = vmatprep.subr.bf16.mxu0 %v1391
        %1897 = vmatpush1.bf16.msra.mxu0 %v1390
        %1898 = vmatprep.subr.bf16.mxu0 %v1395
        %1899 = vmatpush1.bf16.msra.mxu0 %v1394
        %1900 = vmatprep.subr.bf16.mxu0 %v1399
        %1901 = vmatpush1.bf16.msra.mxu0 %v1398
        %1902 = vmatprep.subr.bf16.mxu0 %v1403
        %1903 = vmatpush1.bf16.msra.mxu0 %v1402
        %1904 = vmatprep.subr.bf16.mxu0 %v1407
        %1905 = vmatpush1.bf16.msra.mxu0 %v1406
        %1906 = vmatprep.subr.bf16.mxu0 %v1411
        %1907 = vmatpush1.bf16.msra.mxu0 %v1410
        %1908 = vmatprep.subr.bf16.mxu0 %v1415
        %1909 = vmatpush1.bf16.msra.mxu0 %v1414
        %1910 = vmatprep.subr.bf16.mxu0 %v1419
        %1911 = vmatpush1.bf16.msra.mxu0 %v1418
        %1912 = vmatprep.subr.bf16.mxu0 %v1423
        %1913 = vmatpush1.bf16.msra.mxu0 %v1422
        %1914 = vmatprep.subr.bf16.mxu0 %v1427
        %1915 = vmatpush1.bf16.msra.mxu0 %v1426
        %1916 = vmatprep.subr.bf16.mxu0 %v1431
        %1917 = vmatpush1.bf16.msra.mxu0 %v1430
        %1918 = vmatprep.subr.bf16.mxu0 %v1435
        %1919 = vmatpush1.bf16.msra.mxu0 %v1434
        %1920 = vmatprep.subr.bf16.mxu0 %v1439
        %1921 = vmatpush1.bf16.msra.mxu0 %v1438
        %1922 = vmatprep.mubr.bf16.mxu0 %v652
        %1923 = vmatmul.mubr.bf16.gmra.mrb[0].mxu0 %v651
        %v1924 = vpop.f32.mrb[0].mxu0
        %v1925 = vadd.f32 %v1884, %v1924
        %v1926 = vpop.f32.mrb[0].mxu0
        %v1927 = vadd.f32 %v1886, %v1926
        %v1928 = vpop.f32.mrb[0].mxu0
        %v1929 = vpop.f32.mrb[0].mxu0
        %1930 = vdwg.mxu0
        %1931 = vmatprep.subr.bf16.mxu0 %v1443
        %1932 = vmatpush1.bf16.msra.mxu0 %v1442
        %1933 = vmatprep.subr.bf16.mxu0 0
        %1934 = vmatpush1.bf16.msra.mxu0 0
        %1935 = vmatprep.subr.bf16.mxu0 0
        %1936 = vmatpush1.bf16.msra.mxu0 0
        %1937 = vmatprep.subr.bf16.mxu0 0
        %1938 = vmatpush1.bf16.msra.mxu0 0
        %1939 = vmatprep.subr.bf16.mxu0 0
        %1940 = vmatpush1.bf16.msra.mxu0 0
        %1941 = vmatprep.subr.bf16.mxu0 0
        %1942 = vmatpush1.bf16.msra.mxu0 0
        %1943 = vmatprep.subr.bf16.mxu0 0
        %1944 = vmatpush1.bf16.msra.mxu0 0
        %1945 = vmatprep.subr.bf16.mxu0 0
        %1946 = vmatpush1.bf16.msra.mxu0 0
        %1947 = vmatprep.subr.bf16.mxu0 0
        %1948 = vmatpush1.bf16.msra.mxu0 0
        %1949 = vmatprep.subr.bf16.mxu0 0
        %1950 = vmatpush1.bf16.msra.mxu0 0
        %1951 = vmatprep.subr.bf16.mxu0 0
        %1952 = vmatpush1.bf16.msra.mxu0 0
        %1953 = vmatprep.subr.bf16.mxu0 0
        %1954 = vmatpush1.bf16.msra.mxu0 0
        %1955 = vmatprep.subr.bf16.mxu0 0
        %1956 = vmatpush1.bf16.msra.mxu0 0
        %1957 = vmatprep.subr.bf16.mxu0 0
        %1958 = vmatpush1.bf16.msra.mxu0 0
        %1959 = vmatprep.subr.bf16.mxu0 0
        %1960 = vmatpush1.bf16.msra.mxu0 0
        %1961 = vmatprep.subr.bf16.mxu0 0
        %1962 = vmatpush1.bf16.msra.mxu0 0
        %1963 = vmatprep.mubr.bf16.mxu0 0
        %1964 = vmatmul.mubr.bf16.gmra.mrb[0].mxu0 %v1642
        %v1965 = vpop.f32.mrb[0].mxu0
        %v1966 = vadd.f32 %v1925, %v1965
        %v1967 = vpop.f32.mrb[0].mxu0
        %v1968 = vadd.f32 %v1927, %v1967
        %v1969 = vpop.f32.mrb[0].mxu0
        %v1970 = vpop.f32.mrb[0].mxu0
        %1971 = vdwg.mxu0
        %v1972 = vmax.f32 %v1802, 0.0
        %v1973 = vmax.f32 %v1804, 0.0
        %v1974 = vmax.f32 %v1966, 0.0
        %v1975 = vmax.f32 %v1968, 0.0
        %v1976 = vpack.c.bf16 %v1972, %v1972
        %v1977 = vpack.c.bf16 %v1973, %v1973
        %v1978 = vpack.c.bf16 %v1974, %v1974
        %v1979 = vpack.c.bf16 %v1975, %v1975
        %v1980 = vld [vmem:[%s3] sm:$0xf]
        %v1981 = vld [vmem:[%s3 + $0x4] sm:$0xf]
        %v1982 = vld [vmem:[%s3 + $0x8] sm:$0xf]
        %v1983 = vld [vmem:[%s3 + $0xc] sm:$0xf]
        %v1984 = vld [vmem:[%s3 + $0x10] sm:$0xf]
        %v1985 = vld [vmem:[%s3 + $0x14] sm:$0xf]
        %v1986 = vld [vmem:[%s3 + $0x18] sm:$0xf]
        %v1987 = vld [vmem:[%s3 + $0x1c] sm:$0xf]
        %v1988 = vld [vmem:[%s3 + $0x20] sm:$0xf]
        %v1989 = vld [vmem:[%s3 + $0x24] sm:$0xf]
        %v1990 = vld [vmem:[%s3 + $0x28] sm:$0xf]
        %v1991 = vld [vmem:[%s3 + $0x2c] sm:$0xf]
        %v1992 = vld [vmem:[%s3 + $0x30] sm:$0xf]
        %v1993 = vld [vmem:[%s3 + $0x34] sm:$0xf]
        %v1994 = vld [vmem:[%s3 + $0x38] sm:$0xf]
        %v1995 = vld [vmem:[%s3 + $0x3c] sm:$0xf]
        %v1996 = vld [vmem:[%s3 + $0x40] sm:$0xf]
        %v1997 = vld [vmem:[%s3 + $0x44] sm:$0xf]
        %v1998 = vld [vmem:[%s3 + $0x48] sm:$0xf]
        %v1999 = vld [vmem:[%s3 + $0x4c] sm:$0xf]
        %v2000 = vld [vmem:[%s3 + $0x50] sm:$0xf]
        %v2001 = vld [vmem:[%s3 + $0x54] sm:$0xf]
        %v2002 = vld [vmem:[%s3 + $0x58] sm:$0xf]
        %v2003 = vld [vmem:[%s3 + $0x5c] sm:$0xf]
        %v2004 = vld [vmem:[%s3 + $0x60] sm:$0xf]
        %v2005 = vld [vmem:[%s3 + $0x64] sm:$0xf]
        %v2006 = vld [vmem:[%s3 + $0x68] sm:$0xf]
        %v2007 = vld [vmem:[%s3 + $0x6c] sm:$0xf]
        %v2008 = vld [vmem:[%s3 + $0x70] sm:$0xf]
        %v2009 = vld [vmem:[%s3 + $0x74] sm:$0xf]
        %v2010 = vld [vmem:[%s3 + $0x78] sm:$0xf]
        %v2011 = vld [vmem:[%s3 + $0x7c] sm:$0xf]
        %v2012 = vld [vmem:[%s3 + $0x80] sm:$0xf]
        %v2013 = vld [vmem:[%s3 + $0x84] sm:$0xf]
        %v2014 = vld [vmem:[%s3 + $0x88] sm:$0xf]
        %v2015 = vld [vmem:[%s3 + $0x8c] sm:$0xf]
        %v2016 = vld [vmem:[%s3 + $0x90] sm:$0xf]
        %v2017 = vld [vmem:[%s3 + $0x94] sm:$0xf]
        %v2018 = vld [vmem:[%s3 + $0x98] sm:$0xf]
        %v2019 = vld [vmem:[%s3 + $0x9c] sm:$0xf]
        %v2020 = vld [vmem:[%s3 + $0xa0] sm:$0xf]
        %v2021 = vld [vmem:[%s3 + $0xa4] sm:$0xf]
        %v2022 = vld [vmem:[%s3 + $0xa8] sm:$0xf]
        %v2023 = vld [vmem:[%s3 + $0xac] sm:$0xf]
        %v2024 = vld [vmem:[%s3 + $0xb0] sm:$0xf]
        %v2025 = vld [vmem:[%s3 + $0xb4] sm:$0xf]
        %v2026 = vld [vmem:[%s3 + $0xb8] sm:$0xf]
        %v2027 = vld [vmem:[%s3 + $0xbc] sm:$0xf]
        %v2028 = vld [vmem:[%s3 + $0xc0] sm:$0xf]
        %v2029 = vld [vmem:[%s3 + $0xc4] sm:$0xf]
        %v2030 = vld [vmem:[%s4] sm:$0x1]
        %v2032 = vlaneseq
        %v2033 = vshrl.u32 %v2032, 7
        %v2034 = vsub.s32 0, %v2033
        %v2035 = vrot.slane %v2030, %v2034
        %v2087 = vunpack.c.l.b16 %v1980
        %v2088 = vunpack.c.l.b16 %v1981
        %v2089 = vunpack.c.l.b16 %v1982
        %v2090 = vunpack.c.l.b16 %v1983
        %v2091 = vunpack.c.l.b16 %v1984
        %v2092 = vunpack.c.l.b16 %v1985
        %v2093 = vunpack.c.l.b16 %v1986
        %v2094 = vunpack.c.l.b16 %v1987
        %v2095 = vunpack.c.l.b16 %v1988
        %v2096 = vunpack.c.l.b16 %v1989
        %v2097 = vunpack.c.l.b16 %v1990
        %v2098 = vunpack.c.l.b16 %v1991
        %v2099 = vunpack.c.l.b16 %v1992
        %v2100 = vunpack.c.l.b16 %v1993
        %v2101 = vunpack.c.l.b16 %v1994
        %v2102 = vunpack.c.l.b16 %v1995
        %v2103 = vunpack.c.l.b16 %v1996
        %v2104 = vunpack.c.l.b16 %v1997
        %v2105 = vunpack.c.l.b16 %v1998
        %v2106 = vunpack.c.l.b16 %v1999
        %v2107 = vunpack.c.l.b16 %v2000
        %v2108 = vunpack.c.l.b16 %v2001
        %v2109 = vunpack.c.l.b16 %v2002
        %v2110 = vunpack.c.l.b16 %v2003
        %v2111 = vunpack.c.l.b16 %v2004
        %v2112 = vunpack.c.l.b16 %v2005
        %v2113 = vunpack.c.l.b16 %v2006
        %v2114 = vunpack.c.l.b16 %v2007
        %v2115 = vunpack.c.l.b16 %v2008
        %v2116 = vunpack.c.l.b16 %v2009
        %v2117 = vunpack.c.l.b16 %v2010
        %v2118 = vunpack.c.l.b16 %v2011
        %v2119 = vunpack.c.l.b16 %v2012
        %v2120 = vunpack.c.l.b16 %v2013
        %v2121 = vunpack.c.l.b16 %v2014
        %v2122 = vunpack.c.l.b16 %v2015
        %v2123 = vunpack.c.l.b16 %v2016
        %v2124 = vunpack.c.l.b16 %v2017
        %v2125 = vunpack.c.l.b16 %v2018
        %v2126 = vunpack.c.l.b16 %v2019
        %v2127 = vunpack.c.l.b16 %v2020
        %v2128 = vunpack.c.l.b16 %v2021
        %v2129 = vunpack.c.l.b16 %v2022
        %v2130 = vunpack.c.l.b16 %v2023
        %v2131 = vunpack.c.l.b16 %v2024
        %v2132 = vunpack.c.l.b16 %v2025
        %v2133 = vunpack.c.l.b16 %v2026
        %v2134 = vunpack.c.l.b16 %v2027
        %v2135 = vunpack.c.l.b16 %v2028
        %v2136 = vunpack.c.l.b16 %v2029
        %v2137 = vpack.c.b16 %v2088, %v2087
        %v2138 = vpack.c.b16 %v2090, %v2089
        %v2139 = vpack.c.b16 %v2092, %v2091
        %v2140 = vpack.c.b16 %v2094, %v2093
        %v2141 = vpack.c.b16 %v2096, %v2095
        %v2142 = vpack.c.b16 %v2098, %v2097
        %v2143 = vpack.c.b16 %v2100, %v2099
        %v2144 = vpack.c.b16 %v2102, %v2101
        %v2145 = vpack.c.b16 %v2104, %v2103
        %v2146 = vpack.c.b16 %v2106, %v2105
        %v2147 = vpack.c.b16 %v2108, %v2107
        %v2148 = vpack.c.b16 %v2110, %v2109
        %v2149 = vpack.c.b16 %v2112, %v2111
        %v2150 = vpack.c.b16 %v2114, %v2113
        %v2151 = vpack.c.b16 %v2116, %v2115
        %v2152 = vpack.c.b16 %v2118, %v2117
        %v2153 = vpack.c.b16 %v2120, %v2119
        %v2154 = vpack.c.b16 %v2122, %v2121
        %v2155 = vpack.c.b16 %v2124, %v2123
        %v2156 = vpack.c.b16 %v2126, %v2125
        %v2157 = vpack.c.b16 %v2128, %v2127
        %v2158 = vpack.c.b16 %v2130, %v2129
        %v2159 = vpack.c.b16 %v2132, %v2131
        %v2160 = vpack.c.b16 %v2134, %v2133
        %v2161 = vpack.c.b16 %v2136, %v2135
        %v2188 = vsel %vm1640, %v1979, 0
        %2190 = vmatprep.subr.bf16.mxu0 0
        %2191 = vmatpush1.bf16.msra.mxu0 %v2137
        %2192 = vmatprep.subr.bf16.mxu0 0
        %2193 = vmatpush1.bf16.msra.mxu0 %v2138
        %2194 = vmatprep.subr.bf16.mxu0 0
        %2195 = vmatpush1.bf16.msra.mxu0 %v2139
        %2196 = vmatprep.subr.bf16.mxu0 0
        %2197 = vmatpush1.bf16.msra.mxu0 %v2140
        %2198 = vmatprep.subr.bf16.mxu0 0
        %2199 = vmatpush1.bf16.msra.mxu0 %v2141
        %2200 = vmatprep.subr.bf16.mxu0 0
        %2201 = vmatpush1.bf16.msra.mxu0 %v2142
        %2202 = vmatprep.subr.bf16.mxu0 0
        %2203 = vmatpush1.bf16.msra.mxu0 %v2143
        %2204 = vmatprep.subr.bf16.mxu0 0
        %2205 = vmatpush1.bf16.msra.mxu0 %v2144
        %2206 = vmatprep.subr.bf16.mxu0 0
        %2207 = vmatpush1.bf16.msra.mxu0 %v2145
        %2208 = vmatprep.subr.bf16.mxu0 0
        %2209 = vmatpush1.bf16.msra.mxu0 %v2146
        %2210 = vmatprep.subr.bf16.mxu0 0
        %2211 = vmatpush1.bf16.msra.mxu0 %v2147
        %2212 = vmatprep.subr.bf16.mxu0 0
        %2213 = vmatpush1.bf16.msra.mxu0 %v2148
        %2214 = vmatprep.subr.bf16.mxu0 0
        %2215 = vmatpush1.bf16.msra.mxu0 %v2149
        %2216 = vmatprep.subr.bf16.mxu0 0
        %2217 = vmatpush1.bf16.msra.mxu0 %v2150
        %2218 = vmatprep.subr.bf16.mxu0 0
        %2219 = vmatpush1.bf16.msra.mxu0 %v2151
        %2220 = vmatprep.subr.bf16.mxu0 0
        %2221 = vmatpush1.bf16.msra.mxu0 %v2152
        %2222 = vmatprep.mubr.bf16.mxu0 %v1977
        %2223 = vmatmul.mubr.bf16.gmra.mrb[0].mxu0 %v1976
        %v2224 = vpop.f32.mrb[0].mxu0
        %v2225 = vadd.f32 %v2035, %v2224
        %v2226 = vpop.f32.mrb[0].mxu0
        %v2227 = vpop.f32.mrb[0].mxu0
        %v2228 = vpop.f32.mrb[0].mxu0
        %2229 = vdwg.mxu0
        %2230 = vmatprep.subr.bf16.mxu0 0
        %2231 = vmatpush1.bf16.msra.mxu0 %v2153
        %2232 = vmatprep.subr.bf16.mxu0 0
        %2233 = vmatpush1.bf16.msra.mxu0 %v2154
        %2234 = vmatprep.subr.bf16.mxu0 0
        %2235 = vmatpush1.bf16.msra.mxu0 %v2155
        %2236 = vmatprep.subr.bf16.mxu0 0
        %2237 = vmatpush1.bf16.msra.mxu0 %v2156
        %2238 = vmatprep.subr.bf16.mxu0 0
        %2239 = vmatpush1.bf16.msra.mxu0 %v2157
        %2240 = vmatprep.subr.bf16.mxu0 0
        %2241 = vmatpush1.bf16.msra.mxu0 %v2158
        %2242 = vmatprep.subr.bf16.mxu0 0
        %2243 = vmatpush1.bf16.msra.mxu0 %v2159
        %2244 = vmatprep.subr.bf16.mxu0 0
        %2245 = vmatpush1.bf16.msra.mxu0 %v2160
        %2246 = vmatprep.subr.bf16.mxu0 0
        %2247 = vmatpush1.bf16.msra.mxu0 %v2161
        %2248 = vmatprep.subr.bf16.mxu0 0
        %2249 = vmatpush1.bf16.msra.mxu0 0
        %2250 = vmatprep.subr.bf16.mxu0 0
        %2251 = vmatpush1.bf16.msra.mxu0 0
        %2252 = vmatprep.subr.bf16.mxu0 0
        %2253 = vmatpush1.bf16.msra.mxu0 0
        %2254 = vmatprep.subr.bf16.mxu0 0
        %2255 = vmatpush1.bf16.msra.mxu0 0
        %2256 = vmatprep.subr.bf16.mxu0 0
        %2257 = vmatpush1.bf16.msra.mxu0 0
        %2258 = vmatprep.subr.bf16.mxu0 0
        %2259 = vmatpush1.bf16.msra.mxu0 0
        %2260 = vmatprep.subr.bf16.mxu0 0
        %2261 = vmatpush1.bf16.msra.mxu0 0
        %2262 = vmatprep.mubr.bf16.mxu0 %v2188
        %2263 = vmatmul.mubr.bf16.gmra.mrb[0].mxu0 %v1978
        %v2264 = vpop.f32.mrb[0].mxu0
        %v2265 = vadd.f32 %v2225, %v2264
        %v2266 = vpop.f32.mrb[0].mxu0
        %v2267 = vpop.f32.mrb[0].mxu0
        %v2268 = vpop.f32.mrb[0].mxu0
        %2269 = vdwg.mxu0
        %v2270 = vmul.f32 %v2265, 0.5
        %v2271 = vmul.f32 %v2270, 1.442695
        %v2272 = vpow.pop %v2271
        %v2273 = vld [vmem:[%s412] sm:$0xff]
        %2275 = vrot.lane.b32.xlu0 %v2272, 108
        %v2276 = vpop.permute.xlu0 %2275
        %v2278 = vmul.f32 %v2273, %v2276
        %v2279 = vadd.f32 %v2265, %v2278
        %v2280 = vpack.c.bf16 %v2279, %v2279
        %v2281 = vld [vmem:[%s5] sm:$0xff]
        %v2282 = vld [vmem:[%s5 + $0x8] sm:$0xff]
        %v2283 = vld [vmem:[%s5 + $0x10] sm:$0xff]
        %v2284 = vld [vmem:[%s5 + $0x18] sm:$0xff]
        %v2285 = vld [vmem:[%s5 + $0x20] sm:$0x33]
        %v2286 = vld [vmem:[%s5 + $0x28] sm:$0x33]
        %v2287 = vld [vmem:[%s6] sm:$0xf]
        %v2289 = vlaneseq
        %v2290 = vshrl.u32 %v2289, 7
        %v2291 = vsub.s32 0, %v2290
        %v2292 = vrot.slane %v2287, %v2291
        %v2293 = vlaneseq
        %v2294 = vshrl.u32 %v2293, 7
        %v2295 = vsub.s32 1, %v2294
        %v2296 = vrot.slane %v2287, %v2295
        %v2297 = vlaneseq
        %v2298 = vshrl.u32 %v2297, 7
        %v2299 = vsub.s32 2, %v2298
        %v2300 = vrot.slane %v2287, %v2299
        %v2301 = vlaneseq
        %v2302 = vshrl.u32 %v2301, 7
        %v2303 = vsub.s32 3, %v2302
        %v2304 = vrot.slane %v2287, %v2303
        %v2315 = vunpack.c.l.b16 %v2281
        %v2316 = vunpack.c.h.b16 %v2281
        %v2317 = vunpack.c.l.b16 %v2282
        %v2318 = vunpack.c.h.b16 %v2282
        %v2319 = vunpack.c.l.b16 %v2283
        %v2320 = vunpack.c.h.b16 %v2283
        %v2321 = vunpack.c.l.b16 %v2284
        %v2322 = vunpack.c.h.b16 %v2284
        %v2323 = vunpack.c.l.b16 %v2285
        %v2324 = vunpack.c.h.b16 %v2285
        %v2325 = vunpack.c.l.b16 %v2286
        %v2326 = vunpack.c.h.b16 %v2286
        %v2327 = vpack.c.b16 %v2319, %v2315
        %v2328 = vpack.c.b16 %v2320, %v2316
        %v2329 = vpack.c.b16 %v2321, %v2317
        %v2330 = vpack.c.b16 %v2322, %v2318
        %v2331 = vpack.c.b16 %v2323, %v2323
        %v2332 = vpack.c.b16 %v2324, %v2324
        %v2333 = vpack.c.b16 %v2325, %v2325
        %v2334 = vpack.c.b16 %v2326, %v2326
        %vm2339 = vcmask 162816
        %v2341 = vsel %vm2339, %v2280, 0
        %vm2343 = vcmask 1041408
        %v2345 = vsel %vm2343, %v2331, 0
        %v2348 = vsel %vm2343, %v2332, 0
        %v2351 = vsel %vm2343, %v2333, 0
        %v2354 = vsel %vm2343, %v2334, 0
        %2356 = vmatprep.subr.bf16.mxu0 %v2328
        %2357 = vmatpush1.bf16.msra.mxu0 %v2327
        %2358 = vmatprep.subr.bf16.mxu0 %v2348
        %2359 = vmatpush1.bf16.msra.mxu0 %v2345
        %2360 = vmatprep.subr.bf16.mxu0 0
        %2361 = vmatpush1.bf16.msra.mxu0 0
        %2362 = vmatprep.subr.bf16.mxu0 0
        %2363 = vmatpush1.bf16.msra.mxu0 0
        %2364 = vmatprep.subr.bf16.mxu0 0
        %2365 = vmatpush1.bf16.msra.mxu0 0
        %2366 = vmatprep.subr.bf16.mxu0 0
        %2367 = vmatpush1.bf16.msra.mxu0 0
        %2368 = vmatprep.subr.bf16.mxu0 0
        %2369 = vmatpush1.bf16.msra.mxu0 0
        %2370 = vmatprep.subr.bf16.mxu0 0
        %2371 = vmatpush1.bf16.msra.mxu0 0
        %2372 = vmatprep.subr.bf16.mxu0 0
        %2373 = vmatpush1.bf16.msra.mxu0 0
        %2374 = vmatprep.subr.bf16.mxu0 0
        %2375 = vmatpush1.bf16.msra.mxu0 0
        %2376 = vmatprep.subr.bf16.mxu0 0
        %2377 = vmatpush1.bf16.msra.mxu0 0
        %2378 = vmatprep.subr.bf16.mxu0 0
        %2379 = vmatpush1.bf16.msra.mxu0 0
        %2380 = vmatprep.subr.bf16.mxu0 0
        %2381 = vmatpush1.bf16.msra.mxu0 0
        %2382 = vmatprep.subr.bf16.mxu0 0
        %2383 = vmatpush1.bf16.msra.mxu0 0
        %2384 = vmatprep.subr.bf16.mxu0 0
        %2385 = vmatpush1.bf16.msra.mxu0 0
        %2386 = vmatprep.subr.bf16.mxu0 0
        %2387 = vmatpush1.bf16.msra.mxu0 0
        %2388 = vmatprep.mubr.bf16.mxu0 0
        %2389 = vmatmul.mubr.bf16.gmra.mrb[0].mxu0 %v2341
        %v2390 = vpop.f32.mrb[0].mxu0
        %v2391 = vadd.f32 %v2292, %v2390
        %v2392 = vpop.f32.mrb[0].mxu0
        %v2393 = vadd.f32 %v2296, %v2392
        %v2394 = vpop.f32.mrb[0].mxu0
        %v2395 = vpop.f32.mrb[0].mxu0
        %2396 = vdwg.mxu0
        %2397 = vmatprep.subr.bf16.mxu0 %v2330
        %2398 = vmatpush1.bf16.msra.mxu0 %v2329
        %2399 = vmatprep.subr.bf16.mxu0 %v2354
        %2400 = vmatpush1.bf16.msra.mxu0 %v2351
        %2401 = vmatprep.subr.bf16.mxu0 0
        %2402 = vmatpush1.bf16.msra.mxu0 0
        %2403 = vmatprep.subr.bf16.mxu0 0
        %2404 = vmatpush1.bf16.msra.mxu0 0
        %2405 = vmatprep.subr.bf16.mxu0 0
        %2406 = vmatpush1.bf16.msra.mxu0 0
        %2407 = vmatprep.subr.bf16.mxu0 0
        %2408 = vmatpush1.bf16.msra.mxu0 0
        %2409 = vmatprep.subr.bf16.mxu0 0
        %2410 = vmatpush1.bf16.msra.mxu0 0
        %2411 = vmatprep.subr.bf16.mxu0 0
        %2412 = vmatpush1.bf16.msra.mxu0 0
        %2413 = vmatprep.subr.bf16.mxu0 0
        %2414 = vmatpush1.bf16.msra.mxu0 0
        %2415 = vmatprep.subr.bf16.mxu0 0
        %2416 = vmatpush1.bf16.msra.mxu0 0
        %2417 = vmatprep.subr.bf16.mxu0 0
        %2418 = vmatpush1.bf16.msra.mxu0 0
        %2419 = vmatprep.subr.bf16.mxu0 0
        %2420 = vmatpush1.bf16.msra.mxu0 0
        %2421 = vmatprep.subr.bf16.mxu0 0
        %2422 = vmatpush1.bf16.msra.mxu0 0
        %2423 = vmatprep.subr.bf16.mxu0 0
        %2424 = vmatpush1.bf16.msra.mxu0 0
        %2425 = vmatprep.subr.bf16.mxu0 0
        %2426 = vmatpush1.bf16.msra.mxu0 0
        %2427 = vmatprep.subr.bf16.mxu0 0
        %2428 = vmatpush1.bf16.msra.mxu0 0
        %2429 = vmatprep.mubr.bf16.mxu0 0
        %2430 = vmatmul.mubr.bf16.gmra.mrb[0].mxu0 %v2341
        %v2431 = vpop.f32.mrb[0].mxu0
        %v2432 = vadd.f32 %v2300, %v2431
        %v2433 = vpop.f32.mrb[0].mxu0
        %v2434 = vadd.f32 %v2304, %v2433
        %v2435 = vpop.f32.mrb[0].mxu0
        %v2436 = vpop.f32.mrb[0].mxu0
        %2437 = vdwg.mxu0
        %v2438 = vmax.f32 %v2391, 0.0
        %v2439 = vmax.f32 %v2393, 0.0
        %v2440 = vmax.f32 %v2432, 0.0
        %v2441 = vmax.f32 %v2434, 0.0
        %v2442 = vpack.c.bf16 %v2438, %v2438
        %v2443 = vpack.c.bf16 %v2439, %v2439
        %v2444 = vpack.c.bf16 %v2440, %v2440
        %v2445 = vpack.c.bf16 %v2441, %v2441
        %v2446 = vld [vmem:[%s7] sm:$0xff]
        %v2447 = vld [vmem:[%s7 + $0x8] sm:$0xff]
        %v2448 = vld [vmem:[%s7 + $0x10] sm:$0xff]
        %v2449 = vld [vmem:[%s7 + $0x18] sm:$0xf]
        %v2450 = vld [vmem:[%s7 + $0x1c] sm:$0xff]
        %v2451 = vld [vmem:[%s7 + $0x24] sm:$0xff]
        %v2452 = vld [vmem:[%s7 + $0x2c] sm:$0xff]
        %v2453 = vld [vmem:[%s7 + $0x34] sm:$0xf]
        %v2454 = vld [vmem:[%s7 + $0x38] sm:$0xff]
        %v2455 = vld [vmem:[%s7 + $0x40] sm:$0xff]
        %v2456 = vld [vmem:[%s7 + $0x48] sm:$0xff]
        %v2457 = vld [vmem:[%s7 + $0x50] sm:$0xf]
        %v2458 = vld [vmem:[%s7 + $0x54] sm:$0xff]
        %v2459 = vld [vmem:[%s7 + $0x5c] sm:$0xff]
        %v2460 = vld [vmem:[%s7 + $0x64] sm:$0xff]
        %v2461 = vld [vmem:[%s7 + $0x6c] sm:$0xf]
        %v2462 = vld [vmem:[%s7 + $0x70] sm:$0xff]
        %v2463 = vld [vmem:[%s7 + $0x78] sm:$0xff]
        %v2464 = vld [vmem:[%s7 + $0x80] sm:$0xff]
        %v2465 = vld [vmem:[%s7 + $0x88] sm:$0xf]
        %v2466 = vld [vmem:[%s7 + $0x8c] sm:$0xff]
        %v2467 = vld [vmem:[%s7 + $0x94] sm:$0xff]
        %v2468 = vld [vmem:[%s7 + $0x9c] sm:$0xff]
        %v2469 = vld [vmem:[%s7 + $0xa4] sm:$0xf]
        %v2470 = vld [vmem:[%s7 + $0xa8] sm:$0xff]
        %v2471 = vld [vmem:[%s7 + $0xb0] sm:$0xff]
        %v2472 = vld [vmem:[%s7 + $0xb8] sm:$0xff]
        %v2473 = vld [vmem:[%s7 + $0xc0] sm:$0xf]
        %v2474 = vld [vmem:[%s7 + $0xc4] sm:$0xff]
        %v2475 = vld [vmem:[%s7 + $0xcc] sm:$0xff]
        %v2476 = vld [vmem:[%s7 + $0xd4] sm:$0xff]
        %v2477 = vld [vmem:[%s7 + $0xdc] sm:$0xf]
        %v2478 = vld [vmem:[%s7 + $0xe0] sm:$0xff]
        %v2479 = vld [vmem:[%s7 + $0xe8] sm:$0xff]
        %v2480 = vld [vmem:[%s7 + $0xf0] sm:$0xff]
        %v2481 = vld [vmem:[%s7 + $0xf8] sm:$0xf]
        %v2482 = vld [vmem:[%s7 + $0xfc] sm:$0xff]
        %v2483 = vld [vmem:[%s7 + $0x104] sm:$0xff]
        %v2484 = vld [vmem:[%s7 + $0x10c] sm:$0xff]
        %v2485 = vld [vmem:[%s7 + $0x114] sm:$0xf]
        %v2486 = vld [vmem:[%s7 + $0x118] sm:$0xff]
        %v2487 = vld [vmem:[%s7 + $0x120] sm:$0xff]
        %v2488 = vld [vmem:[%s7 + $0x128] sm:$0xff]
        %v2489 = vld [vmem:[%s7 + $0x130] sm:$0xf]
        %v2490 = vld [vmem:[%s7 + $0x134] sm:$0xff]
        %v2491 = vld [vmem:[%s7 + $0x13c] sm:$0xff]
        %v2492 = vld [vmem:[%s7 + $0x144] sm:$0xff]
        %v2493 = vld [vmem:[%s7 + $0x14c] sm:$0xf]
        %v2494 = vld [vmem:[%s7 + $0x150] sm:$0xff]
        %v2495 = vld [vmem:[%s7 + $0x158] sm:$0xff]
        %v2496 = vld [vmem:[%s7 + $0x160] sm:$0xff]
        %v2497 = vld [vmem:[%s7 + $0x168] sm:$0xf]
        %v2498 = vld [vmem:[%s7 + $0x16c] sm:$0xff]
        %v2499 = vld [vmem:[%s7 + $0x174] sm:$0xff]
        %v2500 = vld [vmem:[%s7 + $0x17c] sm:$0xff]
        %v2501 = vld [vmem:[%s7 + $0x184] sm:$0xf]
        %v2502 = vld [vmem:[%s7 + $0x188] sm:$0xff]
        %v2503 = vld [vmem:[%s7 + $0x190] sm:$0xff]
        %v2504 = vld [vmem:[%s7 + $0x198] sm:$0xff]
        %v2505 = vld [vmem:[%s7 + $0x1a0] sm:$0xf]
        %v2506 = vld [vmem:[%s7 + $0x1a4] sm:$0xff]
        %v2507 = vld [vmem:[%s7 + $0x1ac] sm:$0xff]
        %v2508 = vld [vmem:[%s7 + $0x1b4] sm:$0xff]
        %v2509 = vld [vmem:[%s7 + $0x1bc] sm:$0xf]
        %v2510 = vld [vmem:[%s7 + $0x1c0] sm:$0xff]
        %v2511 = vld [vmem:[%s7 + $0x1c8] sm:$0xff]
        %v2512 = vld [vmem:[%s7 + $0x1d0] sm:$0xff]
        %v2513 = vld [vmem:[%s7 + $0x1d8] sm:$0xf]
        %v2514 = vld [vmem:[%s7 + $0x1dc] sm:$0xff]
        %v2515 = vld [vmem:[%s7 + $0x1e4] sm:$0xff]
        %v2516 = vld [vmem:[%s7 + $0x1ec] sm:$0xff]
        %v2517 = vld [vmem:[%s7 + $0x1f4] sm:$0xf]
        %v2518 = vld [vmem:[%s7 + $0x1f8] sm:$0xff]
        %v2519 = vld [vmem:[%s7 + $0x200] sm:$0xff]
        %v2520 = vld [vmem:[%s7 + $0x208] sm:$0xff]
        %v2521 = vld [vmem:[%s7 + $0x210] sm:$0xf]
        %v2522 = vld [vmem:[%s7 + $0x214] sm:$0xff]
        %v2523 = vld [vmem:[%s7 + $0x21c] sm:$0xff]
        %v2524 = vld [vmem:[%s7 + $0x224] sm:$0xff]
        %v2525 = vld [vmem:[%s7 + $0x22c] sm:$0xf]
        %v2526 = vld [vmem:[%s7 + $0x230] sm:$0xff]
        %v2527 = vld [vmem:[%s7 + $0x238] sm:$0xff]
        %v2528 = vld [vmem:[%s7 + $0x240] sm:$0xff]
        %v2529 = vld [vmem:[%s7 + $0x248] sm:$0xf]
        %v2530 = vld [vmem:[%s7 + $0x24c] sm:$0xff]
        %v2531 = vld [vmem:[%s7 + $0x254] sm:$0xff]
        %v2532 = vld [vmem:[%s7 + $0x25c] sm:$0xff]
        %v2533 = vld [vmem:[%s7 + $0x264] sm:$0xf]
        %v2534 = vld [vmem:[%s7 + $0x268] sm:$0xff]
        %v2535 = vld [vmem:[%s7 + $0x270] sm:$0xff]
        %v2536 = vld [vmem:[%s7 + $0x278] sm:$0xff]
        %v2537 = vld [vmem:[%s7 + $0x280] sm:$0xf]
        %v2538 = vld [vmem:[%s7 + $0x284] sm:$0xff]
        %v2539 = vld [vmem:[%s7 + $0x28c] sm:$0xff]
        %v2540 = vld [vmem:[%s7 + $0x294] sm:$0xff]
        %v2541 = vld [vmem:[%s7 + $0x29c] sm:$0xf]
        %v2542 = vld [vmem:[%s7 + $0x2a0] sm:$0xff]
        %v2543 = vld [vmem:[%s7 + $0x2a8] sm:$0xff]
        %v2544 = vld [vmem:[%s7 + $0x2b0] sm:$0xff]
        %v2545 = vld [vmem:[%s7 + $0x2b8] sm:$0xf]
        %v2546 = vld [vmem:[%s7 + $0x2bc] sm:$0xff]
        %v2547 = vld [vmem:[%s7 + $0x2c4] sm:$0xff]
        %v2548 = vld [vmem:[%s7 + $0x2cc] sm:$0xff]
        %v2549 = vld [vmem:[%s7 + $0x2d4] sm:$0xf]
        %v2550 = vld [vmem:[%s7 + $0x2d8] sm:$0xff]
        %v2551 = vld [vmem:[%s7 + $0x2e0] sm:$0xff]
        %v2552 = vld [vmem:[%s7 + $0x2e8] sm:$0xff]
        %v2553 = vld [vmem:[%s7 + $0x2f0] sm:$0xf]
        %v2554 = vld [vmem:[%s7 + $0x2f4] sm:$0xff]
        %v2555 = vld [vmem:[%s7 + $0x2fc] sm:$0xff]
        %v2556 = vld [vmem:[%s7 + $0x304] sm:$0xff]
        %v2557 = vld [vmem:[%s7 + $0x30c] sm:$0xf]
        %v2558 = vld [vmem:[%s7 + $0x310] sm:$0xff]
        %v2559 = vld [vmem:[%s7 + $0x318] sm:$0xff]
        %v2560 = vld [vmem:[%s7 + $0x320] sm:$0xff]
        %v2561 = vld [vmem:[%s7 + $0x328] sm:$0xf]
        %v2562 = vld [vmem:[%s7 + $0x32c] sm:$0xff]
        %v2563 = vld [vmem:[%s7 + $0x334] sm:$0xff]
        %v2564 = vld [vmem:[%s7 + $0x33c] sm:$0xff]
        %v2565 = vld [vmem:[%s7 + $0x344] sm:$0xf]
        %v2566 = vld [vmem:[%s7 + $0x348] sm:$0xff]
        %v2567 = vld [vmem:[%s7 + $0x350] sm:$0xff]
        %v2568 = vld [vmem:[%s7 + $0x358] sm:$0xff]
        %v2569 = vld [vmem:[%s7 + $0x360] sm:$0xf]
        %v2570 = vld [vmem:[%s7 + $0x364] sm:$0xff]
        %v2571 = vld [vmem:[%s7 + $0x36c] sm:$0xff]
        %v2572 = vld [vmem:[%s7 + $0x374] sm:$0xff]
        %v2573 = vld [vmem:[%s7 + $0x37c] sm:$0xf]
        %v2574 = vld [vmem:[%s7 + $0x380] sm:$0xff]
        %v2575 = vld [vmem:[%s7 + $0x388] sm:$0xff]
        %v2576 = vld [vmem:[%s7 + $0x390] sm:$0xff]
        %v2577 = vld [vmem:[%s7 + $0x398] sm:$0xf]
        %v2578 = vld [vmem:[%s7 + $0x39c] sm:$0xff]
        %v2579 = vld [vmem:[%s7 + $0x3a4] sm:$0xff]
        %v2580 = vld [vmem:[%s7 + $0x3ac] sm:$0xff]
        %v2581 = vld [vmem:[%s7 + $0x3b4] sm:$0xf]
        %v2582 = vld [vmem:[%s7 + $0x3b8] sm:$0xff]
        %v2583 = vld [vmem:[%s7 + $0x3c0] sm:$0xff]
        %v2584 = vld [vmem:[%s7 + $0x3c8] sm:$0xff]
        %v2585 = vld [vmem:[%s7 + $0x3d0] sm:$0xf]
        %v2586 = vld [vmem:[%s7 + $0x3d4] sm:$0xff]
        %v2587 = vld [vmem:[%s7 + $0x3dc] sm:$0xff]
        %v2588 = vld [vmem:[%s7 + $0x3e4] sm:$0xff]
        %v2589 = vld [vmem:[%s7 + $0x3ec] sm:$0xf]
        %v2590 = vld [vmem:[%s7 + $0x3f0] sm:$0xff]
        %v2591 = vld [vmem:[%s7 + $0x3f8] sm:$0xff]
        %v2592 = vld [vmem:[%s7 + $0x400] sm:$0xff]
        %v2593 = vld [vmem:[%s7 + $0x408] sm:$0xf]
        %v2594 = vld [vmem:[%s7 + $0x40c] sm:$0xff]
        %v2595 = vld [vmem:[%s7 + $0x414] sm:$0xff]
        %v2596 = vld [vmem:[%s7 + $0x41c] sm:$0xff]
        %v2597 = vld [vmem:[%s7 + $0x424] sm:$0xf]
        %v2598 = vld [vmem:[%s7 + $0x428] sm:$0xff]
        %v2599 = vld [vmem:[%s7 + $0x430] sm:$0xff]
        %v2600 = vld [vmem:[%s7 + $0x438] sm:$0xff]
        %v2601 = vld [vmem:[%s7 + $0x440] sm:$0xf]
        %v2602 = vld [vmem:[%s7 + $0x444] sm:$0xff]
        %v2603 = vld [vmem:[%s7 + $0x44c] sm:$0xff]
        %v2604 = vld [vmem:[%s7 + $0x454] sm:$0xff]
        %v2605 = vld [vmem:[%s7 + $0x45c] sm:$0xf]
        %v2606 = vld [vmem:[%s7 + $0x460] sm:$0xff]
        %v2607 = vld [vmem:[%s7 + $0x468] sm:$0xff]
        %v2608 = vld [vmem:[%s7 + $0x470] sm:$0xff]
        %v2609 = vld [vmem:[%s7 + $0x478] sm:$0xf]
        %v2610 = vld [vmem:[%s7 + $0x47c] sm:$0xff]
        %v2611 = vld [vmem:[%s7 + $0x484] sm:$0xff]
        %v2612 = vld [vmem:[%s7 + $0x48c] sm:$0xff]
        %v2613 = vld [vmem:[%s7 + $0x494] sm:$0xf]
        %v2614 = vld [vmem:[%s7 + $0x498] sm:$0xff]
        %v2615 = vld [vmem:[%s7 + $0x4a0] sm:$0xff]
        %v2616 = vld [vmem:[%s7 + $0x4a8] sm:$0xff]
        %v2617 = vld [vmem:[%s7 + $0x4b0] sm:$0xf]
        %v2618 = vld [vmem:[%s7 + $0x4b4] sm:$0xff]
        %v2619 = vld [vmem:[%s7 + $0x4bc] sm:$0xff]
        %v2620 = vld [vmem:[%s7 + $0x4c4] sm:$0xff]
        %v2621 = vld [vmem:[%s7 + $0x4cc] sm:$0xf]
        %v2622 = vld [vmem:[%s7 + $0x4d0] sm:$0xff]
        %v2623 = vld [vmem:[%s7 + $0x4d8] sm:$0xff]
        %v2624 = vld [vmem:[%s7 + $0x4e0] sm:$0xff]
        %v2625 = vld [vmem:[%s7 + $0x4e8] sm:$0xf]
        %v2626 = vld [vmem:[%s7 + $0x4ec] sm:$0xff]
        %v2627 = vld [vmem:[%s7 + $0x4f4] sm:$0xff]
        %v2628 = vld [vmem:[%s7 + $0x4fc] sm:$0xff]
        %v2629 = vld [vmem:[%s7 + $0x504] sm:$0xf]
        %v2630 = vld [vmem:[%s7 + $0x508] sm:$0xff]
        %v2631 = vld [vmem:[%s7 + $0x510] sm:$0xff]
        %v2632 = vld [vmem:[%s7 + $0x518] sm:$0xff]
        %v2633 = vld [vmem:[%s7 + $0x520] sm:$0xf]
        %v2634 = vld [vmem:[%s7 + $0x524] sm:$0xff]
        %v2635 = vld [vmem:[%s7 + $0x52c] sm:$0xff]
        %v2636 = vld [vmem:[%s7 + $0x534] sm:$0xff]
        %v2637 = vld [vmem:[%s7 + $0x53c] sm:$0xf]
        %v2638 = vld [vmem:[%s7 + $0x540] sm:$0xff]
        %v2639 = vld [vmem:[%s7 + $0x548] sm:$0xff]
        %v2640 = vld [vmem:[%s7 + $0x550] sm:$0xff]
        %v2641 = vld [vmem:[%s7 + $0x558] sm:$0xf]
        %v2642 = vld [vmem:[%s7 + $0x55c] sm:$0xff]
        %v2643 = vld [vmem:[%s7 + $0x564] sm:$0xff]
        %v2644 = vld [vmem:[%s7 + $0x56c] sm:$0xff]
        %v2645 = vld [vmem:[%s7 + $0x574] sm:$0xf]
        %v2646 = vld [vmem:[%s8] sm:$0x7f]
        %v2648 = vlaneseq
        %v2649 = vshrl.u32 %v2648, 7
        %v2650 = vsub.s32 0, %v2649
        %v2651 = vrot.slane %v2646, %v2650
        %v2652 = vlaneseq
        %v2653 = vshrl.u32 %v2652, 7
        %v2654 = vsub.s32 1, %v2653
        %v2655 = vrot.slane %v2646, %v2654
        %v2656 = vlaneseq
        %v2657 = vshrl.u32 %v2656, 7
        %v2658 = vsub.s32 2, %v2657
        %v2659 = vrot.slane %v2646, %v2658
        %v2660 = vlaneseq
        %v2661 = vshrl.u32 %v2660, 7
        %v2662 = vsub.s32 3, %v2661
        %v2663 = vrot.slane %v2646, %v2662
        %v2664 = vlaneseq
        %v2665 = vshrl.u32 %v2664, 7
        %v2666 = vsub.s32 4, %v2665
        %v2667 = vrot.slane %v2646, %v2666
        %v2668 = vlaneseq
        %v2669 = vshrl.u32 %v2668, 7
        %v2670 = vsub.s32 5, %v2669
        %v2671 = vrot.slane %v2646, %v2670
        %v2672 = vlaneseq
        %v2673 = vshrl.u32 %v2672, 7
        %v2674 = vsub.s32 6, %v2673
        %v2675 = vrot.slane %v2646, %v2674
        %v2883 = vunpack.c.l.b16 %v2446
        %v2884 = vunpack.c.h.b16 %v2446
        %v2885 = vunpack.c.l.b16 %v2447
        %v2886 = vunpack.c.h.b16 %v2447
        %v2887 = vunpack.c.l.b16 %v2448
        %v2888 = vunpack.c.h.b16 %v2448
        %v2889 = vunpack.c.l.b16 %v2449
        %v2890 = vunpack.c.l.b16 %v2450
        %v2891 = vunpack.c.h.b16 %v2450
        %v2892 = vunpack.c.l.b16 %v2451
        %v2893 = vunpack.c.h.b16 %v2451
        %v2894 = vunpack.c.l.b16 %v2452
        %v2895 = vunpack.c.h.b16 %v2452
        %v2896 = vunpack.c.l.b16 %v2453
        %v2897 = vunpack.c.l.b16 %v2454
        %v2898 = vunpack.c.h.b16 %v2454
        %v2899 = vunpack.c.l.b16 %v2455
        %v2900 = vunpack.c.h.b16 %v2455
        %v2901 = vunpack.c.l.b16 %v2456
        %v2902 = vunpack.c.h.b16 %v2456
        %v2903 = vunpack.c.l.b16 %v2457
        %v2904 = vunpack.c.l.b16 %v2458
        %v2905 = vunpack.c.h.b16 %v2458
        %v2906 = vunpack.c.l.b16 %v2459
        %v2907 = vunpack.c.h.b16 %v2459
        %v2908 = vunpack.c.l.b16 %v2460
        %v2909 = vunpack.c.h.b16 %v2460
        %v2910 = vunpack.c.l.b16 %v2461
        %v2911 = vunpack.c.l.b16 %v2462
        %v2912 = vunpack.c.h.b16 %v2462
        %v2913 = vunpack.c.l.b16 %v2463
        %v2914 = vunpack.c.h.b16 %v2463
        %v2915 = vunpack.c.l.b16 %v2464
        %v2916 = vunpack.c.h.b16 %v2464
        %v2917 = vunpack.c.l.b16 %v2465
        %v2918 = vunpack.c.l.b16 %v2466
        %v2919 = vunpack.c.h.b16 %v2466
        %v2920 = vunpack.c.l.b16 %v2467
        %v2921 = vunpack.c.h.b16 %v2467
        %v2922 = vunpack.c.l.b16 %v2468
        %v2923 = vunpack.c.h.b16 %v2468
        %v2924 = vunpack.c.l.b16 %v2469
        %v2925 = vunpack.c.l.b16 %v2470
        %v2926 = vunpack.c.h.b16 %v2470
        %v2927 = vunpack.c.l.b16 %v2471
        %v2928 = vunpack.c.h.b16 %v2471
        %v2929 = vunpack.c.l.b16 %v2472
        %v2930 = vunpack.c.h.b16 %v2472
        %v2931 = vunpack.c.l.b16 %v2473
        %v2932 = vunpack.c.l.b16 %v2474
        %v2933 = vunpack.c.h.b16 %v2474
        %v2934 = vunpack.c.l.b16 %v2475
        %v2935 = vunpack.c.h.b16 %v2475
        %v2936 = vunpack.c.l.b16 %v2476
        %v2937 = vunpack.c.h.b16 %v2476
        %v2938 = vunpack.c.l.b16 %v2477
        %v2939 = vunpack.c.l.b16 %v2478
        %v2940 = vunpack.c.h.b16 %v2478
        %v2941 = vunpack.c.l.b16 %v2479
        %v2942 = vunpack.c.h.b16 %v2479
        %v2943 = vunpack.c.l.b16 %v2480
        %v2944 = vunpack.c.h.b16 %v2480
        %v2945 = vunpack.c.l.b16 %v2481
        %v2946 = vunpack.c.l.b16 %v2482
        %v2947 = vunpack.c.h.b16 %v2482
        %v2948 = vunpack.c.l.b16 %v2483
        %v2949 = vunpack.c.h.b16 %v2483
        %v2950 = vunpack.c.l.b16 %v2484
        %v2951 = vunpack.c.h.b16 %v2484
        %v2952 = vunpack.c.l.b16 %v2485
        %v2953 = vunpack.c.l.b16 %v2486
        %v2954 = vunpack.c.h.b16 %v2486
        %v2955 = vunpack.c.l.b16 %v2487
        %v2956 = vunpack.c.h.b16 %v2487
        %v2957 = vunpack.c.l.b16 %v2488
        %v2958 = vunpack.c.h.b16 %v2488
        %v2959 = vunpack.c.l.b16 %v2489
        %v2960 = vunpack.c.l.b16 %v2490
        %v2961 = vunpack.c.h.b16 %v2490
        %v2962 = vunpack.c.l.b16 %v2491
        %v2963 = vunpack.c.h.b16 %v2491
        %v2964 = vunpack.c.l.b16 %v2492
        %v2965 = vunpack.c.h.b16 %v2492
        %v2966 = vunpack.c.l.b16 %v2493
        %v2967 = vunpack.c.l.b16 %v2494
        %v2968 = vunpack.c.h.b16 %v2494
        %v2969 = vunpack.c.l.b16 %v2495
        %v2970 = vunpack.c.h.b16 %v2495
        %v2971 = vunpack.c.l.b16 %v2496
        %v2972 = vunpack.c.h.b16 %v2496
        %v2973 = vunpack.c.l.b16 %v2497
        %v2974 = vunpack.c.l.b16 %v2498
        %v2975 = vunpack.c.h.b16 %v2498
        %v2976 = vunpack.c.l.b16 %v2499
        %v2977 = vunpack.c.h.b16 %v2499
        %v2978 = vunpack.c.l.b16 %v2500
        %v2979 = vunpack.c.h.b16 %v2500
        %v2980 = vunpack.c.l.b16 %v2501
        %v2981 = vunpack.c.l.b16 %v2502
        %v2982 = vunpack.c.h.b16 %v2502
        %v2983 = vunpack.c.l.b16 %v2503
        %v2984 = vunpack.c.h.b16 %v2503
        %v2985 = vunpack.c.l.b16 %v2504
        %v2986 = vunpack.c.h.b16 %v2504
        %v2987 = vunpack.c.l.b16 %v2505
        %v2988 = vunpack.c.l.b16 %v2506
        %v2989 = vunpack.c.h.b16 %v2506
        %v2990 = vunpack.c.l.b16 %v2507
        %v2991 = vunpack.c.h.b16 %v2507
        %v2992 = vunpack.c.l.b16 %v2508
        %v2993 = vunpack.c.h.b16 %v2508
        %v2994 = vunpack.c.l.b16 %v2509
        %v2995 = vunpack.c.l.b16 %v2510
        %v2996 = vunpack.c.h.b16 %v2510
        %v2997 = vunpack.c.l.b16 %v2511
        %v2998 = vunpack.c.h.b16 %v2511
        %v2999 = vunpack.c.l.b16 %v2512
        %v3000 = vunpack.c.h.b16 %v2512
        %v3001 = vunpack.c.l.b16 %v2513
        %v3002 = vunpack.c.l.b16 %v2514
        %v3003 = vunpack.c.h.b16 %v2514
        %v3004 = vunpack.c.l.b16 %v2515
        %v3005 = vunpack.c.h.b16 %v2515
        %v3006 = vunpack.c.l.b16 %v2516
        %v3007 = vunpack.c.h.b16 %v2516
        %v3008 = vunpack.c.l.b16 %v2517
        %v3009 = vunpack.c.l.b16 %v2518
        %v3010 = vunpack.c.h.b16 %v2518
        %v3011 = vunpack.c.l.b16 %v2519
        %v3012 = vunpack.c.h.b16 %v2519
        %v3013 = vunpack.c.l.b16 %v2520
        %v3014 = vunpack.c.h.b16 %v2520
        %v3015 = vunpack.c.l.b16 %v2521
        %v3016 = vunpack.c.l.b16 %v2522
        %v3017 = vunpack.c.h.b16 %v2522
        %v3018 = vunpack.c.l.b16 %v2523
        %v3019 = vunpack.c.h.b16 %v2523
        %v3020 = vunpack.c.l.b16 %v2524
        %v3021 = vunpack.c.h.b16 %v2524
        %v3022 = vunpack.c.l.b16 %v2525
        %v3023 = vunpack.c.l.b16 %v2526
        %v3024 = vunpack.c.h.b16 %v2526
        %v3025 = vunpack.c.l.b16 %v2527
        %v3026 = vunpack.c.h.b16 %v2527
        %v3027 = vunpack.c.l.b16 %v2528
        %v3028 = vunpack.c.h.b16 %v2528
        %v3029 = vunpack.c.l.b16 %v2529
        %v3030 = vunpack.c.l.b16 %v2530
        %v3031 = vunpack.c.h.b16 %v2530
        %v3032 = vunpack.c.l.b16 %v2531
        %v3033 = vunpack.c.h.b16 %v2531
        %v3034 = vunpack.c.l.b16 %v2532
        %v3035 = vunpack.c.h.b16 %v2532
        %v3036 = vunpack.c.l.b16 %v2533
        %v3037 = vunpack.c.l.b16 %v2534
        %v3038 = vunpack.c.h.b16 %v2534
        %v3039 = vunpack.c.l.b16 %v2535
        %v3040 = vunpack.c.h.b16 %v2535
        %v3041 = vunpack.c.l.b16 %v2536
        %v3042 = vunpack.c.h.b16 %v2536
        %v3043 = vunpack.c.l.b16 %v2537
        %v3044 = vunpack.c.l.b16 %v2538
        %v3045 = vunpack.c.h.b16 %v2538
        %v3046 = vunpack.c.l.b16 %v2539
        %v3047 = vunpack.c.h.b16 %v2539
        %v3048 = vunpack.c.l.b16 %v2540
        %v3049 = vunpack.c.h.b16 %v2540
        %v3050 = vunpack.c.l.b16 %v2541
        %v3051 = vunpack.c.l.b16 %v2542
        %v3052 = vunpack.c.h.b16 %v2542
        %v3053 = vunpack.c.l.b16 %v2543
        %v3054 = vunpack.c.h.b16 %v2543
        %v3055 = vunpack.c.l.b16 %v2544
        %v3056 = vunpack.c.h.b16 %v2544
        %v3057 = vunpack.c.l.b16 %v2545
        %v3058 = vunpack.c.l.b16 %v2546
        %v3059 = vunpack.c.h.b16 %v2546
        %v3060 = vunpack.c.l.b16 %v2547
        %v3061 = vunpack.c.h.b16 %v2547
        %v3062 = vunpack.c.l.b16 %v2548
        %v3063 = vunpack.c.h.b16 %v2548
        %v3064 = vunpack.c.l.b16 %v2549
        %v3065 = vunpack.c.l.b16 %v2550
        %v3066 = vunpack.c.h.b16 %v2550
        %v3067 = vunpack.c.l.b16 %v2551
        %v3068 = vunpack.c.h.b16 %v2551
        %v3069 = vunpack.c.l.b16 %v2552
        %v3070 = vunpack.c.h.b16 %v2552
        %v3071 = vunpack.c.l.b16 %v2553
        %v3072 = vunpack.c.l.b16 %v2554
        %v3073 = vunpack.c.h.b16 %v2554
        %v3074 = vunpack.c.l.b16 %v2555
        %v3075 = vunpack.c.h.b16 %v2555
        %v3076 = vunpack.c.l.b16 %v2556
        %v3077 = vunpack.c.h.b16 %v2556
        %v3078 = vunpack.c.l.b16 %v2557
        %v3079 = vunpack.c.l.b16 %v2558
        %v3080 = vunpack.c.h.b16 %v2558
        %v3081 = vunpack.c.l.b16 %v2559
        %v3082 = vunpack.c.h.b16 %v2559
        %v3083 = vunpack.c.l.b16 %v2560
        %v3084 = vunpack.c.h.b16 %v2560
        %v3085 = vunpack.c.l.b16 %v2561
        %v3086 = vunpack.c.l.b16 %v2562
        %v3087 = vunpack.c.h.b16 %v2562
        %v3088 = vunpack.c.l.b16 %v2563
        %v3089 = vunpack.c.h.b16 %v2563
        %v3090 = vunpack.c.l.b16 %v2564
        %v3091 = vunpack.c.h.b16 %v2564
        %v3092 = vunpack.c.l.b16 %v2565
        %v3093 = vunpack.c.l.b16 %v2566
        %v3094 = vunpack.c.h.b16 %v2566
        %v3095 = vunpack.c.l.b16 %v2567
        %v3096 = vunpack.c.h.b16 %v2567
        %v3097 = vunpack.c.l.b16 %v2568
        %v3098 = vunpack.c.h.b16 %v2568
        %v3099 = vunpack.c.l.b16 %v2569
        %v3100 = vunpack.c.l.b16 %v2570
        %v3101 = vunpack.c.h.b16 %v2570
        %v3102 = vunpack.c.l.b16 %v2571
        %v3103 = vunpack.c.h.b16 %v2571
        %v3104 = vunpack.c.l.b16 %v2572
        %v3105 = vunpack.c.h.b16 %v2572
        %v3106 = vunpack.c.l.b16 %v2573
        %v3107 = vunpack.c.l.b16 %v2574
        %v3108 = vunpack.c.h.b16 %v2574
        %v3109 = vunpack.c.l.b16 %v2575
        %v3110 = vunpack.c.h.b16 %v2575
        %v3111 = vunpack.c.l.b16 %v2576
        %v3112 = vunpack.c.h.b16 %v2576
        %v3113 = vunpack.c.l.b16 %v2577
        %v3114 = vunpack.c.l.b16 %v2578
        %v3115 = vunpack.c.h.b16 %v2578
        %v3116 = vunpack.c.l.b16 %v2579
        %v3117 = vunpack.c.h.b16 %v2579
        %v3118 = vunpack.c.l.b16 %v2580
        %v3119 = vunpack.c.h.b16 %v2580
        %v3120 = vunpack.c.l.b16 %v2581
        %v3121 = vunpack.c.l.b16 %v2582
        %v3122 = vunpack.c.h.b16 %v2582
        %v3123 = vunpack.c.l.b16 %v2583
        %v3124 = vunpack.c.h.b16 %v2583
        %v3125 = vunpack.c.l.b16 %v2584
        %v3126 = vunpack.c.h.b16 %v2584
        %v3127 = vunpack.c.l.b16 %v2585
        %v3128 = vunpack.c.l.b16 %v2586
        %v3129 = vunpack.c.h.b16 %v2586
        %v3130 = vunpack.c.l.b16 %v2587
        %v3131 = vunpack.c.h.b16 %v2587
        %v3132 = vunpack.c.l.b16 %v2588
        %v3133 = vunpack.c.h.b16 %v2588
        %v3134 = vunpack.c.l.b16 %v2589
        %v3135 = vunpack.c.l.b16 %v2590
        %v3136 = vunpack.c.h.b16 %v2590
        %v3137 = vunpack.c.l.b16 %v2591
        %v3138 = vunpack.c.h.b16 %v2591
        %v3139 = vunpack.c.l.b16 %v2592
        %v3140 = vunpack.c.h.b16 %v2592
        %v3141 = vunpack.c.l.b16 %v2593
        %v3142 = vunpack.c.l.b16 %v2594
        %v3143 = vunpack.c.h.b16 %v2594
        %v3144 = vunpack.c.l.b16 %v2595
        %v3145 = vunpack.c.h.b16 %v2595
        %v3146 = vunpack.c.l.b16 %v2596
        %v3147 = vunpack.c.h.b16 %v2596
        %v3148 = vunpack.c.l.b16 %v2597
        %v3149 = vunpack.c.l.b16 %v2598
        %v3150 = vunpack.c.h.b16 %v2598
        %v3151 = vunpack.c.l.b16 %v2599
        %v3152 = vunpack.c.h.b16 %v2599
        %v3153 = vunpack.c.l.b16 %v2600
        %v3154 = vunpack.c.h.b16 %v2600
        %v3155 = vunpack.c.l.b16 %v2601
        %v3156 = vunpack.c.l.b16 %v2602
        %v3157 = vunpack.c.h.b16 %v2602
        %v3158 = vunpack.c.l.b16 %v2603
        %v3159 = vunpack.c.h.b16 %v2603
        %v3160 = vunpack.c.l.b16 %v2604
        %v3161 = vunpack.c.h.b16 %v2604
        %v3162 = vunpack.c.l.b16 %v2605
        %v3163 = vunpack.c.l.b16 %v2606
        %v3164 = vunpack.c.h.b16 %v2606
        %v3165 = vunpack.c.l.b16 %v2607
        %v3166 = vunpack.c.h.b16 %v2607
        %v3167 = vunpack.c.l.b16 %v2608
        %v3168 = vunpack.c.h.b16 %v2608
        %v3169 = vunpack.c.l.b16 %v2609
        %v3170 = vunpack.c.l.b16 %v2610
        %v3171 = vunpack.c.h.b16 %v2610
        %v3172 = vunpack.c.l.b16 %v2611
        %v3173 = vunpack.c.h.b16 %v2611
        %v3174 = vunpack.c.l.b16 %v2612
        %v3175 = vunpack.c.h.b16 %v2612
        %v3176 = vunpack.c.l.b16 %v2613
        %v3177 = vunpack.c.l.b16 %v2614
        %v3178 = vunpack.c.h.b16 %v2614
        %v3179 = vunpack.c.l.b16 %v2615
        %v3180 = vunpack.c.h.b16 %v2615
        %v3181 = vunpack.c.l.b16 %v2616
        %v3182 = vunpack.c.h.b16 %v2616
        %v3183 = vunpack.c.l.b16 %v2617
        %v3184 = vunpack.c.l.b16 %v2618
        %v3185 = vunpack.c.h.b16 %v2618
        %v3186 = vunpack.c.l.b16 %v2619
        %v3187 = vunpack.c.h.b16 %v2619
        %v3188 = vunpack.c.l.b16 %v2620
        %v3189 = vunpack.c.h.b16 %v2620
        %v3190 = vunpack.c.l.b16 %v2621
        %v3191 = vunpack.c.l.b16 %v2622
        %v3192 = vunpack.c.h.b16 %v2622
        %v3193 = vunpack.c.l.b16 %v2623
        %v3194 = vunpack.c.h.b16 %v2623
        %v3195 = vunpack.c.l.b16 %v2624
        %v3196 = vunpack.c.h.b16 %v2624
        %v3197 = vunpack.c.l.b16 %v2625
        %v3198 = vunpack.c.l.b16 %v2626
        %v3199 = vunpack.c.h.b16 %v2626
        %v3200 = vunpack.c.l.b16 %v2627
        %v3201 = vunpack.c.h.b16 %v2627
        %v3202 = vunpack.c.l.b16 %v2628
        %v3203 = vunpack.c.h.b16 %v2628
        %v3204 = vunpack.c.l.b16 %v2629
        %v3205 = vunpack.c.l.b16 %v2630
        %v3206 = vunpack.c.h.b16 %v2630
        %v3207 = vunpack.c.l.b16 %v2631
        %v3208 = vunpack.c.h.b16 %v2631
        %v3209 = vunpack.c.l.b16 %v2632
        %v3210 = vunpack.c.h.b16 %v2632
        %v3211 = vunpack.c.l.b16 %v2633
        %v3212 = vunpack.c.l.b16 %v2634
        %v3213 = vunpack.c.h.b16 %v2634
        %v3214 = vunpack.c.l.b16 %v2635
        %v3215 = vunpack.c.h.b16 %v2635
        %v3216 = vunpack.c.l.b16 %v2636
        %v3217 = vunpack.c.h.b16 %v2636
        %v3218 = vunpack.c.l.b16 %v2637
        %v3219 = vunpack.c.l.b16 %v2638
        %v3220 = vunpack.c.h.b16 %v2638
        %v3221 = vunpack.c.l.b16 %v2639
        %v3222 = vunpack.c.h.b16 %v2639
        %v3223 = vunpack.c.l.b16 %v2640
        %v3224 = vunpack.c.h.b16 %v2640
        %v3225 = vunpack.c.l.b16 %v2641
        %v3226 = vunpack.c.l.b16 %v2642
        %v3227 = vunpack.c.h.b16 %v2642
        %v3228 = vunpack.c.l.b16 %v2643
        %v3229 = vunpack.c.h.b16 %v2643
        %v3230 = vunpack.c.l.b16 %v2644
        %v3231 = vunpack.c.h.b16 %v2644
        %v3232 = vunpack.c.l.b16 %v2645
        %v3233 = vpack.c.b16 %v2890, %v2883
        %v3234 = vpack.c.b16 %v2891, %v2884
        %v3235 = vpack.c.b16 %v2892, %v2885
        %v3236 = vpack.c.b16 %v2893, %v2886
        %v3237 = vpack.c.b16 %v2894, %v2887
        %v3238 = vpack.c.b16 %v2895, %v2888
        %v3239 = vpack.c.b16 %v2896, %v2889
        %v3240 = vpack.c.b16 %v2904, %v2897
        %v3241 = vpack.c.b16 %v2905, %v2898
        %v3242 = vpack.c.b16 %v2906, %v2899
        %v3243 = vpack.c.b16 %v2907, %v2900
        %v3244 = vpack.c.b16 %v2908, %v2901
        %v3245 = vpack.c.b16 %v2909, %v2902
        %v3246 = vpack.c.b16 %v2910, %v2903
        %v3247 = vpack.c.b16 %v2918, %v2911
        %v3248 = vpack.c.b16 %v2919, %v2912
        %v3249 = vpack.c.b16 %v2920, %v2913
        %v3250 = vpack.c.b16 %v2921, %v2914
        %v3251 = vpack.c.b16 %v2922, %v2915
        %v3252 = vpack.c.b16 %v2923, %v2916
        %v3253 = vpack.c.b16 %v2924, %v2917
        %v3254 = vpack.c.b16 %v2932, %v2925
        %v3255 = vpack.c.b16 %v2933, %v2926
        %v3256 = vpack.c.b16 %v2934, %v2927
        %v3257 = vpack.c.b16 %v2935, %v2928
        %v3258 = vpack.c.b16 %v2936, %v2929
        %v3259 = vpack.c.b16 %v2937, %v2930
        %v3260 = vpack.c.b16 %v2938, %v2931
        %v3261 = vpack.c.b16 %v2946, %v2939
        %v3262 = vpack.c.b16 %v2947, %v2940
        %v3263 = vpack.c.b16 %v2948, %v2941
        %v3264 = vpack.c.b16 %v2949, %v2942
        %v3265 = vpack.c.b16 %v2950, %v2943
        %v3266 = vpack.c.b16 %v2951, %v2944
        %v3267 = vpack.c.b16 %v2952, %v2945
        %v3268 = vpack.c.b16 %v2960, %v2953
        %v3269 = vpack.c.b16 %v2961, %v2954
        %v3270 = vpack.c.b16 %v2962, %v2955
        %v3271 = vpack.c.b16 %v2963, %v2956
        %v3272 = vpack.c.b16 %v2964, %v2957
        %v3273 = vpack.c.b16 %v2965, %v2958
        %v3274 = vpack.c.b16 %v2966, %v2959
        %v3275 = vpack.c.b16 %v2974, %v2967
        %v3276 = vpack.c.b16 %v2975, %v2968
        %v3277 = vpack.c.b16 %v2976, %v2969
        %v3278 = vpack.c.b16 %v2977, %v2970
        %v3279 = vpack.c.b16 %v2978, %v2971
        %v3280 = vpack.c.b16 %v2979, %v2972
        %v3281 = vpack.c.b16 %v2980, %v2973
        %v3282 = vpack.c.b16 %v2988, %v2981
        %v3283 = vpack.c.b16 %v2989, %v2982
        %v3284 = vpack.c.b16 %v2990, %v2983
        %v3285 = vpack.c.b16 %v2991, %v2984
        %v3286 = vpack.c.b16 %v2992, %v2985
        %v3287 = vpack.c.b16 %v2993, %v2986
        %v3288 = vpack.c.b16 %v2994, %v2987
        %v3289 = vpack.c.b16 %v3002, %v2995
        %v3290 = vpack.c.b16 %v3003, %v2996
        %v3291 = vpack.c.b16 %v3004, %v2997
        %v3292 = vpack.c.b16 %v3005, %v2998
        %v3293 = vpack.c.b16 %v3006, %v2999
        %v3294 = vpack.c.b16 %v3007, %v3000
        %v3295 = vpack.c.b16 %v3008, %v3001
        %v3296 = vpack.c.b16 %v3016, %v3009
        %v3297 = vpack.c.b16 %v3017, %v3010
        %v3298 = vpack.c.b16 %v3018, %v3011
        %v3299 = vpack.c.b16 %v3019, %v3012
        %v3300 = vpack.c.b16 %v3020, %v3013
        %v3301 = vpack.c.b16 %v3021, %v3014
        %v3302 = vpack.c.b16 %v3022, %v3015
        %v3303 = vpack.c.b16 %v3030, %v3023
        %v3304 = vpack.c.b16 %v3031, %v3024
        %v3305 = vpack.c.b16 %v3032, %v3025
        %v3306 = vpack.c.b16 %v3033, %v3026
        %v3307 = vpack.c.b16 %v3034, %v3027
        %v3308 = vpack.c.b16 %v3035, %v3028
        %v3309 = vpack.c.b16 %v3036, %v3029
        %v3310 = vpack.c.b16 %v3044, %v3037
        %v3311 = vpack.c.b16 %v3045, %v3038
        %v3312 = vpack.c.b16 %v3046, %v3039
        %v3313 = vpack.c.b16 %v3047, %v3040
        %v3314 = vpack.c.b16 %v3048, %v3041
        %v3315 = vpack.c.b16 %v3049, %v3042
        %v3316 = vpack.c.b16 %v3050, %v3043
        %v3317 = vpack.c.b16 %v3058, %v3051
        %v3318 = vpack.c.b16 %v3059, %v3052
        %v3319 = vpack.c.b16 %v3060, %v3053
        %v3320 = vpack.c.b16 %v3061, %v3054
        %v3321 = vpack.c.b16 %v3062, %v3055
        %v3322 = vpack.c.b16 %v3063, %v3056
        %v3323 = vpack.c.b16 %v3064, %v3057
        %v3324 = vpack.c.b16 %v3072, %v3065
        %v3325 = vpack.c.b16 %v3073, %v3066
        %v3326 = vpack.c.b16 %v3074, %v3067
        %v3327 = vpack.c.b16 %v3075, %v3068
        %v3328 = vpack.c.b16 %v3076, %v3069
        %v3329 = vpack.c.b16 %v3077, %v3070
        %v3330 = vpack.c.b16 %v3078, %v3071
        %v3331 = vpack.c.b16 %v3086, %v3079
        %v3332 = vpack.c.b16 %v3087, %v3080
        %v3333 = vpack.c.b16 %v3088, %v3081
        %v3334 = vpack.c.b16 %v3089, %v3082
        %v3335 = vpack.c.b16 %v3090, %v3083
        %v3336 = vpack.c.b16 %v3091, %v3084
        %v3337 = vpack.c.b16 %v3092, %v3085
        %v3338 = vpack.c.b16 %v3100, %v3093
        %v3339 = vpack.c.b16 %v3101, %v3094
        %v3340 = vpack.c.b16 %v3102, %v3095
        %v3341 = vpack.c.b16 %v3103, %v3096
        %v3342 = vpack.c.b16 %v3104, %v3097
        %v3343 = vpack.c.b16 %v3105, %v3098
        %v3344 = vpack.c.b16 %v3106, %v3099
        %v3345 = vpack.c.b16 %v3114, %v3107
        %v3346 = vpack.c.b16 %v3115, %v3108
        %v3347 = vpack.c.b16 %v3116, %v3109
        %v3348 = vpack.c.b16 %v3117, %v3110
        %v3349 = vpack.c.b16 %v3118, %v3111
        %v3350 = vpack.c.b16 %v3119, %v3112
        %v3351 = vpack.c.b16 %v3120, %v3113
        %v3352 = vpack.c.b16 %v3128, %v3121
        %v3353 = vpack.c.b16 %v3129, %v3122
        %v3354 = vpack.c.b16 %v3130, %v3123
        %v3355 = vpack.c.b16 %v3131, %v3124
        %v3356 = vpack.c.b16 %v3132, %v3125
        %v3357 = vpack.c.b16 %v3133, %v3126
        %v3358 = vpack.c.b16 %v3134, %v3127
        %v3359 = vpack.c.b16 %v3142, %v3135
        %v3360 = vpack.c.b16 %v3143, %v3136
        %v3361 = vpack.c.b16 %v3144, %v3137
        %v3362 = vpack.c.b16 %v3145, %v3138
        %v3363 = vpack.c.b16 %v3146, %v3139
        %v3364 = vpack.c.b16 %v3147, %v3140
        %v3365 = vpack.c.b16 %v3148, %v3141
        %v3366 = vpack.c.b16 %v3156, %v3149
        %v3367 = vpack.c.b16 %v3157, %v3150
        %v3368 = vpack.c.b16 %v3158, %v3151
        %v3369 = vpack.c.b16 %v3159, %v3152
        %v3370 = vpack.c.b16 %v3160, %v3153
        %v3371 = vpack.c.b16 %v3161, %v3154
        %v3372 = vpack.c.b16 %v3162, %v3155
        %v3373 = vpack.c.b16 %v3170, %v3163
        %v3374 = vpack.c.b16 %v3171, %v3164
        %v3375 = vpack.c.b16 %v3172, %v3165
        %v3376 = vpack.c.b16 %v3173, %v3166
        %v3377 = vpack.c.b16 %v3174, %v3167
        %v3378 = vpack.c.b16 %v3175, %v3168
        %v3379 = vpack.c.b16 %v3176, %v3169
        %v3380 = vpack.c.b16 %v3184, %v3177
        %v3381 = vpack.c.b16 %v3185, %v3178
        %v3382 = vpack.c.b16 %v3186, %v3179
        %v3383 = vpack.c.b16 %v3187, %v3180
        %v3384 = vpack.c.b16 %v3188, %v3181
        %v3385 = vpack.c.b16 %v3189, %v3182
        %v3386 = vpack.c.b16 %v3190, %v3183
        %v3387 = vpack.c.b16 %v3198, %v3191
        %v3388 = vpack.c.b16 %v3199, %v3192
        %v3389 = vpack.c.b16 %v3200, %v3193
        %v3390 = vpack.c.b16 %v3201, %v3194
        %v3391 = vpack.c.b16 %v3202, %v3195
        %v3392 = vpack.c.b16 %v3203, %v3196
        %v3393 = vpack.c.b16 %v3204, %v3197
        %v3394 = vpack.c.b16 %v3212, %v3205
        %v3395 = vpack.c.b16 %v3213, %v3206
        %v3396 = vpack.c.b16 %v3214, %v3207
        %v3397 = vpack.c.b16 %v3215, %v3208
        %v3398 = vpack.c.b16 %v3216, %v3209
        %v3399 = vpack.c.b16 %v3217, %v3210
        %v3400 = vpack.c.b16 %v3218, %v3211
        %v3401 = vpack.c.b16 %v3226, %v3219
        %v3402 = vpack.c.b16 %v3227, %v3220
        %v3403 = vpack.c.b16 %v3228, %v3221
        %v3404 = vpack.c.b16 %v3229, %v3222
        %v3405 = vpack.c.b16 %v3230, %v3223
        %v3406 = vpack.c.b16 %v3231, %v3224
        %v3407 = vpack.c.b16 %v3232, %v3225
        %v3584 = vsel %vm1640, %v2445, 0
        %3586 = vmatprep.subr.bf16.mxu0 %v3234
        %3587 = vmatpush1.bf16.msra.mxu0 %v3233
        %3588 = vmatprep.subr.bf16.mxu0 %v3241
        %3589 = vmatpush1.bf16.msra.mxu0 %v3240
        %3590 = vmatprep.subr.bf16.mxu0 %v3248
        %3591 = vmatpush1.bf16.msra.mxu0 %v3247
        %3592 = vmatprep.subr.bf16.mxu0 %v3255
        %3593 = vmatpush1.bf16.msra.mxu0 %v3254
        %3594 = vmatprep.subr.bf16.mxu0 %v3262
        %3595 = vmatpush1.bf16.msra.mxu0 %v3261
        %3596 = vmatprep.subr.bf16.mxu0 %v3269
        %3597 = vmatpush1.bf16.msra.mxu0 %v3268
        %3598 = vmatprep.subr.bf16.mxu0 %v3276
        %3599 = vmatpush1.bf16.msra.mxu0 %v3275
        %3600 = vmatprep.subr.bf16.mxu0 %v3283
        %3601 = vmatpush1.bf16.msra.mxu0 %v3282
        %3602 = vmatprep.subr.bf16.mxu0 %v3290
        %3603 = vmatpush1.bf16.msra.mxu0 %v3289
        %3604 = vmatprep.subr.bf16.mxu0 %v3297
        %3605 = vmatpush1.bf16.msra.mxu0 %v3296
        %3606 = vmatprep.subr.bf16.mxu0 %v3304
        %3607 = vmatpush1.bf16.msra.mxu0 %v3303
        %3608 = vmatprep.subr.bf16.mxu0 %v3311
        %3609 = vmatpush1.bf16.msra.mxu0 %v3310
        %3610 = vmatprep.subr.bf16.mxu0 %v3318
        %3611 = vmatpush1.bf16.msra.mxu0 %v3317
        %3612 = vmatprep.subr.bf16.mxu0 %v3325
        %3613 = vmatpush1.bf16.msra.mxu0 %v3324
        %3614 = vmatprep.subr.bf16.mxu0 %v3332
        %3615 = vmatpush1.bf16.msra.mxu0 %v3331
        %3616 = vmatprep.subr.bf16.mxu0 %v3339
        %3617 = vmatpush1.bf16.msra.mxu0 %v3338
        %3618 = vmatprep.mubr.bf16.mxu0 %v2443
        %3619 = vmatmul.mubr.bf16.gmra.mrb[0].mxu0 %v2442
        %v3620 = vpop.f32.mrb[0].mxu0
        %v3621 = vadd.f32 %v2651, %v3620
        %v3622 = vpop.f32.mrb[0].mxu0
        %v3623 = vadd.f32 %v2655, %v3622
        %v3624 = vpop.f32.mrb[0].mxu0
        %v3625 = vpop.f32.mrb[0].mxu0
        %3626 = vdwg.mxu0
        %3627 = vmatprep.subr.bf16.mxu0 %v3346
        %3628 = vmatpush1.bf16.msra.mxu0 %v3345
        %3629 = vmatprep.subr.bf16.mxu0 %v3353
        %3630 = vmatpush1.bf16.msra.mxu0 %v3352
        %3631 = vmatprep.subr.bf16.mxu0 %v3360
        %3632 = vmatpush1.bf16.msra.mxu0 %v3359
        %3633 = vmatprep.subr.bf16.mxu0 %v3367
        %3634 = vmatpush1.bf16.msra.mxu0 %v3366
        %3635 = vmatprep.subr.bf16.mxu0 %v3374
        %3636 = vmatpush1.bf16.msra.mxu0 %v3373
        %3637 = vmatprep.subr.bf16.mxu0 %v3381
        %3638 = vmatpush1.bf16.msra.mxu0 %v3380
        %3639 = vmatprep.subr.bf16.mxu0 %v3388
        %3640 = vmatpush1.bf16.msra.mxu0 %v3387
        %3641 = vmatprep.subr.bf16.mxu0 %v3395
        %3642 = vmatpush1.bf16.msra.mxu0 %v3394
        %3643 = vmatprep.subr.bf16.mxu0 %v3402
        %3644 = vmatpush1.bf16.msra.mxu0 %v3401
        %3645 = vmatprep.subr.bf16.mxu0 0
        %3646 = vmatpush1.bf16.msra.mxu0 0
        %3647 = vmatprep.subr.bf16.mxu0 0
        %3648 = vmatpush1.bf16.msra.mxu0 0
        %3649 = vmatprep.subr.bf16.mxu0 0
        %3650 = vmatpush1.bf16.msra.mxu0 0
        %3651 = vmatprep.subr.bf16.mxu0 0
        %3652 = vmatpush1.bf16.msra.mxu0 0
        %3653 = vmatprep.subr.bf16.mxu0 0
        %3654 = vmatpush1.bf16.msra.mxu0 0
        %3655 = vmatprep.subr.bf16.mxu0 0
        %3656 = vmatpush1.bf16.msra.mxu0 0
        %3657 = vmatprep.subr.bf16.mxu0 0
        %3658 = vmatpush1.bf16.msra.mxu0 0
        %3659 = vmatprep.mubr.bf16.mxu0 %v3584
        %3660 = vmatmul.mubr.bf16.gmra.mrb[0].mxu0 %v2444
        %v3661 = vpop.f32.mrb[0].mxu0
        %v3662 = vadd.f32 %v3621, %v3661
        %v3663 = vpop.f32.mrb[0].mxu0
        %v3664 = vadd.f32 %v3623, %v3663
        %v3665 = vpop.f32.mrb[0].mxu0
        %v3666 = vpop.f32.mrb[0].mxu0
        %3667 = vdwg.mxu0
        %3668 = vmatprep.subr.bf16.mxu0 %v3236
        %3669 = vmatpush1.bf16.msra.mxu0 %v3235
        %3670 = vmatprep.subr.bf16.mxu0 %v3243
        %3671 = vmatpush1.bf16.msra.mxu0 %v3242
        %3672 = vmatprep.subr.bf16.mxu0 %v3250
        %3673 = vmatpush1.bf16.msra.mxu0 %v3249
        %3674 = vmatprep.subr.bf16.mxu0 %v3257
        %3675 = vmatpush1.bf16.msra.mxu0 %v3256
        %3676 = vmatprep.subr.bf16.mxu0 %v3264
        %3677 = vmatpush1.bf16.msra.mxu0 %v3263
        %3678 = vmatprep.subr.bf16.mxu0 %v3271
        %3679 = vmatpush1.bf16.msra.mxu0 %v3270
        %3680 = vmatprep.subr.bf16.mxu0 %v3278
        %3681 = vmatpush1.bf16.msra.mxu0 %v3277
        %3682 = vmatprep.subr.bf16.mxu0 %v3285
        %3683 = vmatpush1.bf16.msra.mxu0 %v3284
        %3684 = vmatprep.subr.bf16.mxu0 %v3292
        %3685 = vmatpush1.bf16.msra.mxu0 %v3291
        %3686 = vmatprep.subr.bf16.mxu0 %v3299
        %3687 = vmatpush1.bf16.msra.mxu0 %v3298
        %3688 = vmatprep.subr.bf16.mxu0 %v3306
        %3689 = vmatpush1.bf16.msra.mxu0 %v3305
        %3690 = vmatprep.subr.bf16.mxu0 %v3313
        %3691 = vmatpush1.bf16.msra.mxu0 %v3312
        %3692 = vmatprep.subr.bf16.mxu0 %v3320
        %3693 = vmatpush1.bf16.msra.mxu0 %v3319
        %3694 = vmatprep.subr.bf16.mxu0 %v3327
        %3695 = vmatpush1.bf16.msra.mxu0 %v3326
        %3696 = vmatprep.subr.bf16.mxu0 %v3334
        %3697 = vmatpush1.bf16.msra.mxu0 %v3333
        %3698 = vmatprep.subr.bf16.mxu0 %v3341
        %3699 = vmatpush1.bf16.msra.mxu0 %v3340
        %3700 = vmatprep.mubr.bf16.mxu0 %v2443
        %3701 = vmatmul.mubr.bf16.gmra.mrb[0].mxu0 %v2442
        %v3702 = vpop.f32.mrb[0].mxu0
        %v3703 = vadd.f32 %v2659, %v3702
        %v3704 = vpop.f32.mrb[0].mxu0
        %v3705 = vadd.f32 %v2663, %v3704
        %v3706 = vpop.f32.mrb[0].mxu0
        %v3707 = vpop.f32.mrb[0].mxu0
        %3708 = vdwg.mxu0
        %3709 = vmatprep.subr.bf16.mxu0 %v3348
        %3710 = vmatpush1.bf16.msra.mxu0 %v3347
        %3711 = vmatprep.subr.bf16.mxu0 %v3355
        %3712 = vmatpush1.bf16.msra.mxu0 %v3354
        %3713 = vmatprep.subr.bf16.mxu0 %v3362
        %3714 = vmatpush1.bf16.msra.mxu0 %v3361
        %3715 = vmatprep.subr.bf16.mxu0 %v3369
        %3716 = vmatpush1.bf16.msra.mxu0 %v3368
        %3717 = vmatprep.subr.bf16.mxu0 %v3376
        %3718 = vmatpush1.bf16.msra.mxu0 %v3375
        %3719 = vmatprep.subr.bf16.mxu0 %v3383
        %3720 = vmatpush1.bf16.msra.mxu0 %v3382
        %3721 = vmatprep.subr.bf16.mxu0 %v3390
        %3722 = vmatpush1.bf16.msra.mxu0 %v3389
        %3723 = vmatprep.subr.bf16.mxu0 %v3397
        %3724 = vmatpush1.bf16.msra.mxu0 %v3396
        %3725 = vmatprep.subr.bf16.mxu0 %v3404
        %3726 = vmatpush1.bf16.msra.mxu0 %v3403
        %3727 = vmatprep.subr.bf16.mxu0 0
        %3728 = vmatpush1.bf16.msra.mxu0 0
        %3729 = vmatprep.subr.bf16.mxu0 0
        %3730 = vmatpush1.bf16.msra.mxu0 0
        %3731 = vmatprep.subr.bf16.mxu0 0
        %3732 = vmatpush1.bf16.msra.mxu0 0
        %3733 = vmatprep.subr.bf16.mxu0 0
        %3734 = vmatpush1.bf16.msra.mxu0 0
        %3735 = vmatprep.subr.bf16.mxu0 0
        %3736 = vmatpush1.bf16.msra.mxu0 0
        %3737 = vmatprep.subr.bf16.mxu0 0
        %3738 = vmatpush1.bf16.msra.mxu0 0
        %3739 = vmatprep.subr.bf16.mxu0 0
        %3740 = vmatpush1.bf16.msra.mxu0 0
        %3741 = vmatprep.mubr.bf16.mxu0 %v3584
        %3742 = vmatmul.mubr.bf16.gmra.mrb[0].mxu0 %v2444
        %v3743 = vpop.f32.mrb[0].mxu0
        %v3744 = vadd.f32 %v3703, %v3743
        %v3745 = vpop.f32.mrb[0].mxu0
        %v3746 = vadd.f32 %v3705, %v3745
        %v3747 = vpop.f32.mrb[0].mxu0
        %v3748 = vpop.f32.mrb[0].mxu0
        %3749 = vdwg.mxu0
        %3750 = vmatprep.subr.bf16.mxu0 %v3238
        %3751 = vmatpush1.bf16.msra.mxu0 %v3237
        %3752 = vmatprep.subr.bf16.mxu0 %v3245
        %3753 = vmatpush1.bf16.msra.mxu0 %v3244
        %3754 = vmatprep.subr.bf16.mxu0 %v3252
        %3755 = vmatpush1.bf16.msra.mxu0 %v3251
        %3756 = vmatprep.subr.bf16.mxu0 %v3259
        %3757 = vmatpush1.bf16.msra.mxu0 %v3258
        %3758 = vmatprep.subr.bf16.mxu0 %v3266
        %3759 = vmatpush1.bf16.msra.mxu0 %v3265
        %3760 = vmatprep.subr.bf16.mxu0 %v3273
        %3761 = vmatpush1.bf16.msra.mxu0 %v3272
        %3762 = vmatprep.subr.bf16.mxu0 %v3280
        %3763 = vmatpush1.bf16.msra.mxu0 %v3279
        %3764 = vmatprep.subr.bf16.mxu0 %v3287
        %3765 = vmatpush1.bf16.msra.mxu0 %v3286
        %3766 = vmatprep.subr.bf16.mxu0 %v3294
        %3767 = vmatpush1.bf16.msra.mxu0 %v3293
        %3768 = vmatprep.subr.bf16.mxu0 %v3301
        %3769 = vmatpush1.bf16.msra.mxu0 %v3300
        %3770 = vmatprep.subr.bf16.mxu0 %v3308
        %3771 = vmatpush1.bf16.msra.mxu0 %v3307
        %3772 = vmatprep.subr.bf16.mxu0 %v3315
        %3773 = vmatpush1.bf16.msra.mxu0 %v3314
        %3774 = vmatprep.subr.bf16.mxu0 %v3322
        %3775 = vmatpush1.bf16.msra.mxu0 %v3321
        %3776 = vmatprep.subr.bf16.mxu0 %v3329
        %3777 = vmatpush1.bf16.msra.mxu0 %v3328
        %3778 = vmatprep.subr.bf16.mxu0 %v3336
        %3779 = vmatpush1.bf16.msra.mxu0 %v3335
        %3780 = vmatprep.subr.bf16.mxu0 %v3343
        %3781 = vmatpush1.bf16.msra.mxu0 %v3342
        %3782 = vmatprep.mubr.bf16.mxu0 %v2443
        %3783 = vmatmul.mubr.bf16.gmra.mrb[0].mxu0 %v2442
        %v3784 = vpop.f32.mrb[0].mxu0
        %v3785 = vadd.f32 %v2667, %v3784
        %v3786 = vpop.f32.mrb[0].mxu0
        %v3787 = vadd.f32 %v2671, %v3786
        %v3788 = vpop.f32.mrb[0].mxu0
        %v3789 = vpop.f32.mrb[0].mxu0
        %3790 = vdwg.mxu0
        %3791 = vmatprep.subr.bf16.mxu0 %v3350
        %3792 = vmatpush1.bf16.msra.mxu0 %v3349
        %3793 = vmatprep.subr.bf16.mxu0 %v3357
        %3794 = vmatpush1.bf16.msra.mxu0 %v3356
        %3795 = vmatprep.subr.bf16.mxu0 %v3364
        %3796 = vmatpush1.bf16.msra.mxu0 %v3363
        %3797 = vmatprep.subr.bf16.mxu0 %v3371
        %3798 = vmatpush1.bf16.msra.mxu0 %v3370
        %3799 = vmatprep.subr.bf16.mxu0 %v3378
        %3800 = vmatpush1.bf16.msra.mxu0 %v3377
        %3801 = vmatprep.subr.bf16.mxu0 %v3385
        %3802 = vmatpush1.bf16.msra.mxu0 %v3384
        %3803 = vmatprep.subr.bf16.mxu0 %v3392
        %3804 = vmatpush1.bf16.msra.mxu0 %v3391
        %3805 = vmatprep.subr.bf16.mxu0 %v3399
        %3806 = vmatpush1.bf16.msra.mxu0 %v3398
        %3807 = vmatprep.subr.bf16.mxu0 %v3406
        %3808 = vmatpush1.bf16.msra.mxu0 %v3405
        %3809 = vmatprep.subr.bf16.mxu0 0
        %3810 = vmatpush1.bf16.msra.mxu0 0
        %3811 = vmatprep.subr.bf16.mxu0 0
        %3812 = vmatpush1.bf16.msra.mxu0 0
        %3813 = vmatprep.subr.bf16.mxu0 0
        %3814 = vmatpush1.bf16.msra.mxu0 0
        %3815 = vmatprep.subr.bf16.mxu0 0
        %3816 = vmatpush1.bf16.msra.mxu0 0
        %3817 = vmatprep.subr.bf16.mxu0 0
        %3818 = vmatpush1.bf16.msra.mxu0 0
        %3819 = vmatprep.subr.bf16.mxu0 0
        %3820 = vmatpush1.bf16.msra.mxu0 0
        %3821 = vmatprep.subr.bf16.mxu0 0
        %3822 = vmatpush1.bf16.msra.mxu0 0
        %3823 = vmatprep.mubr.bf16.mxu0 %v3584
        %3824 = vmatmul.mubr.bf16.gmra.mrb[0].mxu0 %v2444
        %v3825 = vpop.f32.mrb[0].mxu0
        %v3826 = vadd.f32 %v3785, %v3825
        %v3827 = vpop.f32.mrb[0].mxu0
        %v3828 = vadd.f32 %v3787, %v3827
        %v3829 = vpop.f32.mrb[0].mxu0
        %v3830 = vpop.f32.mrb[0].mxu0
        %3831 = vdwg.mxu0
        %3832 = vmatprep.subr.bf16.mxu0 0
        %3833 = vmatpush1.bf16.msra.mxu0 %v3239
        %3834 = vmatprep.subr.bf16.mxu0 0
        %3835 = vmatpush1.bf16.msra.mxu0 %v3246
        %3836 = vmatprep.subr.bf16.mxu0 0
        %3837 = vmatpush1.bf16.msra.mxu0 %v3253
        %3838 = vmatprep.subr.bf16.mxu0 0
        %3839 = vmatpush1.bf16.msra.mxu0 %v3260
        %3840 = vmatprep.subr.bf16.mxu0 0
        %3841 = vmatpush1.bf16.msra.mxu0 %v3267
        %3842 = vmatprep.subr.bf16.mxu0 0
        %3843 = vmatpush1.bf16.msra.mxu0 %v3274
        %3844 = vmatprep.subr.bf16.mxu0 0
        %3845 = vmatpush1.bf16.msra.mxu0 %v3281
        %3846 = vmatprep.subr.bf16.mxu0 0
        %3847 = vmatpush1.bf16.msra.mxu0 %v3288
        %3848 = vmatprep.subr.bf16.mxu0 0
        %3849 = vmatpush1.bf16.msra.mxu0 %v3295
        %3850 = vmatprep.subr.bf16.mxu0 0
        %3851 = vmatpush1.bf16.msra.mxu0 %v3302
        %3852 = vmatprep.subr.bf16.mxu0 0
        %3853 = vmatpush1.bf16.msra.mxu0 %v3309
        %3854 = vmatprep.subr.bf16.mxu0 0
        %3855 = vmatpush1.bf16.msra.mxu0 %v3316
        %3856 = vmatprep.subr.bf16.mxu0 0
        %3857 = vmatpush1.bf16.msra.mxu0 %v3323
        %3858 = vmatprep.subr.bf16.mxu0 0
        %3859 = vmatpush1.bf16.msra.mxu0 %v3330
        %3860 = vmatprep.subr.bf16.mxu0 0
        %3861 = vmatpush1.bf16.msra.mxu0 %v3337
        %3862 = vmatprep.subr.bf16.mxu0 0
        %3863 = vmatpush1.bf16.msra.mxu0 %v3344
        %3864 = vmatprep.mubr.bf16.mxu0 %v2443
        %3865 = vmatmul.mubr.bf16.gmra.mrb[0].mxu0 %v2442
        %v3866 = vpop.f32.mrb[0].mxu0
        %v3867 = vadd.f32 %v2675, %v3866
        %v3868 = vpop.f32.mrb[0].mxu0
        %v3869 = vpop.f32.mrb[0].mxu0
        %v3870 = vpop.f32.mrb[0].mxu0
        %3871 = vdwg.mxu0
        %3872 = vmatprep.subr.bf16.mxu0 0
        %3873 = vmatpush1.bf16.msra.mxu0 %v3351
        %3874 = vmatprep.subr.bf16.mxu0 0
        %3875 = vmatpush1.bf16.msra.mxu0 %v3358
        %3876 = vmatprep.subr.bf16.mxu0 0
        %3877 = vmatpush1.bf16.msra.mxu0 %v3365
        %3878 = vmatprep.subr.bf16.mxu0 0
        %3879 = vmatpush1.bf16.msra.mxu0 %v3372
        %3880 = vmatprep.subr.bf16.mxu0 0
        %3881 = vmatpush1.bf16.msra.mxu0 %v3379
        %3882 = vmatprep.subr.bf16.mxu0 0
        %3883 = vmatpush1.bf16.msra.mxu0 %v3386
        %3884 = vmatprep.subr.bf16.mxu0 0
        %3885 = vmatpush1.bf16.msra.mxu0 %v3393
        %3886 = vmatprep.subr.bf16.mxu0 0
        %3887 = vmatpush1.bf16.msra.mxu0 %v3400
        %3888 = vmatprep.subr.bf16.mxu0 0
        %3889 = vmatpush1.bf16.msra.mxu0 %v3407
        %3890 = vmatprep.subr.bf16.mxu0 0
        %3891 = vmatpush1.bf16.msra.mxu0 0
        %3892 = vmatprep.subr.bf16.mxu0 0
        %3893 = vmatpush1.bf16.msra.mxu0 0
        %3894 = vmatprep.subr.bf16.mxu0 0
        %3895 = vmatpush1.bf16.msra.mxu0 0
        %3896 = vmatprep.subr.bf16.mxu0 0
        %3897 = vmatpush1.bf16.msra.mxu0 0
        %3898 = vmatprep.subr.bf16.mxu0 0
        %3899 = vmatpush1.bf16.msra.mxu0 0
        %3900 = vmatprep.subr.bf16.mxu0 0
        %3901 = vmatpush1.bf16.msra.mxu0 0
        %3902 = vmatprep.subr.bf16.mxu0 0
        %3903 = vmatpush1.bf16.msra.mxu0 0
        %3904 = vmatprep.mubr.bf16.mxu0 %v3584
        %3905 = vmatmul.mubr.bf16.gmra.mrb[0].mxu0 %v2444
        %v3906 = vpop.f32.mrb[0].mxu0
        %v3907 = vadd.f32 %v3867, %v3906
        %v3908 = vpop.f32.mrb[0].mxu0
        %v3909 = vpop.f32.mrb[0].mxu0
        %v3910 = vpop.f32.mrb[0].mxu0
        %3911 = vdwg.mxu0
        %v3912 = vmul.f32 %v3662, 0.5
        %v3913 = vmul.f32 %v3664, 0.5
        %v3914 = vmul.f32 %v3744, 0.5
        %v3915 = vmul.f32 %v3746, 0.5
        %v3916 = vmul.f32 %v3826, 0.5
        %v3917 = vmul.f32 %v3828, 0.5
        %v3918 = vmul.f32 %v3907, 0.5
        %v3919 = vtanh.pop %v3912
        %v3920 = vtanh.pop %v3913
        %v3921 = vtanh.pop %v3914
        %v3922 = vtanh.pop %v3915
        %v3923 = vtanh.pop %v3916
        %v3924 = vtanh.pop %v3917
        %v3925 = vtanh.pop %v3918
        %v3926 = vadd.f32 %v3919, 1.0
        %v3927 = vadd.f32 %v3920, 1.0
        %v3928 = vadd.f32 %v3921, 1.0
        %v3929 = vadd.f32 %v3922, 1.0
        %v3930 = vadd.f32 %v3923, 1.0
        %v3931 = vadd.f32 %v3924, 1.0
        %v3932 = vadd.f32 %v3925, 1.0
        %v3933 = vmul.f32 %v3926, 0.5
        %v3934 = vmul.f32 %v3927, 0.5
        %v3935 = vmul.f32 %v3928, 0.5
        %v3936 = vmul.f32 %v3929, 0.5
        %v3937 = vmul.f32 %v3930, 0.5
        %v3938 = vmul.f32 %v3931, 0.5
        %v3939 = vmul.f32 %v3932, 0.5
        %v3940 = vpack.c.bf16 %v3933, %v3933
        %v3941 = vpack.c.bf16 %v3934, %v3934
        %v3942 = vpack.c.bf16 %v3935, %v3935
        %v3943 = vpack.c.bf16 %v3936, %v3936
        %v3944 = vpack.c.bf16 %v3937, %v3937
        %v3945 = vpack.c.bf16 %v3938, %v3938
        %v3946 = vpack.c.bf16 %v3939, %v3939
        %v3954 = vunpack.c.l.b16 %v3940
        %v3955 = vunpack.c.l.b16 %v3941
        %v3956 = vunpack.c.l.b16 %v3942
        %v3957 = vunpack.c.l.b16 %v3943
        %v3958 = vunpack.c.l.b16 %v3944
        %v3959 = vunpack.c.l.b16 %v3945
        %v3960 = vunpack.c.l.b16 %v3946
        %v3961 = vpack.c.b16 %v3955, %v3954
        %v3962 = vpack.c.b16 %v3957, %v3956
        %v3963 = vpack.c.b16 %v3959, %v3958
        %v3964 = vpack.c.b16 %v3960, %v3960
        %3969 = vst [vmem:[%s396] sm:$0xff] %v3961
        %3970 = vst [vmem:[%s396 + $0x8] sm:$0xff] %v3962
        %3971 = vst [vmem:[%s396 + $0x10] sm:$0xff] %v3963
        %vm3972 = vcmask 125952
        %3973 = vst.msk [vmem:[%s396 + $0x18] sm:$0xf] %vm3972, %v3964
        %3974 = vst [vmem:[%s403] sm:$0xff] %v2265
        %s3975 = sand.u32 %s257, 1
        %s3976 = scalar_lea.sflag [#allocation3], %s3975
        %s3977 = sand.u32 %s257, 1
        %s3978 = smul.addr %s3977, 28
        %s3979 = scalar_lea.vmem [#allocation2], %s3978
        %s3980 = sand.u32 %s283, 1
        %s3981 = scalar_lea.sflag [#allocation5], %s3980
        %s3982 = sand.u32 %s283, 1
        %s3983 = smul.addr %s3982, 8
        %s3984 = scalar_lea.vmem [#allocation4], %s3983
        // Predicated region
        $region61: #{tpu_custom_call.1} parent=59 // pred_check
          %p3985 = pneg %p267
        $region62: #{tpu_custom_call.1} parent=59 // pred_check_branch
          %3987 = sbr.rel (%p3985) target = $region64
        $region63: #{tpu_custom_call.1} parent=59 // pred_region
          %s3989 = ssub.s32 448, 448
          %3990 = vsyncadd %s3976, %s3989
          %s3991 = smul.addr %s29, 7
          %s3992 = smul.addr %s3991, 64
          %s3993 = scalar_lea.hbm %s10, %s3992
          %s3995 = sshll.u32 %s3979, 4
          %s3996 = int_to_ptr.vmem [resolvable:$true] %s3995
          %3998 = dma.vmem_to_hbm [thread:$0]  %s3996, 448, %s3993, %s3976
        $region64: #{tpu_custom_call.1} parent=59 // pred_fallthru
          _
        // Predicated region
        $region65: #{tpu_custom_call.1} parent=59 // pred_check
          %p3999 = pneg %p293
        $region66: #{tpu_custom_call.1} parent=59 // pred_check_branch
          %4001 = sbr.rel (%p3999) target = $region68
        $region67: #{tpu_custom_call.1} parent=59 // pred_region
          %s4003 = ssub.s32 128, 128
          %4004 = vsyncadd %s3981, %s4003
          %s4005 = smul.addr %s29, 128
          %s4006 = scalar_lea.hbm %s11, %s4005
          %s4008 = sshll.u32 %s3984, 4
          %s4009 = int_to_ptr.vmem [resolvable:$true] %s4008
          %4011 = dma.vmem_to_hbm [thread:$0]  %s4009, 128, %s4006, %s3981
        $region68: #{tpu_custom_call.1} parent=59 // pred_fallthru
          _
      $region60: #{tpu_custom_call.1} parent=5 // pred_fallthru
        _
      %p4012 = scmp.le.s32.totalorder 2, %s24
      // Predicated region
      $region69: #{tpu_custom_call.1} parent=5 // pred_check
        %p4013 = pneg %p4012
      $region70: #{tpu_custom_call.1} parent=5 // pred_check_branch
        %4015 = sbr.rel (%p4013) target = $region72
      $region71: #{tpu_custom_call.1} parent=5 // pred_region
        %s4016 = ssub.s32 %s24, 2
        // Predicated region
        $region73: #{tpu_custom_call.1} parent=71 // pred_check
          %p4017 = pneg %p273
        $region74: #{tpu_custom_call.1} parent=71 // pred_check_branch
          %4019 = sbr.rel (%p4017) target = $region76
        $region75: #{tpu_custom_call.1} parent=71 // pred_region
          %s4020 = sand.u32 %s258, 1
          %s4021 = scalar_lea.sflag [#allocation3], %s4020
          %s4022 = sand.u32 %s258, 1
          %s4023 = smul.addr %s4022, 28
          %s4024 = scalar_lea.vmem [#allocation2], %s4023
          %4025 = dma.done %s4021, 448
        $region76: #{tpu_custom_call.1} parent=71 // pred_fallthru
          _
        // Predicated region
        $region77: #{tpu_custom_call.1} parent=71 // pred_check
          %p4026 = pneg %p299
        $region78: #{tpu_custom_call.1} parent=71 // pred_check_branch
          %4028 = sbr.rel (%p4026) target = $region80
        $region79: #{tpu_custom_call.1} parent=71 // pred_region
          %s4029 = sand.u32 %s284, 1
          %s4030 = scalar_lea.sflag [#allocation5], %s4029
          %s4031 = sand.u32 %s284, 1
          %s4032 = smul.addr %s4031, 8
          %s4033 = scalar_lea.vmem [#allocation4], %s4032
          %4034 = dma.done %s4030, 128
        $region80: #{tpu_custom_call.1} parent=71 // pred_fallthru
          _
      $region72: #{tpu_custom_call.1} parent=5 // pred_fallthru
        _
    $region6: #{tpu_custom_call.1} parent=1 // loop_footer
      %s28 = sadd.s32 1, %s24
    $region7: #{tpu_custom_call.1} parent=1 // loop_footer_branch
      %23 = sbr.rel target = $region3
    $region8: #{tpu_custom_call.1} parent=1 // loop_exit
      _
    %4035 = vsyncpa [#allocation3], 1
    %s4036 = scalar_lea.sflag [#allocation3], 1
    %4037 = vsyncpa %s4036, 1
    %4038 = vsyncpa [#allocation5], 1
    %s4039 = scalar_lea.sflag [#allocation5], 1
    %4040 = vsyncpa %s4039, 1

</llo_original>
